<compile_context>
chip_gen: v7x
topology: tpu7x:2x2x1
jax: 0.10.0
libtpu: 0.0.40
codegen_flags: <defaults>
</compile_context>

<pallas_src>
import math

import jax
import jax.numpy as jnp
from jax.experimental import pallas as pl
from jax.experimental.pallas import tpu as pltpu


# ---------------------------------------------------------------------------
# Kernel
# ---------------------------------------------------------------------------
def predictor_lg_kernel(x_ref, polt_ref, wm_ref, bm_ref,
                        w1l_ref, w1g_ref, b1_ref,
                        w2_ref, b2_ref, w3_ref, b3_ref, o_ref):
    """One block of Bb batch elements per grid step.

    x_ref    : (Bb, N, C)  bf16 tokens
    polt_ref : (Bb, 1, N)  f32 policy (transposed for the pooling matvec)
    wm_ref   : (12, C, C)  bf16 Mlp weights, [0..5]=mlp_local, [6..11]=mlp_global,
                           pre-transposed so the kernel computes h @ W
    bm_ref   : (12, 1, C)  f32 Mlp biases
    w1l_ref  : (C, C//2)   bf16 out_conv[0] weight half applied to local_x
    w1g_ref  : (C, C//2)   bf16 out_conv[0] weight half applied to pooled global_x
    b1_ref   : (1, C//2)   f32
    w2_ref   : (C//2, C//4) bf16 ; b2_ref: (1, C//4) f32
    w3_ref   : (C//4, 2)    bf16 ; b3_ref: (1, 2)    f32
    o_ref    : (Bb, N, 2)  f32 log-softmax scores
    """
    Bb, N, C = x_ref.shape
    rows = Bb * N
    half = w1l_ref.shape[1]
    bf16 = jnp.bfloat16

    # TODO(synk): `self.in_conv` is referenced in PredictorLG.forward but never
    # defined in the provided __init__; treated as identity here.
    x = x_ref[...].reshape(rows, C)          # bf16, batch folded into MXU rows

    def mlp(h, idx):
        # Mlp: fc1 -> ReLU -> Dropout(eval: identity) -> fc2 -> Dropout(identity)
        # bf16 MXU inputs, f32 accumulate / bias / ReLU.
        h = h.astype(bf16)
        h1 = jnp.dot(h, wm_ref[idx], preferred_element_type=jnp.float32) + bm_ref[idx]
        h1 = jnp.maximum(h1, 0.0).astype(bf16)
        return (jnp.dot(h1, wm_ref[idx + 1], preferred_element_type=jnp.float32)
                + bm_ref[idx + 1])

    # ---- global branch first: after pooling only (Bb, C//2) stays live ----
    g = x
    for i in range(3):                       # static unroll: 3 Mlps
        g = mlp(g, 6 + 2 * i)
    g = g.astype(bf16).reshape(Bb, N, C)

    polt = polt_ref[...]                     # (Bb, 1, N) f32
    pooled_rows = []
    for b in range(Bb):                      # static unroll, Bb is small
        pol_row = polt[b]                                    # (1, N)
        # no epsilon on the denominator, matching the torch module exactly
        denom = jnp.sum(pol_row, axis=-1, keepdims=True)     # (1, 1)
        num = jnp.dot(pol_row.astype(bf16), g[b],            # MXU matvec pooling
                      preferred_element_type=jnp.float32)    # (1, C)
        pooled_rows.append(num / denom)
    pooled = jnp.concatenate(pooled_rows, axis=0)            # (Bb, C) f32

    # global half of out_conv[0], applied once per batch element
    hg = jnp.dot(pooled.astype(bf16), w1g_ref[...],
                 preferred_element_type=jnp.float32)         # (Bb, half)

    # ---- local branch ----
    l = x
    for i in range(3):
        l = mlp(l, 2 * i)

    # ---- out_conv head.
    # cat([local, pooled.expand], -1) @ W1 == local @ W1_local + pooled @ W1_global
    # (broadcast over each batch element's rows), so the concat never exists.
    # TODO(synk): the spec declares Linear(embed_dim, embed_dim//2) for the head
    # input, inconsistent with the 2*embed_dim concat; implemented as
    # Linear(2*embed_dim, embed_dim//2) split into two halves.
    h = jnp.dot(l.astype(bf16), w1l_ref[...], preferred_element_type=jnp.float32)
    h = h.reshape(Bb, N, half) + hg.reshape(Bb, 1, half) + b1_ref[...]
    h = jnp.maximum(h, 0.0).reshape(rows, half).astype(bf16)
    h = jnp.maximum(
        jnp.dot(h, w2_ref[...], preferred_element_type=jnp.float32) + b2_ref[...],
        0.0).astype(bf16)
    logits = (jnp.dot(h, w3_ref[...], preferred_element_type=jnp.float32)
              + b3_ref[...])                                 # (rows, 2) f32

    # 2-class log-softmax in closed form: lse = l0 + softplus(l1 - l0)
    # (no 2-wide lane reduction, pure VPU/EUP work).
    l0 = logits[:, 0:1]
    d = logits[:, 1:2] - l0
    lse = l0 + jnp.maximum(d, 0.0) + jnp.log(1.0 + jnp.exp(-jnp.abs(d)))
    o_ref[...] = (logits - lse).reshape(Bb, N, 2).astype(o_ref.dtype)


# ---------------------------------------------------------------------------
# VMEM budgeting / tiling heuristics
# ---------------------------------------------------------------------------
_VMEM_CAP_BYTES = 56 * 1024 * 1024   # keep headroom under v7x's 64 MiB / TensorCore


def _estimate_vmem_bytes(Bb, N, C, half, quarter, weight_buffers):
    bf16_b, f32_b = 2, 4
    weights = ((12 * C * C + 2 * C * half + half * quarter + quarter * 2) * bf16_b
               + (12 * C + half + quarter + 2) * f32_b)
    streamed = (Bb * N * C * bf16_b       # x block
                + Bb * N * f32_b          # policy block
                + Bb * N * 2 * f32_b)     # output block
    live_acts = 3 * Bb * N * C * f32_b    # rough live f32 activation / spill slack
    return weights * weight_buffers + streamed * 2 + live_acts


def _choose_batch_block(B, N, C, half, quarter, target_rows=256):
    """Largest divisor of B that fits the VMEM cap, stopping once we reach
    ~target_rows effective MXU rows per grid step."""
    best = 1
    for d in range(1, B + 1):
        if B % d:
            continue
        if _estimate_vmem_bytes(d, N, C, half, quarter, 2) > _VMEM_CAP_BYTES:
            break
        best = d
        if d * N >= target_rows:
            break
    return best


def _vmem_limit_bytes(Bb, N, C, half, quarter, weight_buffers):
    est = _estimate_vmem_bytes(Bb, N, C, half, quarter, weight_buffers)
    return int(min(max(est + 16 * 1024 * 1024, 32 * 1024 * 1024), _VMEM_CAP_BYTES))


# ---------------------------------------------------------------------------
# Wrapper
# ---------------------------------------------------------------------------
def _cast_params(params):
    (wm, bm, w1l, w1g, b1, w2, b2, w3, b3) = params
    bf = jnp.bfloat16
    return (wm.astype(bf), bm, w1l.astype(bf), w1g.astype(bf), b1,
            w2.astype(bf), b2, w3.astype(bf), b3)


def _predictor_lg_call(x, policy, params, *, single_buffer_weights):
    B, N, C = x.shape
    half, quarter = C // 2, C // 4
    (wm, bm, w1l, w1g, b1, w2, b2, w3, b3) = _cast_params(params)

    Bb = _choose_batch_block(B, N, C, half, quarter)
    weight_buffers = 1 if single_buffer_weights else 2
    vmem_limit = _vmem_limit_bytes(Bb, N, C, half, quarter, weight_buffers)

    x_bf = x.astype(jnp.bfloat16)                            # halve HBM traffic
    pol_t = jnp.swapaxes(policy, 1, 2).astype(jnp.float32)   # (B, 1, N)

    def resident(shape):
        # Constant index_map: weights stay VMEM-resident across all grid steps.
        ndim = len(shape)
        if single_buffer_weights:
            return pl.BlockSpec(shape, lambda b: (0,) * ndim,
                                pipeline_mode=pl.Buffered(1))
        return pl.BlockSpec(shape, lambda b: (0,) * ndim)

    # TODO(synk): for very large N (where a (Bb, N, C) block no longer fits the
    # VMEM cap), add a token-tile grid axis with a two-phase schedule
    # (accumulate sum(glob*pol)/sum(pol) first, then re-stream tiles for the
    # local branch + head).
    grid_spec = pltpu.PrefetchScalarGridSpec(
        num_scalar_prefetch=0,
        grid=(B // Bb,),
        in_specs=[
            pl.BlockSpec((Bb, N, C), lambda b: (b, 0, 0)),   # x (streamed, bf16)
            pl.BlockSpec((Bb, 1, N), lambda b: (b, 0, 0)),   # policy^T (streamed)
            resident((12, C, C)),                            # Mlp weights (bf16)
            resident((12, 1, C)),                            # Mlp biases (f32)
            resident((C, half)),                             # out_conv[0] local half
            resident((C, half)),                             # out_conv[0] global half
            resident((1, half)),
            resident((half, quarter)),
            resident((1, quarter)),
            resident((quarter, 2)),
            resident((1, 2)),
        ],
        out_specs=pl.BlockSpec((Bb, N, 2), lambda b: (b, 0, 0)),
    )

    fn = pl.pallas_call(
        predictor_lg_kernel,
        out_shape=jax.ShapeDtypeStruct((B, N, 2), jnp.float32),
        grid_spec=grid_spec,
        compiler_params=pltpu.CompilerParams(
            dimension_semantics=("parallel",),               # batch tiles across TCs
            vmem_limit_bytes=vmem_limit,
        ),
    )
    return fn(x_bf, pol_t, wm, bm, w1l, w1g, b1, w2, b2, w3, b3)


def predictor_lg_forward(x, policy, params):
    """x: (B, N, C) f32, policy: (B, N, 1) f32. Returns (B, N, 2) f32 log-probs."""
    try:
        out = _predictor_lg_call(x, policy, params, single_buffer_weights=True)
        return jax.block_until_ready(out)
    except Exception:
        # TODO(synk): pl.Buffered(1) single-buffered resident weights not
        # supported by this JAX version's pallas_call path; fall back to the
        # default double-buffered weight specs.
        out = _predictor_lg_call(x, policy, params, single_buffer_weights=False)
        return jax.block_until_ready(out)


# ---------------------------------------------------------------------------
# Params + references
# ---------------------------------------------------------------------------
def init_params(key, embed_dim):
    """Deterministic init mirroring the PyTorch module (weights pre-transposed),
    kept as f32 masters; the kernel wrapper casts matmul weights to bf16."""
    C = embed_dim
    half, quarter = C // 2, C // 4
    k = jax.random.split(key, 8)

    # Mlp._init_weights: xavier_uniform weights (fan_in = fan_out = C), 1e-6 normal bias.
    bound_mlp = math.sqrt(6.0 / (C + C))
    wm = jax.random.uniform(k[0], (12, C, C), minval=-bound_mlp, maxval=bound_mlp,
                            dtype=jnp.float32)
    bm = 1e-6 * jax.random.normal(k[1], (12, 1, C), dtype=jnp.float32)

    def linear(kw, kb, fan_in, fan_out):
        bound = math.sqrt(6.0 / (fan_in + fan_out))
        w = jax.random.uniform(kw, (fan_in, fan_out), minval=-bound, maxval=bound,
                               dtype=jnp.float32)
        b = 1e-6 * jax.random.normal(kb, (1, fan_out), dtype=jnp.float32)
        return w, b

    w1, b1 = linear(k[2], k[3], 2 * C, half)     # head input = cat([local, global])
    w1l, w1g = w1[:C], w1[C:]
    w2, b2 = linear(k[4], k[5], half, quarter)
    w3, b3 = linear(k[6], k[7], quarter, 2)
    return (wm, bm, w1l, w1g, b1, w2, b2, w3, b3)


def reference_forward_bf16(x, policy, params):
    """Pure-JAX reference replicating the kernel's bf16-input / f32-accumulate
    math (tight correctness check)."""
    (wm, bm, w1l, w1g, b1, w2, b2, w3, b3) = _cast_params(params)
    bf = jnp.bfloat16
    xb = x.astype(bf)

    def mlp(h, i):
        h1 = jnp.dot(h.astype(bf), wm[i], preferred_element_type=jnp.float32) + bm[i]
        h1 = jnp.maximum(h1, 0.0).astype(bf)
        return jnp.dot(h1, wm[i + 1], preferred_element_type=jnp.float32) + bm[i + 1]

    g = xb
    for i in range(3):
        g = mlp(g, 6 + 2 * i)
    pol_t = jnp.swapaxes(policy, 1, 2)                                  # (B, 1, N)
    num = jnp.matmul(pol_t.astype(bf), g.astype(bf),
                     preferred_element_type=jnp.float32)                # (B, 1, C)
    pooled = num / jnp.sum(policy, axis=1, keepdims=True)
    hg = jnp.dot(pooled.astype(bf), w1g, preferred_element_type=jnp.float32)

    l = xb
    for i in range(3):
        l = mlp(l, 2 * i)

    h = jnp.dot(l.astype(bf), w1l, preferred_element_type=jnp.float32)
    h = jnp.maximum(h + hg + b1, 0.0)
    h = jnp.maximum(jnp.dot(h.astype(bf), w2, preferred_element_type=jnp.float32) + b2,
                    0.0)
    logits = jnp.dot(h.astype(bf), w3, preferred_element_type=jnp.float32) + b3
    l0 = logits[..., 0:1]
    d = logits[..., 1:2] - l0
    lse = l0 + jnp.maximum(d, 0.0) + jnp.log(1.0 + jnp.exp(-jnp.abs(d)))
    return logits - lse


def reference_forward_f32(x, policy, params):
    """Pure f32 reference of the module semantics (loose sanity check)."""
    (wm, bm, w1l, w1g, b1, w2, b2, w3, b3) = params
    B, N, C = x.shape

    def mlp(h, i):
        h1 = jnp.maximum(h @ wm[i] + bm[i], 0.0)
        return h1 @ wm[i + 1] + bm[i + 1]

    local_x = x
    glob_x = x
    for i in range(3):
        local_x = mlp(local_x, 2 * i)
        glob_x = mlp(glob_x, 6 + 2 * i)

    pooled = (jnp.sum(glob_x * policy, axis=1, keepdims=True)
              / jnp.sum(policy, axis=1, keepdims=True))                 # (B, 1, C)
    cat = jnp.concatenate([local_x, jnp.broadcast_to(pooled, (B, N, C))], axis=-1)
    w1 = jnp.concatenate([w1l, w1g], axis=0)                            # (2C, C//2)
    h = jnp.maximum(cat @ w1 + b1, 0.0)
    h = jnp.maximum(h @ w2 + b2, 0.0)
    logits = h @ w3 + b3
    return jax.nn.log_softmax(logits, axis=-1)


if __name__ == "__main__":
    key = jax.random.PRNGKey(0)
    kx, kp, kpol = jax.random.split(key, 3)

    # Small example shapes (embed_dim kept a multiple of 128 for lane density).
    B, N, C = 2, 16, 128
    x = jax.random.normal(kx, (B, N, C), dtype=jnp.float32)
    policy = (jax.random.uniform(kpol, (B, N, 1)) > 0.3).astype(jnp.float32)
    policy = policy.at[:, 0, :].set(1.0)  # guard against an all-zero policy row

    params = init_params(kp, C)

    out = predictor_lg_forward(x, policy, params)
    out = jax.block_until_ready(out)

    ref_bf16 = reference_forward_bf16(x, policy, params)
    ref_f32 = reference_forward_f32(x, policy, params)

    assert out.shape == (B, N, 2)
    assert bool(jnp.all(jnp.isfinite(out)))
    assert jnp.allclose(out, ref_bf16, atol=5e-3, rtol=5e-3), \
        "mismatch vs bf16-emulating reference"
    assert jnp.allclose(out, ref_f32, atol=1e-1, rtol=1e-1), \
        "mismatch vs f32 reference (semantics)"

    print("KERNEL_OK")
</pallas_src>

<mosaic_0001>
module attributes {stable_mosaic.version = 11 : i64} {
  func.func @predictor_lg_kernel(%arg0: i32, %arg1: memref<2x16x128xbf16, #tpu.memory_space<vmem>>, %arg2: memref<2x1x16xf32, #tpu.memory_space<vmem>>, %arg3: memref<12x128x128xbf16, #tpu.memory_space<vmem>>, %arg4: memref<12x1x128xf32, #tpu.memory_space<vmem>>, %arg5: memref<128x64xbf16, #tpu.memory_space<vmem>>, %arg6: memref<128x64xbf16, #tpu.memory_space<vmem>>, %arg7: memref<1x64xf32, #tpu.memory_space<vmem>>, %arg8: memref<64x32xbf16, #tpu.memory_space<vmem>>, %arg9: memref<1x32xf32, #tpu.memory_space<vmem>>, %arg10: memref<32x2xbf16, #tpu.memory_space<vmem>>, %arg11: memref<1x2xf32, #tpu.memory_space<vmem>>, %arg12: memref<2x16x2xf32, #tpu.memory_space<vmem>>) attributes {dimension_semantics = [#tpu.dimension_semantics<parallel>], iteration_bounds = array<i64: 1>, scalar_prefetch = 0 : i64, scratch_operands = 0 : i64, tpu.core_type = #tpu.core_type<tc>, window_params = [{transform_indices = @transform_0, window_bounds = array<i64: 2, 16, 128>}, {transform_indices = @transform_1, window_bounds = array<i64: 2, 1, 16>}, {pipeline_mode = #tpu.pipeline_mode<synchronous>, transform_indices = @transform_2, window_bounds = array<i64: 12, 128, 128>}, {pipeline_mode = #tpu.pipeline_mode<synchronous>, transform_indices = @transform_3, window_bounds = array<i64: 12, 1, 128>}, {pipeline_mode = #tpu.pipeline_mode<synchronous>, transform_indices = @transform_4, window_bounds = array<i64: 128, 64>}, {pipeline_mode = #tpu.pipeline_mode<synchronous>, transform_indices = @transform_5, window_bounds = array<i64: 128, 64>}, {pipeline_mode = #tpu.pipeline_mode<synchronous>, transform_indices = @transform_6, window_bounds = array<i64: 1, 64>}, {pipeline_mode = #tpu.pipeline_mode<synchronous>, transform_indices = @transform_7, window_bounds = array<i64: 64, 32>}, {pipeline_mode = #tpu.pipeline_mode<synchronous>, transform_indices = @transform_8, window_bounds = array<i64: 1, 32>}, {pipeline_mode = #tpu.pipeline_mode<synchronous>, transform_indices = @transform_9, window_bounds = array<i64: 32, 2>}, {pipeline_mode = #tpu.pipeline_mode<synchronous>, transform_indices = @transform_10, window_bounds = array<i64: 1, 2>}, {transform_indices = @transform_11, window_bounds = array<i64: 2, 16, 2>}]} {
    %c0 = arith.constant 0 : index
    %c0_0 = arith.constant 0 : index
    %c0_1 = arith.constant 0 : index
    %0 = vector.load %arg1[%c0, %c0_0, %c0_1] : memref<2x16x128xbf16, #tpu.memory_space<vmem>>, vector<2x16x128xbf16>
    %1 = vector.shape_cast %0 : vector<2x16x128xbf16> to vector<32x128xbf16>
    %c6 = arith.constant 6 : index
    %c0_2 = arith.constant 0 : index
    %c0_3 = arith.constant 0 : index
    %2 = vector.load %arg3[%c6, %c0_2, %c0_3] : memref<12x128x128xbf16, #tpu.memory_space<vmem>>, vector<1x128x128xbf16>
    %3 = vector.shape_cast %2 : vector<1x128x128xbf16> to vector<128x128xbf16>
    %cst = arith.constant dense<0.000000e+00> : vector<32x128xf32>
    %4 = tpu.matmul %1, %3, %cst {dimension_numbers = #tpu.dot_dimension_numbers<[1], [0], [0], [1], [0, 0, 1, 1], [], []>} : vector<32x128xbf16>, vector<128x128xbf16>, vector<32x128xf32> -> vector<32x128xf32>
    %c6_4 = arith.constant 6 : index
    %c0_5 = arith.constant 0 : index
    %c0_6 = arith.constant 0 : index
    %5 = vector.load %arg4[%c6_4, %c0_5, %c0_6] : memref<12x1x128xf32, #tpu.memory_space<vmem>>, vector<1x1x128xf32>
    %6 = vector.shape_cast %5 : vector<1x1x128xf32> to vector<1x128xf32>
    %7 = vector.broadcast %6 : vector<1x128xf32> to vector<32x128xf32>
    %8 = arith.addf %4, %7 : vector<32x128xf32>
    %cst_7 = arith.constant 0.000000e+00 : f32
    %9 = vector.broadcast %cst_7 : f32 to vector<32x128xf32>
    %10 = arith.maximumf %8, %9 : vector<32x128xf32>
    %11 = arith.truncf %10 : vector<32x128xf32> to vector<32x128xbf16>
    %c7 = arith.constant 7 : index
    %c0_8 = arith.constant 0 : index
    %c0_9 = arith.constant 0 : index
    %12 = vector.load %arg3[%c7, %c0_8, %c0_9] : memref<12x128x128xbf16, #tpu.memory_space<vmem>>, vector<1x128x128xbf16>
    %13 = vector.shape_cast %12 : vector<1x128x128xbf16> to vector<128x128xbf16>
    %cst_10 = arith.constant dense<0.000000e+00> : vector<32x128xf32>
    %14 = tpu.matmul %11, %13, %cst_10 {dimension_numbers = #tpu.dot_dimension_numbers<[1], [0], [0], [1], [0, 0, 1, 1], [], []>} : vector<32x128xbf16>, vector<128x128xbf16>, vector<32x128xf32> -> vector<32x128xf32>
    %c7_11 = arith.constant 7 : index
    %c0_12 = arith.constant 0 : index
    %c0_13 = arith.constant 0 : index
    %15 = vector.load %arg4[%c7_11, %c0_12, %c0_13] : memref<12x1x128xf32, #tpu.memory_space<vmem>>, vector<1x1x128xf32>
    %16 = vector.shape_cast %15 : vector<1x1x128xf32> to vector<1x128xf32>
    %17 = vector.broadcast %16 : vector<1x128xf32> to vector<32x128xf32>
    %18 = arith.addf %14, %17 : vector<32x128xf32>
    %19 = arith.truncf %18 : vector<32x128xf32> to vector<32x128xbf16>
    %c8 = arith.constant 8 : index
    %c0_14 = arith.constant 0 : index
    %c0_15 = arith.constant 0 : index
    %20 = vector.load %arg3[%c8, %c0_14, %c0_15] : memref<12x128x128xbf16, #tpu.memory_space<vmem>>, vector<1x128x128xbf16>
    %21 = vector.shape_cast %20 : vector<1x128x128xbf16> to vector<128x128xbf16>
    %cst_16 = arith.constant dense<0.000000e+00> : vector<32x128xf32>
    %22 = tpu.matmul %19, %21, %cst_16 {dimension_numbers = #tpu.dot_dimension_numbers<[1], [0], [0], [1], [0, 0, 1, 1], [], []>} : vector<32x128xbf16>, vector<128x128xbf16>, vector<32x128xf32> -> vector<32x128xf32>
    %c8_17 = arith.constant 8 : index
    %c0_18 = arith.constant 0 : index
    %c0_19 = arith.constant 0 : index
    %23 = vector.load %arg4[%c8_17, %c0_18, %c0_19] : memref<12x1x128xf32, #tpu.memory_space<vmem>>, vector<1x1x128xf32>
    %24 = vector.shape_cast %23 : vector<1x1x128xf32> to vector<1x128xf32>
    %25 = vector.broadcast %24 : vector<1x128xf32> to vector<32x128xf32>
    %26 = arith.addf %22, %25 : vector<32x128xf32>
    %cst_20 = arith.constant 0.000000e+00 : f32
    %27 = vector.broadcast %cst_20 : f32 to vector<32x128xf32>
    %28 = arith.maximumf %26, %27 : vector<32x128xf32>
    %29 = arith.truncf %28 : vector<32x128xf32> to vector<32x128xbf16>
    %c9 = arith.constant 9 : index
    %c0_21 = arith.constant 0 : index
    %c0_22 = arith.constant 0 : index
    %30 = vector.load %arg3[%c9, %c0_21, %c0_22] : memref<12x128x128xbf16, #tpu.memory_space<vmem>>, vector<1x128x128xbf16>
    %31 = vector.shape_cast %30 : vector<1x128x128xbf16> to vector<128x128xbf16>
    %cst_23 = arith.constant dense<0.000000e+00> : vector<32x128xf32>
    %32 = tpu.matmul %29, %31, %cst_23 {dimension_numbers = #tpu.dot_dimension_numbers<[1], [0], [0], [1], [0, 0, 1, 1], [], []>} : vector<32x128xbf16>, vector<128x128xbf16>, vector<32x128xf32> -> vector<32x128xf32>
    %c9_24 = arith.constant 9 : index
    %c0_25 = arith.constant 0 : index
    %c0_26 = arith.constant 0 : index
    %33 = vector.load %arg4[%c9_24, %c0_25, %c0_26] : memref<12x1x128xf32, #tpu.memory_space<vmem>>, vector<1x1x128xf32>
    %34 = vector.shape_cast %33 : vector<1x1x128xf32> to vector<1x128xf32>
    %35 = vector.broadcast %34 : vector<1x128xf32> to vector<32x128xf32>
    %36 = arith.addf %32, %35 : vector<32x128xf32>
    %37 = arith.truncf %36 : vector<32x128xf32> to vector<32x128xbf16>
    %c10 = arith.constant 10 : index
    %c0_27 = arith.constant 0 : index
    %c0_28 = arith.constant 0 : index
    %38 = vector.load %arg3[%c10, %c0_27, %c0_28] : memref<12x128x128xbf16, #tpu.memory_space<vmem>>, vector<1x128x128xbf16>
    %39 = vector.shape_cast %38 : vector<1x128x128xbf16> to vector<128x128xbf16>
    %cst_29 = arith.constant dense<0.000000e+00> : vector<32x128xf32>
    %40 = tpu.matmul %37, %39, %cst_29 {dimension_numbers = #tpu.dot_dimension_numbers<[1], [0], [0], [1], [0, 0, 1, 1], [], []>} : vector<32x128xbf16>, vector<128x128xbf16>, vector<32x128xf32> -> vector<32x128xf32>
    %c10_30 = arith.constant 10 : index
    %c0_31 = arith.constant 0 : index
    %c0_32 = arith.constant 0 : index
    %41 = vector.load %arg4[%c10_30, %c0_31, %c0_32] : memref<12x1x128xf32, #tpu.memory_space<vmem>>, vector<1x1x128xf32>
    %42 = vector.shape_cast %41 : vector<1x1x128xf32> to vector<1x128xf32>
    %43 = vector.broadcast %42 : vector<1x128xf32> to vector<32x128xf32>
    %44 = arith.addf %40, %43 : vector<32x128xf32>
    %cst_33 = arith.constant 0.000000e+00 : f32
    %45 = vector.broadcast %cst_33 : f32 to vector<32x128xf32>
    %46 = arith.maximumf %44, %45 : vector<32x128xf32>
    %47 = arith.truncf %46 : vector<32x128xf32> to vector<32x128xbf16>
    %c11 = arith.constant 11 : index
    %c0_34 = arith.constant 0 : index
    %c0_35 = arith.constant 0 : index
    %48 = vector.load %arg3[%c11, %c0_34, %c0_35] : memref<12x128x128xbf16, #tpu.memory_space<vmem>>, vector<1x128x128xbf16>
    %49 = vector.shape_cast %48 : vector<1x128x128xbf16> to vector<128x128xbf16>
    %cst_36 = arith.constant dense<0.000000e+00> : vector<32x128xf32>
    %50 = tpu.matmul %47, %49, %cst_36 {dimension_numbers = #tpu.dot_dimension_numbers<[1], [0], [0], [1], [0, 0, 1, 1], [], []>} : vector<32x128xbf16>, vector<128x128xbf16>, vector<32x128xf32> -> vector<32x128xf32>
    %c11_37 = arith.constant 11 : index
    %c0_38 = arith.constant 0 : index
    %c0_39 = arith.constant 0 : index
    %51 = vector.load %arg4[%c11_37, %c0_38, %c0_39] : memref<12x1x128xf32, #tpu.memory_space<vmem>>, vector<1x1x128xf32>
    %52 = vector.shape_cast %51 : vector<1x1x128xf32> to vector<1x128xf32>
    %53 = vector.broadcast %52 : vector<1x128xf32> to vector<32x128xf32>
    %54 = arith.addf %50, %53 : vector<32x128xf32>
    %55 = arith.truncf %54 : vector<32x128xf32> to vector<32x128xbf16>
    %56 = vector.shape_cast %55 : vector<32x128xbf16> to vector<2x16x128xbf16>
    %c0_40 = arith.constant 0 : index
    %c0_41 = arith.constant 0 : index
    %c0_42 = arith.constant 0 : index
    %57 = vector.load %arg2[%c0_40, %c0_41, %c0_42] : memref<2x1x16xf32, #tpu.memory_space<vmem>>, vector<2x1x16xf32>
    %58 = vector.extract_strided_slice %57 {offsets = [0, 0, 0], sizes = [1, 1, 16], strides = [1, 1, 1]} : vector<2x1x16xf32> to vector<1x1x16xf32>
    %59 = vector.shape_cast %58 : vector<1x1x16xf32> to vector<1x16xf32>
    %cst_43 = arith.constant dense<0.000000e+00> : vector<1xf32>
    %60 = vector.multi_reduction <add>, %59, %cst_43 [1] : vector<1x16xf32> to vector<1xf32>
    %61 = vector.shape_cast %60 : vector<1xf32> to vector<1x1xf32>
    %62 = arith.truncf %59 : vector<1x16xf32> to vector<1x16xbf16>
    %63 = vector.extract_strided_slice %56 {offsets = [0, 0, 0], sizes = [1, 16, 128], strides = [1, 1, 1]} : vector<2x16x128xbf16> to vector<1x16x128xbf16>
    %64 = vector.shape_cast %63 : vector<1x16x128xbf16> to vector<16x128xbf16>
    %cst_44 = arith.constant dense<0.000000e+00> : vector<1x128xf32>
    %65 = tpu.matmul %62, %64, %cst_44 {dimension_numbers = #tpu.dot_dimension_numbers<[1], [0], [0], [1], [0, 0, 1, 1], [], []>} : vector<1x16xbf16>, vector<16x128xbf16>, vector<1x128xf32> -> vector<1x128xf32>
    %66 = vector.broadcast %61 : vector<1x1xf32> to vector<1x128xf32>
    %67 = arith.divf %65, %66 : vector<1x128xf32>
    %68 = vector.extract_strided_slice %57 {offsets = [1, 0, 0], sizes = [1, 1, 16], strides = [1, 1, 1]} : vector<2x1x16xf32> to vector<1x1x16xf32>
    %69 = vector.shape_cast %68 : vector<1x1x16xf32> to vector<1x16xf32>
    %cst_45 = arith.constant dense<0.000000e+00> : vector<1xf32>
    %70 = vector.multi_reduction <add>, %69, %cst_45 [1] : vector<1x16xf32> to vector<1xf32>
    %71 = vector.shape_cast %70 : vector<1xf32> to vector<1x1xf32>
    %72 = arith.truncf %69 : vector<1x16xf32> to vector<1x16xbf16>
    %73 = vector.extract_strided_slice %56 {offsets = [1, 0, 0], sizes = [1, 16, 128], strides = [1, 1, 1]} : vector<2x16x128xbf16> to vector<1x16x128xbf16>
    %74 = vector.shape_cast %73 : vector<1x16x128xbf16> to vector<16x128xbf16>
    %cst_46 = arith.constant dense<0.000000e+00> : vector<1x128xf32>
    %75 = tpu.matmul %72, %74, %cst_46 {dimension_numbers = #tpu.dot_dimension_numbers<[1], [0], [0], [1], [0, 0, 1, 1], [], []>} : vector<1x16xbf16>, vector<16x128xbf16>, vector<1x128xf32> -> vector<1x128xf32>
    %76 = vector.broadcast %71 : vector<1x1xf32> to vector<1x128xf32>
    %77 = arith.divf %75, %76 : vector<1x128xf32>
    %78 = tpu.concatenate %67, %77 in 0 : vector<1x128xf32>, vector<1x128xf32> -> vector<2x128xf32>
    %79 = arith.truncf %78 : vector<2x128xf32> to vector<2x128xbf16>
    %c0_47 = arith.constant 0 : index
    %c0_48 = arith.constant 0 : index
    %80 = vector.load %arg6[%c0_47, %c0_48] : memref<128x64xbf16, #tpu.memory_space<vmem>>, vector<128x64xbf16>
    %cst_49 = arith.constant dense<0.000000e+00> : vector<2x64xf32>
    %81 = tpu.matmul %79, %80, %cst_49 {dimension_numbers = #tpu.dot_dimension_numbers<[1], [0], [0], [1], [0, 0, 1, 1], [], []>} : vector<2x128xbf16>, vector<128x64xbf16>, vector<2x64xf32> -> vector<2x64xf32>
    %c0_50 = arith.constant 0 : index
    %c0_51 = arith.constant 0 : index
    %c0_52 = arith.constant 0 : index
    %82 = vector.load %arg3[%c0_50, %c0_51, %c0_52] : memref<12x128x128xbf16, #tpu.memory_space<vmem>>, vector<1x128x128xbf16>
    %83 = vector.shape_cast %82 : vector<1x128x128xbf16> to vector<128x128xbf16>
    %cst_53 = arith.constant dense<0.000000e+00> : vector<32x128xf32>
    %84 = tpu.matmul %1, %83, %cst_53 {dimension_numbers = #tpu.dot_dimension_numbers<[1], [0], [0], [1], [0, 0, 1, 1], [], []>} : vector<32x128xbf16>, vector<128x128xbf16>, vector<32x128xf32> -> vector<32x128xf32>
    %c0_54 = arith.constant 0 : index
    %c0_55 = arith.constant 0 : index
    %c0_56 = arith.constant 0 : index
    %85 = vector.load %arg4[%c0_54, %c0_55, %c0_56] : memref<12x1x128xf32, #tpu.memory_space<vmem>>, vector<1x1x128xf32>
    %86 = vector.shape_cast %85 : vector<1x1x128xf32> to vector<1x128xf32>
    %87 = vector.broadcast %86 : vector<1x128xf32> to vector<32x128xf32>
    %88 = arith.addf %84, %87 : vector<32x128xf32>
    %cst_57 = arith.constant 0.000000e+00 : f32
    %89 = vector.broadcast %cst_57 : f32 to vector<32x128xf32>
    %90 = arith.maximumf %88, %89 : vector<32x128xf32>
    %91 = arith.truncf %90 : vector<32x128xf32> to vector<32x128xbf16>
    %c1 = arith.constant 1 : index
    %c0_58 = arith.constant 0 : index
    %c0_59 = arith.constant 0 : index
    %92 = vector.load %arg3[%c1, %c0_58, %c0_59] : memref<12x128x128xbf16, #tpu.memory_space<vmem>>, vector<1x128x128xbf16>
    %93 = vector.shape_cast %92 : vector<1x128x128xbf16> to vector<128x128xbf16>
    %cst_60 = arith.constant dense<0.000000e+00> : vector<32x128xf32>
    %94 = tpu.matmul %91, %93, %cst_60 {dimension_numbers = #tpu.dot_dimension_numbers<[1], [0], [0], [1], [0, 0, 1, 1], [], []>} : vector<32x128xbf16>, vector<128x128xbf16>, vector<32x128xf32> -> vector<32x128xf32>
    %c1_61 = arith.constant 1 : index
    %c0_62 = arith.constant 0 : index
    %c0_63 = arith.constant 0 : index
    %95 = vector.load %arg4[%c1_61, %c0_62, %c0_63] : memref<12x1x128xf32, #tpu.memory_space<vmem>>, vector<1x1x128xf32>
    %96 = vector.shape_cast %95 : vector<1x1x128xf32> to vector<1x128xf32>
    %97 = vector.broadcast %96 : vector<1x128xf32> to vector<32x128xf32>
    %98 = arith.addf %94, %97 : vector<32x128xf32>
    %99 = arith.truncf %98 : vector<32x128xf32> to vector<32x128xbf16>
    %c2 = arith.constant 2 : index
    %c0_64 = arith.constant 0 : index
    %c0_65 = arith.constant 0 : index
    %100 = vector.load %arg3[%c2, %c0_64, %c0_65] : memref<12x128x128xbf16, #tpu.memory_space<vmem>>, vector<1x128x128xbf16>
    %101 = vector.shape_cast %100 : vector<1x128x128xbf16> to vector<128x128xbf16>
    %cst_66 = arith.constant dense<0.000000e+00> : vector<32x128xf32>
    %102 = tpu.matmul %99, %101, %cst_66 {dimension_numbers = #tpu.dot_dimension_numbers<[1], [0], [0], [1], [0, 0, 1, 1], [], []>} : vector<32x128xbf16>, vector<128x128xbf16>, vector<32x128xf32> -> vector<32x128xf32>
    %c2_67 = arith.constant 2 : index
    %c0_68 = arith.constant 0 : index
    %c0_69 = arith.constant 0 : index
    %103 = vector.load %arg4[%c2_67, %c0_68, %c0_69] : memref<12x1x128xf32, #tpu.memory_space<vmem>>, vector<1x1x128xf32>
    %104 = vector.shape_cast %103 : vector<1x1x128xf32> to vector<1x128xf32>
    %105 = vector.broadcast %104 : vector<1x128xf32> to vector<32x128xf32>
    %106 = arith.addf %102, %105 : vector<32x128xf32>
    %cst_70 = arith.constant 0.000000e+00 : f32
    %107 = vector.broadcast %cst_70 : f32 to vector<32x128xf32>
    %108 = arith.maximumf %106, %107 : vector<32x128xf32>
    %109 = arith.truncf %108 : vector<32x128xf32> to vector<32x128xbf16>
    %c3 = arith.constant 3 : index
    %c0_71 = arith.constant 0 : index
    %c0_72 = arith.constant 0 : index
    %110 = vector.load %arg3[%c3, %c0_71, %c0_72] : memref<12x128x128xbf16, #tpu.memory_space<vmem>>, vector<1x128x128xbf16>
    %111 = vector.shape_cast %110 : vector<1x128x128xbf16> to vector<128x128xbf16>
    %cst_73 = arith.constant dense<0.000000e+00> : vector<32x128xf32>
    %112 = tpu.matmul %109, %111, %cst_73 {dimension_numbers = #tpu.dot_dimension_numbers<[1], [0], [0], [1], [0, 0, 1, 1], [], []>} : vector<32x128xbf16>, vector<128x128xbf16>, vector<32x128xf32> -> vector<32x128xf32>
    %c3_74 = arith.constant 3 : index
    %c0_75 = arith.constant 0 : index
    %c0_76 = arith.constant 0 : index
    %113 = vector.load %arg4[%c3_74, %c0_75, %c0_76] : memref<12x1x128xf32, #tpu.memory_space<vmem>>, vector<1x1x128xf32>
    %114 = vector.shape_cast %113 : vector<1x1x128xf32> to vector<1x128xf32>
    %115 = vector.broadcast %114 : vector<1x128xf32> to vector<32x128xf32>
    %116 = arith.addf %112, %115 : vector<32x128xf32>
    %117 = arith.truncf %116 : vector<32x128xf32> to vector<32x128xbf16>
    %c4 = arith.constant 4 : index
    %c0_77 = arith.constant 0 : index
    %c0_78 = arith.constant 0 : index
    %118 = vector.load %arg3[%c4, %c0_77, %c0_78] : memref<12x128x128xbf16, #tpu.memory_space<vmem>>, vector<1x128x128xbf16>
    %119 = vector.shape_cast %118 : vector<1x128x128xbf16> to vector<128x128xbf16>
    %cst_79 = arith.constant dense<0.000000e+00> : vector<32x128xf32>
    %120 = tpu.matmul %117, %119, %cst_79 {dimension_numbers = #tpu.dot_dimension_numbers<[1], [0], [0], [1], [0, 0, 1, 1], [], []>} : vector<32x128xbf16>, vector<128x128xbf16>, vector<32x128xf32> -> vector<32x128xf32>
    %c4_80 = arith.constant 4 : index
    %c0_81 = arith.constant 0 : index
    %c0_82 = arith.constant 0 : index
    %121 = vector.load %arg4[%c4_80, %c0_81, %c0_82] : memref<12x1x128xf32, #tpu.memory_space<vmem>>, vector<1x1x128xf32>
    %122 = vector.shape_cast %121 : vector<1x1x128xf32> to vector<1x128xf32>
    %123 = vector.broadcast %122 : vector<1x128xf32> to vector<32x128xf32>
    %124 = arith.addf %120, %123 : vector<32x128xf32>
    %cst_83 = arith.constant 0.000000e+00 : f32
    %125 = vector.broadcast %cst_83 : f32 to vector<32x128xf32>
    %126 = arith.maximumf %124, %125 : vector<32x128xf32>
    %127 = arith.truncf %126 : vector<32x128xf32> to vector<32x128xbf16>
    %c5 = arith.constant 5 : index
    %c0_84 = arith.constant 0 : index
    %c0_85 = arith.constant 0 : index
    %128 = vector.load %arg3[%c5, %c0_84, %c0_85] : memref<12x128x128xbf16, #tpu.memory_space<vmem>>, vector<1x128x128xbf16>
    %129 = vector.shape_cast %128 : vector<1x128x128xbf16> to vector<128x128xbf16>
    %cst_86 = arith.constant dense<0.000000e+00> : vector<32x128xf32>
    %130 = tpu.matmul %127, %129, %cst_86 {dimension_numbers = #tpu.dot_dimension_numbers<[1], [0], [0], [1], [0, 0, 1, 1], [], []>} : vector<32x128xbf16>, vector<128x128xbf16>, vector<32x128xf32> -> vector<32x128xf32>
    %c5_87 = arith.constant 5 : index
    %c0_88 = arith.constant 0 : index
    %c0_89 = arith.constant 0 : index
    %131 = vector.load %arg4[%c5_87, %c0_88, %c0_89] : memref<12x1x128xf32, #tpu.memory_space<vmem>>, vector<1x1x128xf32>
    %132 = vector.shape_cast %131 : vector<1x1x128xf32> to vector<1x128xf32>
    %133 = vector.broadcast %132 : vector<1x128xf32> to vector<32x128xf32>
    %134 = arith.addf %130, %133 : vector<32x128xf32>
    %135 = arith.truncf %134 : vector<32x128xf32> to vector<32x128xbf16>
    %c0_90 = arith.constant 0 : index
    %c0_91 = arith.constant 0 : index
    %136 = vector.load %arg5[%c0_90, %c0_91] : memref<128x64xbf16, #tpu.memory_space<vmem>>, vector<128x64xbf16>
    %cst_92 = arith.constant dense<0.000000e+00> : vector<32x64xf32>
    %137 = tpu.matmul %135, %136, %cst_92 {dimension_numbers = #tpu.dot_dimension_numbers<[1], [0], [0], [1], [0, 0, 1, 1], [], []>} : vector<32x128xbf16>, vector<128x64xbf16>, vector<32x64xf32> -> vector<32x64xf32>
    %138 = vector.shape_cast %137 : vector<32x64xf32> to vector<2x16x64xf32>
    %139 = vector.shape_cast %81 : vector<2x64xf32> to vector<2x1x64xf32>
    %140 = vector.broadcast %139 : vector<2x1x64xf32> to vector<2x16x64xf32>
    %141 = arith.addf %138, %140 : vector<2x16x64xf32>
    %c0_93 = arith.constant 0 : index
    %c0_94 = arith.constant 0 : index
    %142 = vector.load %arg7[%c0_93, %c0_94] : memref<1x64xf32, #tpu.memory_space<vmem>>, vector<1x64xf32>
    %143 = vector.shape_cast %142 : vector<1x64xf32> to vector<1x1x64xf32>
    %144 = vector.broadcast %143 : vector<1x1x64xf32> to vector<2x16x64xf32>
    %145 = arith.addf %141, %144 : vector<2x16x64xf32>
    %cst_95 = arith.constant 0.000000e+00 : f32
    %146 = vector.broadcast %cst_95 : f32 to vector<2x16x64xf32>
    %147 = arith.maximumf %145, %146 : vector<2x16x64xf32>
    %148 = vector.shape_cast %147 : vector<2x16x64xf32> to vector<32x64xf32>
    %149 = arith.truncf %148 : vector<32x64xf32> to vector<32x64xbf16>
    %c0_96 = arith.constant 0 : index
    %c0_97 = arith.constant 0 : index
    %150 = vector.load %arg8[%c0_96, %c0_97] : memref<64x32xbf16, #tpu.memory_space<vmem>>, vector<64x32xbf16>
    %cst_98 = arith.constant dense<0.000000e+00> : vector<32x32xf32>
    %151 = tpu.matmul %149, %150, %cst_98 {dimension_numbers = #tpu.dot_dimension_numbers<[1], [0], [0], [1], [0, 0, 1, 1], [], []>} : vector<32x64xbf16>, vector<64x32xbf16>, vector<32x32xf32> -> vector<32x32xf32>
    %c0_99 = arith.constant 0 : index
    %c0_100 = arith.constant 0 : index
    %152 = vector.load %arg9[%c0_99, %c0_100] : memref<1x32xf32, #tpu.memory_space<vmem>>, vector<1x32xf32>
    %153 = vector.broadcast %152 : vector<1x32xf32> to vector<32x32xf32>
    %154 = arith.addf %151, %153 : vector<32x32xf32>
    %cst_101 = arith.constant 0.000000e+00 : f32
    %155 = vector.broadcast %cst_101 : f32 to vector<32x32xf32>
    %156 = arith.maximumf %154, %155 : vector<32x32xf32>
    %157 = arith.truncf %156 : vector<32x32xf32> to vector<32x32xbf16>
    %c0_102 = arith.constant 0 : index
    %c0_103 = arith.constant 0 : index
    %158 = vector.load %arg10[%c0_102, %c0_103] : memref<32x2xbf16, #tpu.memory_space<vmem>>, vector<32x2xbf16>
    %cst_104 = arith.constant dense<0.000000e+00> : vector<32x2xf32>
    %159 = tpu.matmul %157, %158, %cst_104 {dimension_numbers = #tpu.dot_dimension_numbers<[1], [0], [0], [1], [0, 0, 1, 1], [], []>} : vector<32x32xbf16>, vector<32x2xbf16>, vector<32x2xf32> -> vector<32x2xf32>
    %c0_105 = arith.constant 0 : index
    %c0_106 = arith.constant 0 : index
    %160 = vector.load %arg11[%c0_105, %c0_106] : memref<1x2xf32, #tpu.memory_space<vmem>>, vector<1x2xf32>
    %161 = vector.broadcast %160 : vector<1x2xf32> to vector<32x2xf32>
    %162 = arith.addf %159, %161 : vector<32x2xf32>
    %163 = vector.extract_strided_slice %162 {offsets = [0, 0], sizes = [32, 1], strides = [1, 1]} : vector<32x2xf32> to vector<32x1xf32>
    %164 = vector.extract_strided_slice %162 {offsets = [0, 1], sizes = [32, 1], strides = [1, 1]} : vector<32x2xf32> to vector<32x1xf32>
    %165 = arith.subf %164, %163 : vector<32x1xf32>
    %cst_107 = arith.constant 0.000000e+00 : f32
    %166 = vector.broadcast %cst_107 : f32 to vector<32x1xf32>
    %167 = arith.maximumf %165, %166 : vector<32x1xf32>
    %168 = arith.addf %163, %167 : vector<32x1xf32>
    %169 = math.absf %165 : vector<32x1xf32>
    %cst_108 = arith.constant 0.000000e+00 : f32
    %170 = vector.broadcast %cst_108 : f32 to vector<32x1xf32>
    %171 = arith.subf %170, %169 : vector<32x1xf32>
    %172 = math.exp %171 : vector<32x1xf32>
    %cst_109 = arith.constant 1.000000e+00 : f32
    %173 = vector.broadcast %cst_109 : f32 to vector<32x1xf32>
    %174 = arith.addf %173, %172 : vector<32x1xf32>
    %175 = math.log %174 : vector<32x1xf32>
    %176 = arith.addf %168, %175 : vector<32x1xf32>
    %177 = vector.broadcast %176 : vector<32x1xf32> to vector<32x2xf32>
    %178 = arith.subf %162, %177 : vector<32x2xf32>
    %179 = vector.shape_cast %178 : vector<32x2xf32> to vector<2x16x2xf32>
    %c0_110 = arith.constant 0 : index
    %c0_111 = arith.constant 0 : index
    %c0_112 = arith.constant 0 : index
    %180 = vector.load %arg12[%c0_110, %c0_111, %c0_112] : memref<2x16x2xf32, #tpu.memory_space<vmem>>, vector<2x16x2xf32>
    tpu.vector_store %arg12[%c0_110, %c0_111, %c0_112], %179 {strides = array<i32>} : memref<2x16x2xf32, #tpu.memory_space<vmem>>, vector<2x16x2xf32>,
    return
  }
  func.func @transform_0(%arg0: i32) -> (i32, i32, i32) {
    %c0_i32 = arith.constant 0 : i32
    %c0_i32_0 = arith.constant 0 : i32
    %c0_i32_1 = arith.constant 0 : i32
    return %arg0, %c0_i32, %c0_i32_0 : i32, i32, i32
  }
  func.func @transform_1(%arg0: i32) -> (i32, i32, i32) {
    %c0_i32 = arith.constant 0 : i32
    %c0_i32_0 = arith.constant 0 : i32
    %c0_i32_1 = arith.constant 0 : i32
    return %arg0, %c0_i32, %c0_i32_0 : i32, i32, i32
  }
  func.func @transform_2(%arg0: i32) -> (i32, i32, i32) {
    %c0_i32 = arith.constant 0 : i32
    %c0_i32_0 = arith.constant 0 : i32
    %c0_i32_1 = arith.constant 0 : i32
    %c0_i32_2 = arith.constant 0 : i32
    return %c0_i32, %c0_i32_0, %c0_i32_1 : i32, i32, i32
  }
  func.func @transform_3(%arg0: i32) -> (i32, i32, i32) {
    %c0_i32 = arith.constant 0 : i32
    %c0_i32_0 = arith.constant 0 : i32
    %c0_i32_1 = arith.constant 0 : i32
    %c0_i32_2 = arith.constant 0 : i32
    return %c0_i32, %c0_i32_0, %c0_i32_1 : i32, i32, i32
  }
  func.func @transform_4(%arg0: i32) -> (i32, i32) {
    %c0_i32 = arith.constant 0 : i32
    %c0_i32_0 = arith.constant 0 : i32
    %c0_i32_1 = arith.constant 0 : i32
    return %c0_i32, %c0_i32_0 : i32, i32
  }
  func.func @transform_5(%arg0: i32) -> (i32, i32) {
    %c0_i32 = arith.constant 0 : i32
    %c0_i32_0 = arith.constant 0 : i32
    %c0_i32_1 = arith.constant 0 : i32
    return %c0_i32, %c0_i32_0 : i32, i32
  }
  func.func @transform_6(%arg0: i32) -> (i32, i32) {
    %c0_i32 = arith.constant 0 : i32
    %c0_i32_0 = arith.constant 0 : i32
    %c0_i32_1 = arith.constant 0 : i32
    return %c0_i32, %c0_i32_0 : i32, i32
  }
  func.func @transform_7(%arg0: i32) -> (i32, i32) {
    %c0_i32 = arith.constant 0 : i32
    %c0_i32_0 = arith.constant 0 : i32
    %c0_i32_1 = arith.constant 0 : i32
    return %c0_i32, %c0_i32_0 : i32, i32
  }
  func.func @transform_8(%arg0: i32) -> (i32, i32) {
    %c0_i32 = arith.constant 0 : i32
    %c0_i32_0 = arith.constant 0 : i32
    %c0_i32_1 = arith.constant 0 : i32
    return %c0_i32, %c0_i32_0 : i32, i32
  }
  func.func @transform_9(%arg0: i32) -> (i32, i32) {
    %c0_i32 = arith.constant 0 : i32
    %c0_i32_0 = arith.constant 0 : i32
    %c0_i32_1 = arith.constant 0 : i32
    return %c0_i32, %c0_i32_0 : i32, i32
  }
  func.func @transform_10(%arg0: i32) -> (i32, i32) {
    %c0_i32 = arith.constant 0 : i32
    %c0_i32_0 = arith.constant 0 : i32
    %c0_i32_1 = arith.constant 0 : i32
    return %c0_i32, %c0_i32_0 : i32, i32
  }
  func.func @transform_11(%arg0: i32) -> (i32, i32, i32) {
    %c0_i32 = arith.constant 0 : i32
    %c0_i32_0 = arith.constant 0 : i32
    %c0_i32_1 = arith.constant 0 : i32
    return %arg0, %c0_i32, %c0_i32_0 : i32, i32, i32
  }
}

module attributes {stable_mosaic.version = 11 : i64} {
  func.func @predictor_lg_kernel(%arg0: i32, %arg1: memref<2x16x128xbf16, #tpu.memory_space<vmem>>, %arg2: memref<2x1x16xf32, #tpu.memory_space<vmem>>, %arg3: memref<12x128x128xbf16, #tpu.memory_space<vmem>>, %arg4: memref<12x1x128xf32, #tpu.memory_space<vmem>>, %arg5: memref<128x64xbf16, #tpu.memory_space<vmem>>, %arg6: memref<128x64xbf16, #tpu.memory_space<vmem>>, %arg7: memref<1x64xf32, #tpu.memory_space<vmem>>, %arg8: memref<64x32xbf16, #tpu.memory_space<vmem>>, %arg9: memref<1x32xf32, #tpu.memory_space<vmem>>, %arg10: memref<32x2xbf16, #tpu.memory_space<vmem>>, %arg11: memref<1x2xf32, #tpu.memory_space<vmem>>, %arg12: memref<2x16x2xf32, #tpu.memory_space<vmem>>) attributes {dimension_semantics = [#tpu.dimension_semantics<parallel>], iteration_bounds = array<i64: 1>, scalar_prefetch = 0 : i64, scratch_operands = 0 : i64, tpu.core_type = #tpu.core_type<tc>, window_params = [{transform_indices = @transform_0, window_bounds = array<i64: 2, 16, 128>}, {transform_indices = @transform_1, window_bounds = array<i64: 2, 1, 16>}, {pipeline_mode = #tpu.pipeline_mode<synchronous>, transform_indices = @transform_2, window_bounds = array<i64: 12, 128, 128>}, {pipeline_mode = #tpu.pipeline_mode<synchronous>, transform_indices = @transform_3, window_bounds = array<i64: 12, 1, 128>}, {pipeline_mode = #tpu.pipeline_mode<synchronous>, transform_indices = @transform_4, window_bounds = array<i64: 128, 64>}, {pipeline_mode = #tpu.pipeline_mode<synchronous>, transform_indices = @transform_5, window_bounds = array<i64: 128, 64>}, {pipeline_mode = #tpu.pipeline_mode<synchronous>, transform_indices = @transform_6, window_bounds = array<i64: 1, 64>}, {pipeline_mode = #tpu.pipeline_mode<synchronous>, transform_indices = @transform_7, window_bounds = array<i64: 64, 32>}, {pipeline_mode = #tpu.pipeline_mode<synchronous>, transform_indices = @transform_8, window_bounds = array<i64: 1, 32>}, {pipeline_mode = #tpu.pipeline_mode<synchronous>, transform_indices = @transform_9, window_bounds = array<i64: 32, 2>}, {pipeline_mode = #tpu.pipeline_mode<synchronous>, transform_indices = @transform_10, window_bounds = array<i64: 1, 2>}, {transform_indices = @transform_11, window_bounds = array<i64: 2, 16, 2>}]} {
    %c0 = arith.constant 0 : index
    %c0_0 = arith.constant 0 : index
    %c0_1 = arith.constant 0 : index
    %0 = vector.load %arg1[%c0, %c0_0, %c0_1] : memref<2x16x128xbf16, #tpu.memory_space<vmem>>, vector<2x16x128xbf16>
    %1 = vector.shape_cast %0 : vector<2x16x128xbf16> to vector<32x128xbf16>
    %c6 = arith.constant 6 : index
    %c0_2 = arith.constant 0 : index
    %c0_3 = arith.constant 0 : index
    %2 = vector.load %arg3[%c6, %c0_2, %c0_3] : memref<12x128x128xbf16, #tpu.memory_space<vmem>>, vector<1x128x128xbf16>
    %3 = vector.shape_cast %2 : vector<1x128x128xbf16> to vector<128x128xbf16>
    %cst = arith.constant dense<0.000000e+00> : vector<32x128xf32>
    %4 = tpu.matmul %1, %3, %cst {dimension_numbers = #tpu.dot_dimension_numbers<[1], [0], [0], [1], [0, 0, 1, 1], [], []>} : vector<32x128xbf16>, vector<128x128xbf16>, vector<32x128xf32> -> vector<32x128xf32>
    %c6_4 = arith.constant 6 : index
    %c0_5 = arith.constant 0 : index
    %c0_6 = arith.constant 0 : index
    %5 = vector.load %arg4[%c6_4, %c0_5, %c0_6] : memref<12x1x128xf32, #tpu.memory_space<vmem>>, vector<1x1x128xf32>
    %6 = vector.shape_cast %5 : vector<1x1x128xf32> to vector<1x128xf32>
    %7 = vector.broadcast %6 : vector<1x128xf32> to vector<32x128xf32>
    %8 = arith.addf %4, %7 : vector<32x128xf32>
    %cst_7 = arith.constant 0.000000e+00 : f32
    %9 = vector.broadcast %cst_7 : f32 to vector<32x128xf32>
    %10 = arith.maximumf %8, %9 : vector<32x128xf32>
    %11 = arith.truncf %10 : vector<32x128xf32> to vector<32x128xbf16>
    %c7 = arith.constant 7 : index
    %c0_8 = arith.constant 0 : index
    %c0_9 = arith.constant 0 : index
    %12 = vector.load %arg3[%c7, %c0_8, %c0_9] : memref<12x128x128xbf16, #tpu.memory_space<vmem>>, vector<1x128x128xbf16>
    %13 = vector.shape_cast %12 : vector<1x128x128xbf16> to vector<128x128xbf16>
    %cst_10 = arith.constant dense<0.000000e+00> : vector<32x128xf32>
    %14 = tpu.matmul %11, %13, %cst_10 {dimension_numbers = #tpu.dot_dimension_numbers<[1], [0], [0], [1], [0, 0, 1, 1], [], []>} : vector<32x128xbf16>, vector<128x128xbf16>, vector<32x128xf32> -> vector<32x128xf32>
    %c7_11 = arith.constant 7 : index
    %c0_12 = arith.constant 0 : index
    %c0_13 = arith.constant 0 : index
    %15 = vector.load %arg4[%c7_11, %c0_12, %c0_13] : memref<12x1x128xf32, #tpu.memory_space<vmem>>, vector<1x1x128xf32>
    %16 = vector.shape_cast %15 : vector<1x1x128xf32> to vector<1x128xf32>
    %17 = vector.broadcast %16 : vector<1x128xf32> to vector<32x128xf32>
    %18 = arith.addf %14, %17 : vector<32x128xf32>
    %19 = arith.truncf %18 : vector<32x128xf32> to vector<32x128xbf16>
    %c8 = arith.constant 8 : index
    %c0_14 = arith.constant 0 : index
    %c0_15 = arith.constant 0 : index
    %20 = vector.load %arg3[%c8, %c0_14, %c0_15] : memref<12x128x128xbf16, #tpu.memory_space<vmem>>, vector<1x128x128xbf16>
    %21 = vector.shape_cast %20 : vector<1x128x128xbf16> to vector<128x128xbf16>
    %cst_16 = arith.constant dense<0.000000e+00> : vector<32x128xf32>
    %22 = tpu.matmul %19, %21, %cst_16 {dimension_numbers = #tpu.dot_dimension_numbers<[1], [0], [0], [1], [0, 0, 1, 1], [], []>} : vector<32x128xbf16>, vector<128x128xbf16>, vector<32x128xf32> -> vector<32x128xf32>
    %c8_17 = arith.constant 8 : index
    %c0_18 = arith.constant 0 : index
    %c0_19 = arith.constant 0 : index
    %23 = vector.load %arg4[%c8_17, %c0_18, %c0_19] : memref<12x1x128xf32, #tpu.memory_space<vmem>>, vector<1x1x128xf32>
    %24 = vector.shape_cast %23 : vector<1x1x128xf32> to vector<1x128xf32>
    %25 = vector.broadcast %24 : vector<1x128xf32> to vector<32x128xf32>
    %26 = arith.addf %22, %25 : vector<32x128xf32>
    %cst_20 = arith.constant 0.000000e+00 : f32
    %27 = vector.broadcast %cst_20 : f32 to vector<32x128xf32>
    %28 = arith.maximumf %26, %27 : vector<32x128xf32>
    %29 = arith.truncf %28 : vector<32x128xf32> to vector<32x128xbf16>
    %c9 = arith.constant 9 : index
    %c0_21 = arith.constant 0 : index
    %c0_22 = arith.constant 0 : index
    %30 = vector.load %arg3[%c9, %c0_21, %c0_22] : memref<12x128x128xbf16, #tpu.memory_space<vmem>>, vector<1x128x128xbf16>
    %31 = vector.shape_cast %30 : vector<1x128x128xbf16> to vector<128x128xbf16>
    %cst_23 = arith.constant dense<0.000000e+00> : vector<32x128xf32>
    %32 = tpu.matmul %29, %31, %cst_23 {dimension_numbers = #tpu.dot_dimension_numbers<[1], [0], [0], [1], [0, 0, 1, 1], [], []>} : vector<32x128xbf16>, vector<128x128xbf16>, vector<32x128xf32> -> vector<32x128xf32>
    %c9_24 = arith.constant 9 : index
    %c0_25 = arith.constant 0 : index
    %c0_26 = arith.constant 0 : index
    %33 = vector.load %arg4[%c9_24, %c0_25, %c0_26] : memref<12x1x128xf32, #tpu.memory_space<vmem>>, vector<1x1x128xf32>
    %34 = vector.shape_cast %33 : vector<1x1x128xf32> to vector<1x128xf32>
    %35 = vector.broadcast %34 : vector<1x128xf32> to vector<32x128xf32>
    %36 = arith.addf %32, %35 : vector<32x128xf32>
    %37 = arith.truncf %36 : vector<32x128xf32> to vector<32x128xbf16>
    %c10 = arith.constant 10 : index
    %c0_27 = arith.constant 0 : index
    %c0_28 = arith.constant 0 : index
    %38 = vector.load %arg3[%c10, %c0_27, %c0_28] : memref<12x128x128xbf16, #tpu.memory_space<vmem>>, vector<1x128x128xbf16>
    %39 = vector.shape_cast %38 : vector<1x128x128xbf16> to vector<128x128xbf16>
    %cst_29 = arith.constant dense<0.000000e+00> : vector<32x128xf32>
    %40 = tpu.matmul %37, %39, %cst_29 {dimension_numbers = #tpu.dot_dimension_numbers<[1], [0], [0], [1], [0, 0, 1, 1], [], []>} : vector<32x128xbf16>, vector<128x128xbf16>, vector<32x128xf32> -> vector<32x128xf32>
    %c10_30 = arith.constant 10 : index
    %c0_31 = arith.constant 0 : index
    %c0_32 = arith.constant 0 : index
    %41 = vector.load %arg4[%c10_30, %c0_31, %c0_32] : memref<12x1x128xf32, #tpu.memory_space<vmem>>, vector<1x1x128xf32>
    %42 = vector.shape_cast %41 : vector<1x1x128xf32> to vector<1x128xf32>
    %43 = vector.broadcast %42 : vector<1x128xf32> to vector<32x128xf32>
    %44 = arith.addf %40, %43 : vector<32x128xf32>
    %cst_33 = arith.constant 0.000000e+00 : f32
    %45 = vector.broadcast %cst_33 : f32 to vector<32x128xf32>
    %46 = arith.maximumf %44, %45 : vector<32x128xf32>
    %47 = arith.truncf %46 : vector<32x128xf32> to vector<32x128xbf16>
    %c11 = arith.constant 11 : index
    %c0_34 = arith.constant 0 : index
    %c0_35 = arith.constant 0 : index
    %48 = vector.load %arg3[%c11, %c0_34, %c0_35] : memref<12x128x128xbf16, #tpu.memory_space<vmem>>, vector<1x128x128xbf16>
    %49 = vector.shape_cast %48 : vector<1x128x128xbf16> to vector<128x128xbf16>
    %cst_36 = arith.constant dense<0.000000e+00> : vector<32x128xf32>
    %50 = tpu.matmul %47, %49, %cst_36 {dimension_numbers = #tpu.dot_dimension_numbers<[1], [0], [0], [1], [0, 0, 1, 1], [], []>} : vector<32x128xbf16>, vector<128x128xbf16>, vector<32x128xf32> -> vector<32x128xf32>
    %c11_37 = arith.constant 11 : index
    %c0_38 = arith.constant 0 : index
    %c0_39 = arith.constant 0 : index
    %51 = vector.load %arg4[%c11_37, %c0_38, %c0_39] : memref<12x1x128xf32, #tpu.memory_space<vmem>>, vector<1x1x128xf32>
    %52 = vector.shape_cast %51 : vector<1x1x128xf32> to vector<1x128xf32>
    %53 = vector.broadcast %52 : vector<1x128xf32> to vector<32x128xf32>
    %54 = arith.addf %50, %53 : vector<32x128xf32>
    %55 = arith.truncf %54 : vector<32x128xf32> to vector<32x128xbf16>
    %56 = vector.shape_cast %55 : vector<32x128xbf16> to vector<2x16x128xbf16>
    %c0_40 = arith.constant 0 : index
    %c0_41 = arith.constant 0 : index
    %c0_42 = arith.constant 0 : index
    %57 = vector.load %arg2[%c0_40, %c0_41, %c0_42] : memref<2x1x16xf32, #tpu.memory_space<vmem>>, vector<2x1x16xf32>
    %58 = vector.extract_strided_slice %57 {offsets = [0, 0, 0], sizes = [1, 1, 16], strides = [1, 1, 1]} : vector<2x1x16xf32> to vector<1x1x16xf32>
    %59 = vector.shape_cast %58 : vector<1x1x16xf32> to vector<1x16xf32>
    %cst_43 = arith.constant dense<0.000000e+00> : vector<1xf32>
    %60 = vector.multi_reduction <add>, %59, %cst_43 [1] : vector<1x16xf32> to vector<1xf32>
    %61 = vector.shape_cast %60 : vector<1xf32> to vector<1x1xf32>
    %62 = arith.truncf %59 : vector<1x16xf32> to vector<1x16xbf16>
    %63 = vector.extract_strided_slice %56 {offsets = [0, 0, 0], sizes = [1, 16, 128], strides = [1, 1, 1]} : vector<2x16x128xbf16> to vector<1x16x128xbf16>
    %64 = vector.shape_cast %63 : vector<1x16x128xbf16> to vector<16x128xbf16>
    %cst_44 = arith.constant dense<0.000000e+00> : vector<1x128xf32>
    %65 = tpu.matmul %62, %64, %cst_44 {dimension_numbers = #tpu.dot_dimension_numbers<[1], [0], [0], [1], [0, 0, 1, 1], [], []>} : vector<1x16xbf16>, vector<16x128xbf16>, vector<1x128xf32> -> vector<1x128xf32>
    %66 = vector.broadcast %61 : vector<1x1xf32> to vector<1x128xf32>
    %67 = arith.divf %65, %66 : vector<1x128xf32>
    %68 = vector.extract_strided_slice %57 {offsets = [1, 0, 0], sizes = [1, 1, 16], strides = [1, 1, 1]} : vector<2x1x16xf32> to vector<1x1x16xf32>
    %69 = vector.shape_cast %68 : vector<1x1x16xf32> to vector<1x16xf32>
    %cst_45 = arith.constant dense<0.000000e+00> : vector<1xf32>
    %70 = vector.multi_reduction <add>, %69, %cst_45 [1] : vector<1x16xf32> to vector<1xf32>
    %71 = vector.shape_cast %70 : vector<1xf32> to vector<1x1xf32>
    %72 = arith.truncf %69 : vector<1x16xf32> to vector<1x16xbf16>
    %73 = vector.extract_strided_slice %56 {offsets = [1, 0, 0], sizes = [1, 16, 128], strides = [1, 1, 1]} : vector<2x16x128xbf16> to vector<1x16x128xbf16>
    %74 = vector.shape_cast %73 : vector<1x16x128xbf16> to vector<16x128xbf16>
    %cst_46 = arith.constant dense<0.000000e+00> : vector<1x128xf32>
    %75 = tpu.matmul %72, %74, %cst_46 {dimension_numbers = #tpu.dot_dimension_numbers<[1], [0], [0], [1], [0, 0, 1, 1], [], []>} : vector<1x16xbf16>, vector<16x128xbf16>, vector<1x128xf32> -> vector<1x128xf32>
    %76 = vector.broadcast %71 : vector<1x1xf32> to vector<1x128xf32>
    %77 = arith.divf %75, %76 : vector<1x128xf32>
    %78 = tpu.concatenate %67, %77 in 0 : vector<1x128xf32>, vector<1x128xf32> -> vector<2x128xf32>
    %79 = arith.truncf %78 : vector<2x128xf32> to vector<2x128xbf16>
    %c0_47 = arith.constant 0 : index
    %c0_48 = arith.constant 0 : index
    %80 = vector.load %arg6[%c0_47, %c0_48] : memref<128x64xbf16, #tpu.memory_space<vmem>>, vector<128x64xbf16>
    %cst_49 = arith.constant dense<0.000000e+00> : vector<2x64xf32>
    %81 = tpu.matmul %79, %80, %cst_49 {dimension_numbers = #tpu.dot_dimension_numbers<[1], [0], [0], [1], [0, 0, 1, 1], [], []>} : vector<2x128xbf16>, vector<128x64xbf16>, vector<2x64xf32> -> vector<2x64xf32>
    %c0_50 = arith.constant 0 : index
    %c0_51 = arith.constant 0 : index
    %c0_52 = arith.constant 0 : index
    %82 = vector.load %arg3[%c0_50, %c0_51, %c0_52] : memref<12x128x128xbf16, #tpu.memory_space<vmem>>, vector<1x128x128xbf16>
    %83 = vector.shape_cast %82 : vector<1x128x128xbf16> to vector<128x128xbf16>
    %cst_53 = arith.constant dense<0.000000e+00> : vector<32x128xf32>
    %84 = tpu.matmul %1, %83, %cst_53 {dimension_numbers = #tpu.dot_dimension_numbers<[1], [0], [0], [1], [0, 0, 1, 1], [], []>} : vector<32x128xbf16>, vector<128x128xbf16>, vector<32x128xf32> -> vector<32x128xf32>
    %c0_54 = arith.constant 0 : index
    %c0_55 = arith.constant 0 : index
    %c0_56 = arith.constant 0 : index
    %85 = vector.load %arg4[%c0_54, %c0_55, %c0_56] : memref<12x1x128xf32, #tpu.memory_space<vmem>>, vector<1x1x128xf32>
    %86 = vector.shape_cast %85 : vector<1x1x128xf32> to vector<1x128xf32>
    %87 = vector.broadcast %86 : vector<1x128xf32> to vector<32x128xf32>
    %88 = arith.addf %84, %87 : vector<32x128xf32>
    %cst_57 = arith.constant 0.000000e+00 : f32
    %89 = vector.broadcast %cst_57 : f32 to vector<32x128xf32>
    %90 = arith.maximumf %88, %89 : vector<32x128xf32>
    %91 = arith.truncf %90 : vector<32x128xf32> to vector<32x128xbf16>
    %c1 = arith.constant 1 : index
    %c0_58 = arith.constant 0 : index
    %c0_59 = arith.constant 0 : index
    %92 = vector.load %arg3[%c1, %c0_58, %c0_59] : memref<12x128x128xbf16, #tpu.memory_space<vmem>>, vector<1x128x128xbf16>
    %93 = vector.shape_cast %92 : vector<1x128x128xbf16> to vector<128x128xbf16>
    %cst_60 = arith.constant dense<0.000000e+00> : vector<32x128xf32>
    %94 = tpu.matmul %91, %93, %cst_60 {dimension_numbers = #tpu.dot_dimension_numbers<[1], [0], [0], [1], [0, 0, 1, 1], [], []>} : vector<32x128xbf16>, vector<128x128xbf16>, vector<32x128xf32> -> vector<32x128xf32>
    %c1_61 = arith.constant 1 : index
    %c0_62 = arith.constant 0 : index
    %c0_63 = arith.constant 0 : index
    %95 = vector.load %arg4[%c1_61, %c0_62, %c0_63] : memref<12x1x128xf32, #tpu.memory_space<vmem>>, vector<1x1x128xf32>
    %96 = vector.shape_cast %95 : vector<1x1x128xf32> to vector<1x128xf32>
    %97 = vector.broadcast %96 : vector<1x128xf32> to vector<32x128xf32>
    %98 = arith.addf %94, %97 : vector<32x128xf32>
    %99 = arith.truncf %98 : vector<32x128xf32> to vector<32x128xbf16>
    %c2 = arith.constant 2 : index
    %c0_64 = arith.constant 0 : index
    %c0_65 = arith.constant 0 : index
    %100 = vector.load %arg3[%c2, %c0_64, %c0_65] : memref<12x128x128xbf16, #tpu.memory_space<vmem>>, vector<1x128x128xbf16>
    %101 = vector.shape_cast %100 : vector<1x128x128xbf16> to vector<128x128xbf16>
    %cst_66 = arith.constant dense<0.000000e+00> : vector<32x128xf32>
    %102 = tpu.matmul %99, %101, %cst_66 {dimension_numbers = #tpu.dot_dimension_numbers<[1], [0], [0], [1], [0, 0, 1, 1], [], []>} : vector<32x128xbf16>, vector<128x128xbf16>, vector<32x128xf32> -> vector<32x128xf32>
    %c2_67 = arith.constant 2 : index
    %c0_68 = arith.constant 0 : index
    %c0_69 = arith.constant 0 : index
    %103 = vector.load %arg4[%c2_67, %c0_68, %c0_69] : memref<12x1x128xf32, #tpu.memory_space<vmem>>, vector<1x1x128xf32>
    %104 = vector.shape_cast %103 : vector<1x1x128xf32> to vector<1x128xf32>
    %105 = vector.broadcast %104 : vector<1x128xf32> to vector<32x128xf32>
    %106 = arith.addf %102, %105 : vector<32x128xf32>
    %cst_70 = arith.constant 0.000000e+00 : f32
    %107 = vector.broadcast %cst_70 : f32 to vector<32x128xf32>
    %108 = arith.maximumf %106, %107 : vector<32x128xf32>
    %109 = arith.truncf %108 : vector<32x128xf32> to vector<32x128xbf16>
    %c3 = arith.constant 3 : index
    %c0_71 = arith.constant 0 : index
    %c0_72 = arith.constant 0 : index
    %110 = vector.load %arg3[%c3, %c0_71, %c0_72] : memref<12x128x128xbf16, #tpu.memory_space<vmem>>, vector<1x128x128xbf16>
    %111 = vector.shape_cast %110 : vector<1x128x128xbf16> to vector<128x128xbf16>
    %cst_73 = arith.constant dense<0.000000e+00> : vector<32x128xf32>
    %112 = tpu.matmul %109, %111, %cst_73 {dimension_numbers = #tpu.dot_dimension_numbers<[1], [0], [0], [1], [0, 0, 1, 1], [], []>} : vector<32x128xbf16>, vector<128x128xbf16>, vector<32x128xf32> -> vector<32x128xf32>
    %c3_74 = arith.constant 3 : index
    %c0_75 = arith.constant 0 : index
    %c0_76 = arith.constant 0 : index
    %113 = vector.load %arg4[%c3_74, %c0_75, %c0_76] : memref<12x1x128xf32, #tpu.memory_space<vmem>>, vector<1x1x128xf32>
    %114 = vector.shape_cast %113 : vector<1x1x128xf32> to vector<1x128xf32>
    %115 = vector.broadcast %114 : vector<1x128xf32> to vector<32x128xf32>
    %116 = arith.addf %112, %115 : vector<32x128xf32>
    %117 = arith.truncf %116 : vector<32x128xf32> to vector<32x128xbf16>
    %c4 = arith.constant 4 : index
    %c0_77 = arith.constant 0 : index
    %c0_78 = arith.constant 0 : index
    %118 = vector.load %arg3[%c4, %c0_77, %c0_78] : memref<12x128x128xbf16, #tpu.memory_space<vmem>>, vector<1x128x128xbf16>
    %119 = vector.shape_cast %118 : vector<1x128x128xbf16> to vector<128x128xbf16>
    %cst_79 = arith.constant dense<0.000000e+00> : vector<32x128xf32>
    %120 = tpu.matmul %117, %119, %cst_79 {dimension_numbers = #tpu.dot_dimension_numbers<[1], [0], [0], [1], [0, 0, 1, 1], [], []>} : vector<32x128xbf16>, vector<128x128xbf16>, vector<32x128xf32> -> vector<32x128xf32>
    %c4_80 = arith.constant 4 : index
    %c0_81 = arith.constant 0 : index
    %c0_82 = arith.constant 0 : index
    %121 = vector.load %arg4[%c4_80, %c0_81, %c0_82] : memref<12x1x128xf32, #tpu.memory_space<vmem>>, vector<1x1x128xf32>
    %122 = vector.shape_cast %121 : vector<1x1x128xf32> to vector<1x128xf32>
    %123 = vector.broadcast %122 : vector<1x128xf32> to vector<32x128xf32>
    %124 = arith.addf %120, %123 : vector<32x128xf32>
    %cst_83 = arith.constant 0.000000e+00 : f32
    %125 = vector.broadcast %cst_83 : f32 to vector<32x128xf32>
    %126 = arith.maximumf %124, %125 : vector<32x128xf32>
    %127 = arith.truncf %126 : vector<32x128xf32> to vector<32x128xbf16>
    %c5 = arith.constant 5 : index
    %c0_84 = arith.constant 0 : index
    %c0_85 = arith.constant 0 : index
    %128 = vector.load %arg3[%c5, %c0_84, %c0_85] : memref<12x128x128xbf16, #tpu.memory_space<vmem>>, vector<1x128x128xbf16>
    %129 = vector.shape_cast %128 : vector<1x128x128xbf16> to vector<128x128xbf16>
    %cst_86 = arith.constant dense<0.000000e+00> : vector<32x128xf32>
    %130 = tpu.matmul %127, %129, %cst_86 {dimension_numbers = #tpu.dot_dimension_numbers<[1], [0], [0], [1], [0, 0, 1, 1], [], []>} : vector<32x128xbf16>, vector<128x128xbf16>, vector<32x128xf32> -> vector<32x128xf32>
    %c5_87 = arith.constant 5 : index
    %c0_88 = arith.constant 0 : index
    %c0_89 = arith.constant 0 : index
    %131 = vector.load %arg4[%c5_87, %c0_88, %c0_89] : memref<12x1x128xf32, #tpu.memory_space<vmem>>, vector<1x1x128xf32>
    %132 = vector.shape_cast %131 : vector<1x1x128xf32> to vector<1x128xf32>
    %133 = vector.broadcast %132 : vector<1x128xf32> to vector<32x128xf32>
    %134 = arith.addf %130, %133 : vector<32x128xf32>
    %135 = arith.truncf %134 : vector<32x128xf32> to vector<32x128xbf16>
    %c0_90 = arith.constant 0 : index
    %c0_91 = arith.constant 0 : index
    %136 = vector.load %arg5[%c0_90, %c0_91] : memref<128x64xbf16, #tpu.memory_space<vmem>>, vector<128x64xbf16>
    %cst_92 = arith.constant dense<0.000000e+00> : vector<32x64xf32>
    %137 = tpu.matmul %135, %136, %cst_92 {dimension_numbers = #tpu.dot_dimension_numbers<[1], [0], [0], [1], [0, 0, 1, 1], [], []>} : vector<32x128xbf16>, vector<128x64xbf16>, vector<32x64xf32> -> vector<32x64xf32>
    %138 = vector.shape_cast %137 : vector<32x64xf32> to vector<2x16x64xf32>
    %139 = vector.shape_cast %81 : vector<2x64xf32> to vector<2x1x64xf32>
    %140 = vector.broadcast %139 : vector<2x1x64xf32> to vector<2x16x64xf32>
    %141 = arith.addf %138, %140 : vector<2x16x64xf32>
    %c0_93 = arith.constant 0 : index
    %c0_94 = arith.constant 0 : index
    %142 = vector.load %arg7[%c0_93, %c0_94] : memref<1x64xf32, #tpu.memory_space<vmem>>, vector<1x64xf32>
    %143 = vector.shape_cast %142 : vector<1x64xf32> to vector<1x1x64xf32>
    %144 = vector.broadcast %143 : vector<1x1x64xf32> to vector<2x16x64xf32>
    %145 = arith.addf %141, %144 : vector<2x16x64xf32>
    %cst_95 = arith.constant 0.000000e+00 : f32
    %146 = vector.broadcast %cst_95 : f32 to vector<2x16x64xf32>
    %147 = arith.maximumf %145, %146 : vector<2x16x64xf32>
    %148 = vector.shape_cast %147 : vector<2x16x64xf32> to vector<32x64xf32>
    %149 = arith.truncf %148 : vector<32x64xf32> to vector<32x64xbf16>
    %c0_96 = arith.constant 0 : index
    %c0_97 = arith.constant 0 : index
    %150 = vector.load %arg8[%c0_96, %c0_97] : memref<64x32xbf16, #tpu.memory_space<vmem>>, vector<64x32xbf16>
    %cst_98 = arith.constant dense<0.000000e+00> : vector<32x32xf32>
    %151 = tpu.matmul %149, %150, %cst_98 {dimension_numbers = #tpu.dot_dimension_numbers<[1], [0], [0], [1], [0, 0, 1, 1], [], []>} : vector<32x64xbf16>, vector<64x32xbf16>, vector<32x32xf32> -> vector<32x32xf32>
    %c0_99 = arith.constant 0 : index
    %c0_100 = arith.constant 0 : index
    %152 = vector.load %arg9[%c0_99, %c0_100] : memref<1x32xf32, #tpu.memory_space<vmem>>, vector<1x32xf32>
    %153 = vector.broadcast %152 : vector<1x32xf32> to vector<32x32xf32>
    %154 = arith.addf %151, %153 : vector<32x32xf32>
    %cst_101 = arith.constant 0.000000e+00 : f32
    %155 = vector.broadcast %cst_101 : f32 to vector<32x32xf32>
    %156 = arith.maximumf %154, %155 : vector<32x32xf32>
    %157 = arith.truncf %156 : vector<32x32xf32> to vector<32x32xbf16>
    %c0_102 = arith.constant 0 : index
    %c0_103 = arith.constant 0 : index
    %158 = vector.load %arg10[%c0_102, %c0_103] : memref<32x2xbf16, #tpu.memory_space<vmem>>, vector<32x2xbf16>
    %cst_104 = arith.constant dense<0.000000e+00> : vector<32x2xf32>
    %159 = tpu.matmul %157, %158, %cst_104 {dimension_numbers = #tpu.dot_dimension_numbers<[1], [0], [0], [1], [0, 0, 1, 1], [], []>} : vector<32x32xbf16>, vector<32x2xbf16>, vector<32x2xf32> -> vector<32x2xf32>
    %c0_105 = arith.constant 0 : index
    %c0_106 = arith.constant 0 : index
    %160 = vector.load %arg11[%c0_105, %c0_106] : memref<1x2xf32, #tpu.memory_space<vmem>>, vector<1x2xf32>
    %161 = vector.broadcast %160 : vector<1x2xf32> to vector<32x2xf32>
    %162 = arith.addf %159, %161 : vector<32x2xf32>
    %163 = vector.extract_strided_slice %162 {offsets = [0, 0], sizes = [32, 1], strides = [1, 1]} : vector<32x2xf32> to vector<32x1xf32>
    %164 = vector.extract_strided_slice %162 {offsets = [0, 1], sizes = [32, 1], strides = [1, 1]} : vector<32x2xf32> to vector<32x1xf32>
    %165 = arith.subf %164, %163 : vector<32x1xf32>
    %cst_107 = arith.constant 0.000000e+00 : f32
    %166 = vector.broadcast %cst_107 : f32 to vector<32x1xf32>
    %167 = arith.maximumf %165, %166 : vector<32x1xf32>
    %168 = arith.addf %163, %167 : vector<32x1xf32>
    %169 = math.absf %165 : vector<32x1xf32>
    %cst_108 = arith.constant 0.000000e+00 : f32
    %170 = vector.broadcast %cst_108 : f32 to vector<32x1xf32>
    %171 = arith.subf %170, %169 : vector<32x1xf32>
    %172 = math.exp %171 : vector<32x1xf32>
    %cst_109 = arith.constant 1.000000e+00 : f32
    %173 = vector.broadcast %cst_109 : f32 to vector<32x1xf32>
    %174 = arith.addf %173, %172 : vector<32x1xf32>
    %175 = math.log %174 : vector<32x1xf32>
    %176 = arith.addf %168, %175 : vector<32x1xf32>
    %177 = vector.broadcast %176 : vector<32x1xf32> to vector<32x2xf32>
    %178 = arith.subf %162, %177 : vector<32x2xf32>
    %179 = vector.shape_cast %178 : vector<32x2xf32> to vector<2x16x2xf32>
    %c0_110 = arith.constant 0 : index
    %c0_111 = arith.constant 0 : index
    %c0_112 = arith.constant 0 : index
    %180 = vector.load %arg12[%c0_110, %c0_111, %c0_112] : memref<2x16x2xf32, #tpu.memory_space<vmem>>, vector<2x16x2xf32>
    tpu.vector_store %arg12[%c0_110, %c0_111, %c0_112], %179 {strides = array<i32>} : memref<2x16x2xf32, #tpu.memory_space<vmem>>, vector<2x16x2xf32>,
    return
  }
  func.func @transform_0(%arg0: i32) -> (i32, i32, i32) {
    %c0_i32 = arith.constant 0 : i32
    %c0_i32_0 = arith.constant 0 : i32
    %c0_i32_1 = arith.constant 0 : i32
    return %arg0, %c0_i32, %c0_i32_0 : i32, i32, i32
  }
  func.func @transform_1(%arg0: i32) -> (i32, i32, i32) {
    %c0_i32 = arith.constant 0 : i32
    %c0_i32_0 = arith.constant 0 : i32
    %c0_i32_1 = arith.constant 0 : i32
    return %arg0, %c0_i32, %c0_i32_0 : i32, i32, i32
  }
  func.func @transform_2(%arg0: i32) -> (i32, i32, i32) {
    %c0_i32 = arith.constant 0 : i32
    %c0_i32_0 = arith.constant 0 : i32
    %c0_i32_1 = arith.constant 0 : i32
    %c0_i32_2 = arith.constant 0 : i32
    return %c0_i32, %c0_i32_0, %c0_i32_1 : i32, i32, i32
  }
  func.func @transform_3(%arg0: i32) -> (i32, i32, i32) {
    %c0_i32 = arith.constant 0 : i32
    %c0_i32_0 = arith.constant 0 : i32
    %c0_i32_1 = arith.constant 0 : i32
    %c0_i32_2 = arith.constant 0 : i32
    return %c0_i32, %c0_i32_0, %c0_i32_1 : i32, i32, i32
  }
  func.func @transform_4(%arg0: i32) -> (i32, i32) {
    %c0_i32 = arith.constant 0 : i32
    %c0_i32_0 = arith.constant 0 : i32
    %c0_i32_1 = arith.constant 0 : i32
    return %c0_i32, %c0_i32_0 : i32, i32
  }
  func.func @transform_5(%arg0: i32) -> (i32, i32) {
    %c0_i32 = arith.constant 0 : i32
    %c0_i32_0 = arith.constant 0 : i32
    %c0_i32_1 = arith.constant 0 : i32
    return %c0_i32, %c0_i32_0 : i32, i32
  }
  func.func @transform_6(%arg0: i32) -> (i32, i32) {
    %c0_i32 = arith.constant 0 : i32
    %c0_i32_0 = arith.constant 0 : i32
    %c0_i32_1 = arith.constant 0 : i32
    return %c0_i32, %c0_i32_0 : i32, i32
  }
  func.func @transform_7(%arg0: i32) -> (i32, i32) {
    %c0_i32 = arith.constant 0 : i32
    %c0_i32_0 = arith.constant 0 : i32
    %c0_i32_1 = arith.constant 0 : i32
    return %c0_i32, %c0_i32_0 : i32, i32
  }
  func.func @transform_8(%arg0: i32) -> (i32, i32) {
    %c0_i32 = arith.constant 0 : i32
    %c0_i32_0 = arith.constant 0 : i32
    %c0_i32_1 = arith.constant 0 : i32
    return %c0_i32, %c0_i32_0 : i32, i32
  }
  func.func @transform_9(%arg0: i32) -> (i32, i32) {
    %c0_i32 = arith.constant 0 : i32
    %c0_i32_0 = arith.constant 0 : i32
    %c0_i32_1 = arith.constant 0 : i32
    return %c0_i32, %c0_i32_0 : i32, i32
  }
  func.func @transform_10(%arg0: i32) -> (i32, i32) {
    %c0_i32 = arith.constant 0 : i32
    %c0_i32_0 = arith.constant 0 : i32
    %c0_i32_1 = arith.constant 0 : i32
    return %c0_i32, %c0_i32_0 : i32, i32
  }
  func.func @transform_11(%arg0: i32) -> (i32, i32, i32) {
    %c0_i32 = arith.constant 0 : i32
    %c0_i32_0 = arith.constant 0 : i32
    %c0_i32_1 = arith.constant 0 : i32
    return %arg0, %c0_i32, %c0_i32_0 : i32, i32, i32
  }
}

</mosaic_0001>

<llo_original>
// kernel: tpu_custom_call.1
$region0: #{tpu_custom_call.1}
  #allocation0 [shape = 'u32[]', space=smem, size = 0x4, offset = 0x4, fixed_abs, tag = 'smem constant byte address 0x4 - core index']
  #allocation1 [shape = 'u32[144,128]{1,0:T(1,128)}', space=vmem, size = 0x12000, scoped, tag = 'internal scratch']
  %s0 = inlined_call_operand.vmem [shape: bf16[2,16,128], index: 0, kind: input, shape index: {}]
  %s1 = inlined_call_operand.vmem [shape: f32[2,1,16], index: 1, kind: input, shape index: {}]
  %s2 = inlined_call_operand.hbm [shape: bf16[12,128,128], index: 2, kind: input, shape index: {}]
  %s3 = inlined_call_operand.vmem [shape: f32[12,1,128], index: 3, kind: input, shape index: {}]
  %s4 = inlined_call_operand.vmem [shape: bf16[128,64], index: 4, kind: input, shape index: {}]
  %s5 = inlined_call_operand.vmem [shape: bf16[128,64], index: 5, kind: input, shape index: {}]
  %s6 = inlined_call_operand.vmem [shape: f32[1,64], index: 6, kind: input, shape index: {}]
  %s7 = inlined_call_operand.vmem [shape: bf16[64,32], index: 7, kind: input, shape index: {}]
  %s8 = inlined_call_operand.vmem [shape: f32[1,32], index: 8, kind: input, shape index: {}]
  %s9 = inlined_call_operand.vmem [shape: bf16[32,2], index: 9, kind: input, shape index: {}]
  %s10 = inlined_call_operand.vmem [shape: f32[1,2], index: 10, kind: input, shape index: {}]
  %s11 = inlined_call_operand.vmem [shape: f32[2,16,2], index: 11, kind: output, shape index: {}]
  %s12 = sld [smem:[#allocation0]]
  $region58: #{tpu_custom_call.1} parent=0
    _
  %s14 = ssub.s32 1, %s12
  %s15 = scalar_select 0, %s14, %s12
  $region1: #{tpu_custom_call.1} parent=0
    #allocation2 [shape = 'u8[393216]{0}', space=vmem, size = 0x60000, scoped, tag = 'input window, operand 2, single buffered']
    #allocation3 [shape = 's32[1]{0}', space=sflag, size = 0x4, scoped, tag = 'scoped memory for tpu_custom_call.1']
    %16 = vsyncpa [#allocation3], 0
    // Predicated region
    $region2: #{tpu_custom_call.1} parent=1 // pred_check
      _
    $region3: #{tpu_custom_call.1} parent=1 // pred_check_branch
      %18 = sbr.rel (0) target = $region5
    $region4: #{tpu_custom_call.1} parent=1 // pred_region
      _
    $region5: #{tpu_custom_call.1} parent=1 // pred_fallthru
      _
    // Predicated region
    $region6: #{tpu_custom_call.1} parent=1 // pred_check
      _
    $region7: #{tpu_custom_call.1} parent=1 // pred_check_branch
      %20 = sbr.rel (0) target = $region9
    $region8: #{tpu_custom_call.1} parent=1 // pred_region
      _
    $region9: #{tpu_custom_call.1} parent=1 // pred_fallthru
      _
    // Predicated region
    $region10: #{tpu_custom_call.1} parent=1 // pred_check
      _
    $region11: #{tpu_custom_call.1} parent=1 // pred_check_branch
      %22 = sbr.rel (0) target = $region13
    $region12: #{tpu_custom_call.1} parent=1 // pred_region
      %s24 = ssub.s32 12288, 12288
      %25 = vsyncadd [#allocation3], %s24
      %s26 = sshll.u32 [#allocation2], 4
      %s27 = int_to_ptr.vmem [resolvable:$true] %s26
      %32 = dma.hbm_to_vmem [thread:$0]  %s2, 12288, %s27, [#allocation3], 64, 64, 4
    $region13: #{tpu_custom_call.1} parent=1 // pred_fallthru
      _
    // Predicated region
    $region14: #{tpu_custom_call.1} parent=1 // pred_check
      _
    $region15: #{tpu_custom_call.1} parent=1 // pred_check_branch
      %34 = sbr.rel (0) target = $region17
    $region16: #{tpu_custom_call.1} parent=1 // pred_region
      _
    $region17: #{tpu_custom_call.1} parent=1 // pred_fallthru
      _
    // Predicated region
    $region18: #{tpu_custom_call.1} parent=1 // pred_check
      _
    $region19: #{tpu_custom_call.1} parent=1 // pred_check_branch
      %36 = sbr.rel (0) target = $region21
    $region20: #{tpu_custom_call.1} parent=1 // pred_region
      _
    $region21: #{tpu_custom_call.1} parent=1 // pred_fallthru
      _
    // Predicated region
    $region22: #{tpu_custom_call.1} parent=1 // pred_check
      _
    $region23: #{tpu_custom_call.1} parent=1 // pred_check_branch
      %38 = sbr.rel (0) target = $region25
    $region24: #{tpu_custom_call.1} parent=1 // pred_region
      _
    $region25: #{tpu_custom_call.1} parent=1 // pred_fallthru
      _
    // Predicated region
    $region26: #{tpu_custom_call.1} parent=1 // pred_check
      _
    $region27: #{tpu_custom_call.1} parent=1 // pred_check_branch
      %40 = sbr.rel (0) target = $region29
    $region28: #{tpu_custom_call.1} parent=1 // pred_region
      _
    $region29: #{tpu_custom_call.1} parent=1 // pred_fallthru
      _
    // Predicated region
    $region30: #{tpu_custom_call.1} parent=1 // pred_check
      _
    $region31: #{tpu_custom_call.1} parent=1 // pred_check_branch
      %42 = sbr.rel (0) target = $region33
    $region32: #{tpu_custom_call.1} parent=1 // pred_region
      _
    $region33: #{tpu_custom_call.1} parent=1 // pred_fallthru
      _
    // Predicated region
    $region34: #{tpu_custom_call.1} parent=1 // pred_check
      _
    $region35: #{tpu_custom_call.1} parent=1 // pred_check_branch
      %44 = sbr.rel (0) target = $region37
    $region36: #{tpu_custom_call.1} parent=1 // pred_region
      _
    $region37: #{tpu_custom_call.1} parent=1 // pred_fallthru
      _
    // Predicated region
    $region38: #{tpu_custom_call.1} parent=1 // pred_check
      _
    $region39: #{tpu_custom_call.1} parent=1 // pred_check_branch
      %46 = sbr.rel (0) target = $region41
    $region40: #{tpu_custom_call.1} parent=1 // pred_region
      _
    $region41: #{tpu_custom_call.1} parent=1 // pred_fallthru
      _
    // Predicated region
    $region42: #{tpu_custom_call.1} parent=1 // pred_check
      _
    $region43: #{tpu_custom_call.1} parent=1 // pred_check_branch
      %48 = sbr.rel (0) target = $region45
    $region44: #{tpu_custom_call.1} parent=1 // pred_region
      _
    $region45: #{tpu_custom_call.1} parent=1 // pred_fallthru
      _
    // Predicated region
    $region46: #{tpu_custom_call.1} parent=1 // pred_check
      _
    $region47: #{tpu_custom_call.1} parent=1 // pred_check_branch
      %50 = sbr.rel (0) target = $region49
    $region48: #{tpu_custom_call.1} parent=1 // pred_region
      %51 = dma.done [#allocation3], 12288
    $region49: #{tpu_custom_call.1} parent=1 // pred_fallthru
      _
    %v53 = vld [vmem:[%s0] sm:$0xf]
    %v54 = vld [vmem:[%s0 + $0x4] sm:$0xf]
    %v55 = vld [vmem:[%s0 + $0x8] sm:$0xf]
    %v56 = vld [vmem:[%s0 + $0xc] sm:$0xf]
    %s57 = scalar_lea.vmem [#allocation2], 384
    %v58 = vld [vmem:[%s57] sm:$0xf]
    %v59 = vld [vmem:[%s57 + $0x4] sm:$0xf]
    %v60 = vld [vmem:[%s57 + $0x8] sm:$0xf]
    %v61 = vld [vmem:[%s57 + $0xc] sm:$0xf]
    %v62 = vld [vmem:[%s57 + $0x10] sm:$0xf]
    %v63 = vld [vmem:[%s57 + $0x14] sm:$0xf]
    %v64 = vld [vmem:[%s57 + $0x18] sm:$0xf]
    %v65 = vld [vmem:[%s57 + $0x1c] sm:$0xf]
    %v66 = vld [vmem:[%s57 + $0x20] sm:$0xf]
    %v67 = vld [vmem:[%s57 + $0x24] sm:$0xf]
    %v68 = vld [vmem:[%s57 + $0x28] sm:$0xf]
    %v69 = vld [vmem:[%s57 + $0x2c] sm:$0xf]
    %v70 = vld [vmem:[%s57 + $0x30] sm:$0xf]
    %v71 = vld [vmem:[%s57 + $0x34] sm:$0xf]
    %v72 = vld [vmem:[%s57 + $0x38] sm:$0xf]
    %v73 = vld [vmem:[%s57 + $0x3c] sm:$0xf]
    %s74 = scalar_lea.vmem %s3, 6
    %v75 = vld [vmem:[%s74] sm:$0x1]
    %v77 = vlaneseq
    %v78 = vshrl.u32 %v77, 7
    %v79 = vsub.s32 0, %v78
    %v80 = vrot.slane %v75, %v79
    %v86 = vunpack.c.l.b16 %v53
    %v87 = vunpack.c.l.b16 %v54
    %v88 = vunpack.c.l.b16 %v55
    %v89 = vunpack.c.l.b16 %v56
    %v90 = vpack.c.b16 %v87, %v86
    %v91 = vpack.c.b16 %v89, %v88
    %v110 = vunpack.c.l.b16 %v58
    %v111 = vunpack.c.l.b16 %v59
    %v112 = vunpack.c.l.b16 %v60
    %v113 = vunpack.c.l.b16 %v61
    %v114 = vunpack.c.l.b16 %v62
    %v115 = vunpack.c.l.b16 %v63
    %v116 = vunpack.c.l.b16 %v64
    %v117 = vunpack.c.l.b16 %v65
    %v118 = vunpack.c.l.b16 %v66
    %v119 = vunpack.c.l.b16 %v67
    %v120 = vunpack.c.l.b16 %v68
    %v121 = vunpack.c.l.b16 %v69
    %v122 = vunpack.c.l.b16 %v70
    %v123 = vunpack.c.l.b16 %v71
    %v124 = vunpack.c.l.b16 %v72
    %v125 = vunpack.c.l.b16 %v73
    %v126 = vpack.c.b16 %v111, %v110
    %v127 = vpack.c.b16 %v113, %v112
    %v128 = vpack.c.b16 %v115, %v114
    %v129 = vpack.c.b16 %v117, %v116
    %v130 = vpack.c.b16 %v119, %v118
    %v131 = vpack.c.b16 %v121, %v120
    %v132 = vpack.c.b16 %v123, %v122
    %v133 = vpack.c.b16 %v125, %v124
    %142 = vmatprep.subr.bf16.mxu0 0
    %143 = vmatpush1.bf16.msra.mxu0 %v126
    %144 = vmatprep.subr.bf16.mxu0 0
    %145 = vmatpush1.bf16.msra.mxu0 %v127
    %146 = vmatprep.subr.bf16.mxu0 0
    %147 = vmatpush1.bf16.msra.mxu0 %v128
    %148 = vmatprep.subr.bf16.mxu0 0
    %149 = vmatpush1.bf16.msra.mxu0 %v129
    %150 = vmatprep.subr.bf16.mxu0 0
    %151 = vmatpush1.bf16.msra.mxu0 %v130
    %152 = vmatprep.subr.bf16.mxu0 0
    %153 = vmatpush1.bf16.msra.mxu0 %v131
    %154 = vmatprep.subr.bf16.mxu0 0
    %155 = vmatpush1.bf16.msra.mxu0 %v132
    %156 = vmatprep.subr.bf16.mxu0 0
    %157 = vmatpush1.bf16.msra.mxu0 %v133
    %158 = vmatprep.subr.bf16.mxu0 0
    %159 = vmatpush1.bf16.msra.mxu0 0
    %160 = vmatprep.subr.bf16.mxu0 0
    %161 = vmatpush1.bf16.msra.mxu0 0
    %162 = vmatprep.subr.bf16.mxu0 0
    %163 = vmatpush1.bf16.msra.mxu0 0
    %164 = vmatprep.subr.bf16.mxu0 0
    %165 = vmatpush1.bf16.msra.mxu0 0
    %166 = vmatprep.subr.bf16.mxu0 0
    %167 = vmatpush1.bf16.msra.mxu0 0
    %168 = vmatprep.subr.bf16.mxu0 0
    %169 = vmatpush1.bf16.msra.mxu0 0
    %170 = vmatprep.subr.bf16.mxu0 0
    %171 = vmatpush1.bf16.msra.mxu0 0
    %172 = vmatprep.subr.bf16.mxu0 0
    %173 = vmatpush1.bf16.msra.mxu0 0
    %174 = vmatprep.mubr.bf16.mxu0 0
    %175 = vmatmul.mubr.bf16.gmra.mrb[0].mxu0 %v90
    %v176 = vpop.f32.mrb[0].mxu0
    %v177 = vadd.f32 %v80, %v176
    %v178 = vpop.f32.mrb[0].mxu0
    %v179 = vpop.f32.mrb[0].mxu0
    %v180 = vadd.f32 %v80, %v179
    %v181 = vpop.f32.mrb[0].mxu0
    %182 = vmatprep.mubr.bf16.mxu0 0
    %183 = vmatmul.mubr.bf16.gmra.mrb[0].mxu0 %v91
    %v184 = vpop.f32.mrb[0].mxu0
    %v185 = vadd.f32 %v80, %v184
    %v186 = vpop.f32.mrb[0].mxu0
    %v187 = vpop.f32.mrb[0].mxu0
    %v188 = vadd.f32 %v80, %v187
    %v189 = vpop.f32.mrb[0].mxu0
    %190 = vdwg.mxu0
    %v191 = vmax.f32 %v177, 0.0
    %v192 = vmax.f32 %v180, 0.0
    %v193 = vmax.f32 %v185, 0.0
    %v194 = vmax.f32 %v188, 0.0
    %v195 = vpack.c.bf16 %v192, %v191
    %v196 = vpack.c.bf16 %v194, %v193
    %s197 = scalar_lea.vmem [#allocation2], 448
    %v198 = vld [vmem:[%s197] sm:$0xf]
    %v199 = vld [vmem:[%s197 + $0x4] sm:$0xf]
    %v200 = vld [vmem:[%s197 + $0x8] sm:$0xf]
    %v201 = vld [vmem:[%s197 + $0xc] sm:$0xf]
    %v202 = vld [vmem:[%s197 + $0x10] sm:$0xf]
    %v203 = vld [vmem:[%s197 + $0x14] sm:$0xf]
    %v204 = vld [vmem:[%s197 + $0x18] sm:$0xf]
    %v205 = vld [vmem:[%s197 + $0x1c] sm:$0xf]
    %v206 = vld [vmem:[%s197 + $0x20] sm:$0xf]
    %v207 = vld [vmem:[%s197 + $0x24] sm:$0xf]
    %v208 = vld [vmem:[%s197 + $0x28] sm:$0xf]
    %v209 = vld [vmem:[%s197 + $0x2c] sm:$0xf]
    %v210 = vld [vmem:[%s197 + $0x30] sm:$0xf]
    %v211 = vld [vmem:[%s197 + $0x34] sm:$0xf]
    %v212 = vld [vmem:[%s197 + $0x38] sm:$0xf]
    %v213 = vld [vmem:[%s197 + $0x3c] sm:$0xf]
    %s214 = scalar_lea.vmem %s3, 7
    %v215 = vld [vmem:[%s214] sm:$0x1]
    %v217 = vlaneseq
    %v218 = vshrl.u32 %v217, 7
    %v219 = vsub.s32 0, %v218
    %v220 = vrot.slane %v215, %v219
    %v238 = vunpack.c.l.b16 %v198
    %v239 = vunpack.c.l.b16 %v199
    %v240 = vunpack.c.l.b16 %v200
    %v241 = vunpack.c.l.b16 %v201
    %v242 = vunpack.c.l.b16 %v202
    %v243 = vunpack.c.l.b16 %v203
    %v244 = vunpack.c.l.b16 %v204
    %v245 = vunpack.c.l.b16 %v205
    %v246 = vunpack.c.l.b16 %v206
    %v247 = vunpack.c.l.b16 %v207
    %v248 = vunpack.c.l.b16 %v208
    %v249 = vunpack.c.l.b16 %v209
    %v250 = vunpack.c.l.b16 %v210
    %v251 = vunpack.c.l.b16 %v211
    %v252 = vunpack.c.l.b16 %v212
    %v253 = vunpack.c.l.b16 %v213
    %v254 = vpack.c.b16 %v239, %v238
    %v255 = vpack.c.b16 %v241, %v240
    %v256 = vpack.c.b16 %v243, %v242
    %v257 = vpack.c.b16 %v245, %v244
    %v258 = vpack.c.b16 %v247, %v246
    %v259 = vpack.c.b16 %v249, %v248
    %v260 = vpack.c.b16 %v251, %v250
    %v261 = vpack.c.b16 %v253, %v252
    %270 = vmatprep.subr.bf16.mxu0 0
    %271 = vmatpush1.bf16.msra.mxu0 %v254
    %272 = vmatprep.subr.bf16.mxu0 0
    %273 = vmatpush1.bf16.msra.mxu0 %v255
    %274 = vmatprep.subr.bf16.mxu0 0
    %275 = vmatpush1.bf16.msra.mxu0 %v256
    %276 = vmatprep.subr.bf16.mxu0 0
    %277 = vmatpush1.bf16.msra.mxu0 %v257
    %278 = vmatprep.subr.bf16.mxu0 0
    %279 = vmatpush1.bf16.msra.mxu0 %v258
    %280 = vmatprep.subr.bf16.mxu0 0
    %281 = vmatpush1.bf16.msra.mxu0 %v259
    %282 = vmatprep.subr.bf16.mxu0 0
    %283 = vmatpush1.bf16.msra.mxu0 %v260
    %284 = vmatprep.subr.bf16.mxu0 0
    %285 = vmatpush1.bf16.msra.mxu0 %v261
    %286 = vmatprep.subr.bf16.mxu0 0
    %287 = vmatpush1.bf16.msra.mxu0 0
    %288 = vmatprep.subr.bf16.mxu0 0
    %289 = vmatpush1.bf16.msra.mxu0 0
    %290 = vmatprep.subr.bf16.mxu0 0
    %291 = vmatpush1.bf16.msra.mxu0 0
    %292 = vmatprep.subr.bf16.mxu0 0
    %293 = vmatpush1.bf16.msra.mxu0 0
    %294 = vmatprep.subr.bf16.mxu0 0
    %295 = vmatpush1.bf16.msra.mxu0 0
    %296 = vmatprep.subr.bf16.mxu0 0
    %297 = vmatpush1.bf16.msra.mxu0 0
    %298 = vmatprep.subr.bf16.mxu0 0
    %299 = vmatpush1.bf16.msra.mxu0 0
    %300 = vmatprep.subr.bf16.mxu0 0
    %301 = vmatpush1.bf16.msra.mxu0 0
    %302 = vmatprep.mubr.bf16.mxu0 0
    %303 = vmatmul.mubr.bf16.gmra.mrb[0].mxu0 %v195
    %v304 = vpop.f32.mrb[0].mxu0
    %v305 = vadd.f32 %v220, %v304
    %v306 = vpop.f32.mrb[0].mxu0
    %v307 = vpop.f32.mrb[0].mxu0
    %v308 = vadd.f32 %v220, %v307
    %v309 = vpop.f32.mrb[0].mxu0
    %310 = vmatprep.mubr.bf16.mxu0 0
    %311 = vmatmul.mubr.bf16.gmra.mrb[0].mxu0 %v196
    %v312 = vpop.f32.mrb[0].mxu0
    %v313 = vadd.f32 %v220, %v312
    %v314 = vpop.f32.mrb[0].mxu0
    %v315 = vpop.f32.mrb[0].mxu0
    %v316 = vadd.f32 %v220, %v315
    %v317 = vpop.f32.mrb[0].mxu0
    %318 = vdwg.mxu0
    %v319 = vpack.c.bf16 %v308, %v305
    %v320 = vpack.c.bf16 %v316, %v313
    %s321 = scalar_lea.vmem [#allocation2], 512
    %v322 = vld [vmem:[%s321] sm:$0xf]
    %v323 = vld [vmem:[%s321 + $0x4] sm:$0xf]
    %v324 = vld [vmem:[%s321 + $0x8] sm:$0xf]
    %v325 = vld [vmem:[%s321 + $0xc] sm:$0xf]
    %v326 = vld [vmem:[%s321 + $0x10] sm:$0xf]
    %v327 = vld [vmem:[%s321 + $0x14] sm:$0xf]
    %v328 = vld [vmem:[%s321 + $0x18] sm:$0xf]
    %v329 = vld [vmem:[%s321 + $0x1c] sm:$0xf]
    %v330 = vld [vmem:[%s321 + $0x20] sm:$0xf]
    %v331 = vld [vmem:[%s321 + $0x24] sm:$0xf]
    %v332 = vld [vmem:[%s321 + $0x28] sm:$0xf]
    %v333 = vld [vmem:[%s321 + $0x2c] sm:$0xf]
    %v334 = vld [vmem:[%s321 + $0x30] sm:$0xf]
    %v335 = vld [vmem:[%s321 + $0x34] sm:$0xf]
    %v336 = vld [vmem:[%s321 + $0x38] sm:$0xf]
    %v337 = vld [vmem:[%s321 + $0x3c] sm:$0xf]
    %s338 = scalar_lea.vmem %s3, 8
    %v339 = vld [vmem:[%s338] sm:$0x1]
    %v341 = vlaneseq
    %v342 = vshrl.u32 %v341, 7
    %v343 = vsub.s32 0, %v342
    %v344 = vrot.slane %v339, %v343
    %v362 = vunpack.c.l.b16 %v322
    %v363 = vunpack.c.l.b16 %v323
    %v364 = vunpack.c.l.b16 %v324
    %v365 = vunpack.c.l.b16 %v325
    %v366 = vunpack.c.l.b16 %v326
    %v367 = vunpack.c.l.b16 %v327
    %v368 = vunpack.c.l.b16 %v328
    %v369 = vunpack.c.l.b16 %v329
    %v370 = vunpack.c.l.b16 %v330
    %v371 = vunpack.c.l.b16 %v331
    %v372 = vunpack.c.l.b16 %v332
    %v373 = vunpack.c.l.b16 %v333
    %v374 = vunpack.c.l.b16 %v334
    %v375 = vunpack.c.l.b16 %v335
    %v376 = vunpack.c.l.b16 %v336
    %v377 = vunpack.c.l.b16 %v337
    %v378 = vpack.c.b16 %v363, %v362
    %v379 = vpack.c.b16 %v365, %v364
    %v380 = vpack.c.b16 %v367, %v366
    %v381 = vpack.c.b16 %v369, %v368
    %v382 = vpack.c.b16 %v371, %v370
    %v383 = vpack.c.b16 %v373, %v372
    %v384 = vpack.c.b16 %v375, %v374
    %v385 = vpack.c.b16 %v377, %v376
    %394 = vmatprep.subr.bf16.mxu0 0
    %395 = vmatpush1.bf16.msra.mxu0 %v378
    %396 = vmatprep.subr.bf16.mxu0 0
    %397 = vmatpush1.bf16.msra.mxu0 %v379
    %398 = vmatprep.subr.bf16.mxu0 0
    %399 = vmatpush1.bf16.msra.mxu0 %v380
    %400 = vmatprep.subr.bf16.mxu0 0
    %401 = vmatpush1.bf16.msra.mxu0 %v381
    %402 = vmatprep.subr.bf16.mxu0 0
    %403 = vmatpush1.bf16.msra.mxu0 %v382
    %404 = vmatprep.subr.bf16.mxu0 0
    %405 = vmatpush1.bf16.msra.mxu0 %v383
    %406 = vmatprep.subr.bf16.mxu0 0
    %407 = vmatpush1.bf16.msra.mxu0 %v384
    %408 = vmatprep.subr.bf16.mxu0 0
    %409 = vmatpush1.bf16.msra.mxu0 %v385
    %410 = vmatprep.subr.bf16.mxu0 0
    %411 = vmatpush1.bf16.msra.mxu0 0
    %412 = vmatprep.subr.bf16.mxu0 0
    %413 = vmatpush1.bf16.msra.mxu0 0
    %414 = vmatprep.subr.bf16.mxu0 0
    %415 = vmatpush1.bf16.msra.mxu0 0
    %416 = vmatprep.subr.bf16.mxu0 0
    %417 = vmatpush1.bf16.msra.mxu0 0
    %418 = vmatprep.subr.bf16.mxu0 0
    %419 = vmatpush1.bf16.msra.mxu0 0
    %420 = vmatprep.subr.bf16.mxu0 0
    %421 = vmatpush1.bf16.msra.mxu0 0
    %422 = vmatprep.subr.bf16.mxu0 0
    %423 = vmatpush1.bf16.msra.mxu0 0
    %424 = vmatprep.subr.bf16.mxu0 0
    %425 = vmatpush1.bf16.msra.mxu0 0
    %426 = vmatprep.mubr.bf16.mxu0 0
    %427 = vmatmul.mubr.bf16.gmra.mrb[0].mxu0 %v319
    %v428 = vpop.f32.mrb[0].mxu0
    %v429 = vadd.f32 %v344, %v428
    %v430 = vpop.f32.mrb[0].mxu0
    %v431 = vpop.f32.mrb[0].mxu0
    %v432 = vadd.f32 %v344, %v431
    %v433 = vpop.f32.mrb[0].mxu0
    %434 = vmatprep.mubr.bf16.mxu0 0
    %435 = vmatmul.mubr.bf16.gmra.mrb[0].mxu0 %v320
    %v436 = vpop.f32.mrb[0].mxu0
    %v437 = vadd.f32 %v344, %v436
    %v438 = vpop.f32.mrb[0].mxu0
    %v439 = vpop.f32.mrb[0].mxu0
    %v440 = vadd.f32 %v344, %v439
    %v441 = vpop.f32.mrb[0].mxu0
    %442 = vdwg.mxu0
    %v443 = vmax.f32 %v429, 0.0
    %v444 = vmax.f32 %v432, 0.0
    %v445 = vmax.f32 %v437, 0.0
    %v446 = vmax.f32 %v440, 0.0
    %v447 = vpack.c.bf16 %v444, %v443
    %v448 = vpack.c.bf16 %v446, %v445
    %s449 = scalar_lea.vmem [#allocation2], 576
    %v450 = vld [vmem:[%s449] sm:$0xf]
    %v451 = vld [vmem:[%s449 + $0x4] sm:$0xf]
    %v452 = vld [vmem:[%s449 + $0x8] sm:$0xf]
    %v453 = vld [vmem:[%s449 + $0xc] sm:$0xf]
    %v454 = vld [vmem:[%s449 + $0x10] sm:$0xf]
    %v455 = vld [vmem:[%s449 + $0x14] sm:$0xf]
    %v456 = vld [vmem:[%s449 + $0x18] sm:$0xf]
    %v457 = vld [vmem:[%s449 + $0x1c] sm:$0xf]
    %v458 = vld [vmem:[%s449 + $0x20] sm:$0xf]
    %v459 = vld [vmem:[%s449 + $0x24] sm:$0xf]
    %v460 = vld [vmem:[%s449 + $0x28] sm:$0xf]
    %v461 = vld [vmem:[%s449 + $0x2c] sm:$0xf]
    %v462 = vld [vmem:[%s449 + $0x30] sm:$0xf]
    %v463 = vld [vmem:[%s449 + $0x34] sm:$0xf]
    %v464 = vld [vmem:[%s449 + $0x38] sm:$0xf]
    %v465 = vld [vmem:[%s449 + $0x3c] sm:$0xf]
    %s466 = scalar_lea.vmem %s3, 9
    %v467 = vld [vmem:[%s466] sm:$0x1]
    %v469 = vlaneseq
    %v470 = vshrl.u32 %v469, 7
    %v471 = vsub.s32 0, %v470
    %v472 = vrot.slane %v467, %v471
    %v490 = vunpack.c.l.b16 %v450
    %v491 = vunpack.c.l.b16 %v451
    %v492 = vunpack.c.l.b16 %v452
    %v493 = vunpack.c.l.b16 %v453
    %v494 = vunpack.c.l.b16 %v454
    %v495 = vunpack.c.l.b16 %v455
    %v496 = vunpack.c.l.b16 %v456
    %v497 = vunpack.c.l.b16 %v457
    %v498 = vunpack.c.l.b16 %v458
    %v499 = vunpack.c.l.b16 %v459
    %v500 = vunpack.c.l.b16 %v460
    %v501 = vunpack.c.l.b16 %v461
    %v502 = vunpack.c.l.b16 %v462
    %v503 = vunpack.c.l.b16 %v463
    %v504 = vunpack.c.l.b16 %v464
    %v505 = vunpack.c.l.b16 %v465
    %v506 = vpack.c.b16 %v491, %v490
    %v507 = vpack.c.b16 %v493, %v492
    %v508 = vpack.c.b16 %v495, %v494
    %v509 = vpack.c.b16 %v497, %v496
    %v510 = vpack.c.b16 %v499, %v498
    %v511 = vpack.c.b16 %v501, %v500
    %v512 = vpack.c.b16 %v503, %v502
    %v513 = vpack.c.b16 %v505, %v504
    %522 = vmatprep.subr.bf16.mxu0 0
    %523 = vmatpush1.bf16.msra.mxu0 %v506
    %524 = vmatprep.subr.bf16.mxu0 0
    %525 = vmatpush1.bf16.msra.mxu0 %v507
    %526 = vmatprep.subr.bf16.mxu0 0
    %527 = vmatpush1.bf16.msra.mxu0 %v508
    %528 = vmatprep.subr.bf16.mxu0 0
    %529 = vmatpush1.bf16.msra.mxu0 %v509
    %530 = vmatprep.subr.bf16.mxu0 0
    %531 = vmatpush1.bf16.msra.mxu0 %v510
    %532 = vmatprep.subr.bf16.mxu0 0
    %533 = vmatpush1.bf16.msra.mxu0 %v511
    %534 = vmatprep.subr.bf16.mxu0 0
    %535 = vmatpush1.bf16.msra.mxu0 %v512
    %536 = vmatprep.subr.bf16.mxu0 0
    %537 = vmatpush1.bf16.msra.mxu0 %v513
    %538 = vmatprep.subr.bf16.mxu0 0
    %539 = vmatpush1.bf16.msra.mxu0 0
    %540 = vmatprep.subr.bf16.mxu0 0
    %541 = vmatpush1.bf16.msra.mxu0 0
    %542 = vmatprep.subr.bf16.mxu0 0
    %543 = vmatpush1.bf16.msra.mxu0 0
    %544 = vmatprep.subr.bf16.mxu0 0
    %545 = vmatpush1.bf16.msra.mxu0 0
    %546 = vmatprep.subr.bf16.mxu0 0
    %547 = vmatpush1.bf16.msra.mxu0 0
    %548 = vmatprep.subr.bf16.mxu0 0
    %549 = vmatpush1.bf16.msra.mxu0 0
    %550 = vmatprep.subr.bf16.mxu0 0
    %551 = vmatpush1.bf16.msra.mxu0 0
    %552 = vmatprep.subr.bf16.mxu0 0
    %553 = vmatpush1.bf16.msra.mxu0 0
    %554 = vmatprep.mubr.bf16.mxu0 0
    %555 = vmatmul.mubr.bf16.gmra.mrb[0].mxu0 %v447
    %v556 = vpop.f32.mrb[0].mxu0
    %v557 = vadd.f32 %v472, %v556
    %v558 = vpop.f32.mrb[0].mxu0
    %v559 = vpop.f32.mrb[0].mxu0
    %v560 = vadd.f32 %v472, %v559
    %v561 = vpop.f32.mrb[0].mxu0
    %562 = vmatprep.mubr.bf16.mxu0 0
    %563 = vmatmul.mubr.bf16.gmra.mrb[0].mxu0 %v448
    %v564 = vpop.f32.mrb[0].mxu0
    %v565 = vadd.f32 %v472, %v564
    %v566 = vpop.f32.mrb[0].mxu0
    %v567 = vpop.f32.mrb[0].mxu0
    %v568 = vadd.f32 %v472, %v567
    %v569 = vpop.f32.mrb[0].mxu0
    %570 = vdwg.mxu0
    %v571 = vpack.c.bf16 %v560, %v557
    %v572 = vpack.c.bf16 %v568, %v565
    %s573 = scalar_lea.vmem [#allocation2], 640
    %v574 = vld [vmem:[%s573] sm:$0xf]
    %v575 = vld [vmem:[%s573 + $0x4] sm:$0xf]
    %v576 = vld [vmem:[%s573 + $0x8] sm:$0xf]
    %v577 = vld [vmem:[%s573 + $0xc] sm:$0xf]
    %v578 = vld [vmem:[%s573 + $0x10] sm:$0xf]
    %v579 = vld [vmem:[%s573 + $0x14] sm:$0xf]
    %v580 = vld [vmem:[%s573 + $0x18] sm:$0xf]
    %v581 = vld [vmem:[%s573 + $0x1c] sm:$0xf]
    %v582 = vld [vmem:[%s573 + $0x20] sm:$0xf]
    %v583 = vld [vmem:[%s573 + $0x24] sm:$0xf]
    %v584 = vld [vmem:[%s573 + $0x28] sm:$0xf]
    %v585 = vld [vmem:[%s573 + $0x2c] sm:$0xf]
    %v586 = vld [vmem:[%s573 + $0x30] sm:$0xf]
    %v587 = vld [vmem:[%s573 + $0x34] sm:$0xf]
    %v588 = vld [vmem:[%s573 + $0x38] sm:$0xf]
    %v589 = vld [vmem:[%s573 + $0x3c] sm:$0xf]
    %s590 = scalar_lea.vmem %s3, 10
    %v591 = vld [vmem:[%s590] sm:$0x1]
    %v593 = vlaneseq
    %v594 = vshrl.u32 %v593, 7
    %v595 = vsub.s32 0, %v594
    %v596 = vrot.slane %v591, %v595
    %v614 = vunpack.c.l.b16 %v574
    %v615 = vunpack.c.l.b16 %v575
    %v616 = vunpack.c.l.b16 %v576
    %v617 = vunpack.c.l.b16 %v577
    %v618 = vunpack.c.l.b16 %v578
    %v619 = vunpack.c.l.b16 %v579
    %v620 = vunpack.c.l.b16 %v580
    %v621 = vunpack.c.l.b16 %v581
    %v622 = vunpack.c.l.b16 %v582
    %v623 = vunpack.c.l.b16 %v583
    %v624 = vunpack.c.l.b16 %v584
    %v625 = vunpack.c.l.b16 %v585
    %v626 = vunpack.c.l.b16 %v586
    %v627 = vunpack.c.l.b16 %v587
    %v628 = vunpack.c.l.b16 %v588
    %v629 = vunpack.c.l.b16 %v589
    %v630 = vpack.c.b16 %v615, %v614
    %v631 = vpack.c.b16 %v617, %v616
    %v632 = vpack.c.b16 %v619, %v618
    %v633 = vpack.c.b16 %v621, %v620
    %v634 = vpack.c.b16 %v623, %v622
    %v635 = vpack.c.b16 %v625, %v624
    %v636 = vpack.c.b16 %v627, %v626
    %v637 = vpack.c.b16 %v629, %v628
    %646 = vmatprep.subr.bf16.mxu0 0
    %647 = vmatpush1.bf16.msra.mxu0 %v630
    %648 = vmatprep.subr.bf16.mxu0 0
    %649 = vmatpush1.bf16.msra.mxu0 %v631
    %650 = vmatprep.subr.bf16.mxu0 0
    %651 = vmatpush1.bf16.msra.mxu0 %v632
    %652 = vmatprep.subr.bf16.mxu0 0
    %653 = vmatpush1.bf16.msra.mxu0 %v633
    %654 = vmatprep.subr.bf16.mxu0 0
    %655 = vmatpush1.bf16.msra.mxu0 %v634
    %656 = vmatprep.subr.bf16.mxu0 0
    %657 = vmatpush1.bf16.msra.mxu0 %v635
    %658 = vmatprep.subr.bf16.mxu0 0
    %659 = vmatpush1.bf16.msra.mxu0 %v636
    %660 = vmatprep.subr.bf16.mxu0 0
    %661 = vmatpush1.bf16.msra.mxu0 %v637
    %662 = vmatprep.subr.bf16.mxu0 0
    %663 = vmatpush1.bf16.msra.mxu0 0
    %664 = vmatprep.subr.bf16.mxu0 0
    %665 = vmatpush1.bf16.msra.mxu0 0
    %666 = vmatprep.subr.bf16.mxu0 0
    %667 = vmatpush1.bf16.msra.mxu0 0
    %668 = vmatprep.subr.bf16.mxu0 0
    %669 = vmatpush1.bf16.msra.mxu0 0
    %670 = vmatprep.subr.bf16.mxu0 0
    %671 = vmatpush1.bf16.msra.mxu0 0
    %672 = vmatprep.subr.bf16.mxu0 0
    %673 = vmatpush1.bf16.msra.mxu0 0
    %674 = vmatprep.subr.bf16.mxu0 0
    %675 = vmatpush1.bf16.msra.mxu0 0
    %676 = vmatprep.subr.bf16.mxu0 0
    %677 = vmatpush1.bf16.msra.mxu0 0
    %678 = vmatprep.mubr.bf16.mxu0 0
    %679 = vmatmul.mubr.bf16.gmra.mrb[0].mxu0 %v571
    %v680 = vpop.f32.mrb[0].mxu0
    %v681 = vadd.f32 %v596, %v680
    %v682 = vpop.f32.mrb[0].mxu0
    %v683 = vpop.f32.mrb[0].mxu0
    %v684 = vadd.f32 %v596, %v683
    %v685 = vpop.f32.mrb[0].mxu0
    %686 = vmatprep.mubr.bf16.mxu0 0
    %687 = vmatmul.mubr.bf16.gmra.mrb[0].mxu0 %v572
    %v688 = vpop.f32.mrb[0].mxu0
    %v689 = vadd.f32 %v596, %v688
    %v690 = vpop.f32.mrb[0].mxu0
    %v691 = vpop.f32.mrb[0].mxu0
    %v692 = vadd.f32 %v596, %v691
    %v693 = vpop.f32.mrb[0].mxu0
    %694 = vdwg.mxu0
    %v695 = vmax.f32 %v681, 0.0
    %v696 = vmax.f32 %v684, 0.0
    %v697 = vmax.f32 %v689, 0.0
    %v698 = vmax.f32 %v692, 0.0
    %v699 = vpack.c.bf16 %v696, %v695
    %v700 = vpack.c.bf16 %v698, %v697
    %s701 = scalar_lea.vmem [#allocation2], 704
    %v702 = vld [vmem:[%s701] sm:$0xf]
    %v703 = vld [vmem:[%s701 + $0x4] sm:$0xf]
    %v704 = vld [vmem:[%s701 + $0x8] sm:$0xf]
    %v705 = vld [vmem:[%s701 + $0xc] sm:$0xf]
    %v706 = vld [vmem:[%s701 + $0x10] sm:$0xf]
    %v707 = vld [vmem:[%s701 + $0x14] sm:$0xf]
    %v708 = vld [vmem:[%s701 + $0x18] sm:$0xf]
    %v709 = vld [vmem:[%s701 + $0x1c] sm:$0xf]
    %v710 = vld [vmem:[%s701 + $0x20] sm:$0xf]
    %v711 = vld [vmem:[%s701 + $0x24] sm:$0xf]
    %v712 = vld [vmem:[%s701 + $0x28] sm:$0xf]
    %v713 = vld [vmem:[%s701 + $0x2c] sm:$0xf]
    %v714 = vld [vmem:[%s701 + $0x30] sm:$0xf]
    %v715 = vld [vmem:[%s701 + $0x34] sm:$0xf]
    %v716 = vld [vmem:[%s701 + $0x38] sm:$0xf]
    %v717 = vld [vmem:[%s701 + $0x3c] sm:$0xf]
    %s718 = scalar_lea.vmem %s3, 11
    %v719 = vld [vmem:[%s718] sm:$0x1]
    %v721 = vlaneseq
    %v722 = vshrl.u32 %v721, 7
    %v723 = vsub.s32 0, %v722
    %v724 = vrot.slane %v719, %v723
    %v742 = vunpack.c.l.b16 %v702
    %v743 = vunpack.c.l.b16 %v703
    %v744 = vunpack.c.l.b16 %v704
    %v745 = vunpack.c.l.b16 %v705
    %v746 = vunpack.c.l.b16 %v706
    %v747 = vunpack.c.l.b16 %v707
    %v748 = vunpack.c.l.b16 %v708
    %v749 = vunpack.c.l.b16 %v709
    %v750 = vunpack.c.l.b16 %v710
    %v751 = vunpack.c.l.b16 %v711
    %v752 = vunpack.c.l.b16 %v712
    %v753 = vunpack.c.l.b16 %v713
    %v754 = vunpack.c.l.b16 %v714
    %v755 = vunpack.c.l.b16 %v715
    %v756 = vunpack.c.l.b16 %v716
    %v757 = vunpack.c.l.b16 %v717
    %v758 = vpack.c.b16 %v743, %v742
    %v759 = vpack.c.b16 %v745, %v744
    %v760 = vpack.c.b16 %v747, %v746
    %v761 = vpack.c.b16 %v749, %v748
    %v762 = vpack.c.b16 %v751, %v750
    %v763 = vpack.c.b16 %v753, %v752
    %v764 = vpack.c.b16 %v755, %v754
    %v765 = vpack.c.b16 %v757, %v756
    %774 = vmatprep.subr.bf16.mxu0 0
    %775 = vmatpush1.bf16.msra.mxu0 %v758
    %776 = vmatprep.subr.bf16.mxu0 0
    %777 = vmatpush1.bf16.msra.mxu0 %v759
    %778 = vmatprep.subr.bf16.mxu0 0
    %779 = vmatpush1.bf16.msra.mxu0 %v760
    %780 = vmatprep.subr.bf16.mxu0 0
    %781 = vmatpush1.bf16.msra.mxu0 %v761
    %782 = vmatprep.subr.bf16.mxu0 0
    %783 = vmatpush1.bf16.msra.mxu0 %v762
    %784 = vmatprep.subr.bf16.mxu0 0
    %785 = vmatpush1.bf16.msra.mxu0 %v763
    %786 = vmatprep.subr.bf16.mxu0 0
    %787 = vmatpush1.bf16.msra.mxu0 %v764
    %788 = vmatprep.subr.bf16.mxu0 0
    %789 = vmatpush1.bf16.msra.mxu0 %v765
    %790 = vmatprep.subr.bf16.mxu0 0
    %791 = vmatpush1.bf16.msra.mxu0 0
    %792 = vmatprep.subr.bf16.mxu0 0
    %793 = vmatpush1.bf16.msra.mxu0 0
    %794 = vmatprep.subr.bf16.mxu0 0
    %795 = vmatpush1.bf16.msra.mxu0 0
    %796 = vmatprep.subr.bf16.mxu0 0
    %797 = vmatpush1.bf16.msra.mxu0 0
    %798 = vmatprep.subr.bf16.mxu0 0
    %799 = vmatpush1.bf16.msra.mxu0 0
    %800 = vmatprep.subr.bf16.mxu0 0
    %801 = vmatpush1.bf16.msra.mxu0 0
    %802 = vmatprep.subr.bf16.mxu0 0
    %803 = vmatpush1.bf16.msra.mxu0 0
    %804 = vmatprep.subr.bf16.mxu0 0
    %805 = vmatpush1.bf16.msra.mxu0 0
    %806 = vmatprep.mubr.bf16.mxu0 0
    %807 = vmatmul.mubr.bf16.gmra.mrb[0].mxu0 %v699
    %v808 = vpop.f32.mrb[0].mxu0
    %v809 = vadd.f32 %v724, %v808
    %v810 = vpop.f32.mrb[0].mxu0
    %v811 = vpop.f32.mrb[0].mxu0
    %v812 = vadd.f32 %v724, %v811
    %v813 = vpop.f32.mrb[0].mxu0
    %814 = vmatprep.mubr.bf16.mxu0 0
    %815 = vmatmul.mubr.bf16.gmra.mrb[0].mxu0 %v700
    %v816 = vpop.f32.mrb[0].mxu0
    %v817 = vadd.f32 %v724, %v816
    %v818 = vpop.f32.mrb[0].mxu0
    %v819 = vpop.f32.mrb[0].mxu0
    %v820 = vadd.f32 %v724, %v819
    %v821 = vpop.f32.mrb[0].mxu0
    %822 = vdwg.mxu0
    %v823 = vpack.c.bf16 %v812, %v809
    %v824 = vpack.c.bf16 %v820, %v817
    %v825 = vld [vmem:[%s1] sm:$0x1]
    %v826 = vld [vmem:[%s1 + $0x1] sm:$0x1]
    %vm827 = vcmask 122880
    %v828 = vsel %vm827, %v825, 0.0
    %829 = vadd.xlane.f32.xlu0 %v828
    %v830 = vpop.xlane.xlu0 %829
    %v831 = vpack.c.bf16 %v825, %v825
    %vm832 = vcmask 130048
    %v834 = vsel %vm832, %v831, 0
    %836 = vmatprep.subr.bf16.mxu0 0
    %837 = vmatpush1.bf16.msra.mxu0 %v823
    %838 = vmatprep.subr.bf16.mxu0 0
    %839 = vmatpush1.bf16.msra.mxu0 0
    %840 = vmatprep.subr.bf16.mxu0 0
    %841 = vmatpush1.bf16.msra.mxu0 0
    %842 = vmatprep.subr.bf16.mxu0 0
    %843 = vmatpush1.bf16.msra.mxu0 0
    %844 = vmatprep.subr.bf16.mxu0 0
    %845 = vmatpush1.bf16.msra.mxu0 0
    %846 = vmatprep.subr.bf16.mxu0 0
    %847 = vmatpush1.bf16.msra.mxu0 0
    %848 = vmatprep.subr.bf16.mxu0 0
    %849 = vmatpush1.bf16.msra.mxu0 0
    %850 = vmatprep.subr.bf16.mxu0 0
    %851 = vmatpush1.bf16.msra.mxu0 0
    %852 = vmatprep.subr.bf16.mxu0 0
    %853 = vmatpush1.bf16.msra.mxu0 0
    %854 = vmatprep.subr.bf16.mxu0 0
    %855 = vmatpush1.bf16.msra.mxu0 0
    %856 = vmatprep.subr.bf16.mxu0 0
    %857 = vmatpush1.bf16.msra.mxu0 0
    %858 = vmatprep.subr.bf16.mxu0 0
    %859 = vmatpush1.bf16.msra.mxu0 0
    %860 = vmatprep.subr.bf16.mxu0 0
    %861 = vmatpush1.bf16.msra.mxu0 0
    %862 = vmatprep.subr.bf16.mxu0 0
    %863 = vmatpush1.bf16.msra.mxu0 0
    %864 = vmatprep.subr.bf16.mxu0 0
    %865 = vmatpush1.bf16.msra.mxu0 0
    %866 = vmatprep.subr.bf16.mxu0 0
    %867 = vmatpush1.bf16.msra.mxu0 0
    %868 = vmatprep.mubr.bf16.mxu0 0
    %869 = vmatmul.mubr.bf16.gmra.mrb[0].mxu0 %v834
    %v870 = vpop.f32.mrb[0].mxu0
    %v871 = vadd.f32 0.0, %v870
    %v872 = vpop.f32.mrb[0].mxu0
    %v873 = vpop.f32.mrb[0].mxu0
    %v874 = vpop.f32.mrb[0].mxu0
    %875 = vdwg.mxu0
    %v876 = vrcp.pop %v830
    %v877 = vmul.f32 %v871, %v876
    %v878 = vsel %vm827, %v826, 0.0
    %879 = vadd.xlane.f32.xlu0 %v878
    %v880 = vpop.xlane.xlu0 %879
    %v881 = vpack.c.bf16 %v826, %v826
    %v883 = vsel %vm832, %v881, 0
    %885 = vmatprep.subr.bf16.mxu0 0
    %886 = vmatpush1.bf16.msra.mxu0 %v824
    %887 = vmatprep.subr.bf16.mxu0 0
    %888 = vmatpush1.bf16.msra.mxu0 0
    %889 = vmatprep.subr.bf16.mxu0 0
    %890 = vmatpush1.bf16.msra.mxu0 0
    %891 = vmatprep.subr.bf16.mxu0 0
    %892 = vmatpush1.bf16.msra.mxu0 0
    %893 = vmatprep.subr.bf16.mxu0 0
    %894 = vmatpush1.bf16.msra.mxu0 0
    %895 = vmatprep.subr.bf16.mxu0 0
    %896 = vmatpush1.bf16.msra.mxu0 0
    %897 = vmatprep.subr.bf16.mxu0 0
    %898 = vmatpush1.bf16.msra.mxu0 0
    %899 = vmatprep.subr.bf16.mxu0 0
    %900 = vmatpush1.bf16.msra.mxu0 0
    %901 = vmatprep.subr.bf16.mxu0 0
    %902 = vmatpush1.bf16.msra.mxu0 0
    %903 = vmatprep.subr.bf16.mxu0 0
    %904 = vmatpush1.bf16.msra.mxu0 0
    %905 = vmatprep.subr.bf16.mxu0 0
    %906 = vmatpush1.bf16.msra.mxu0 0
    %907 = vmatprep.subr.bf16.mxu0 0
    %908 = vmatpush1.bf16.msra.mxu0 0
    %909 = vmatprep.subr.bf16.mxu0 0
    %910 = vmatpush1.bf16.msra.mxu0 0
    %911 = vmatprep.subr.bf16.mxu0 0
    %912 = vmatpush1.bf16.msra.mxu0 0
    %913 = vmatprep.subr.bf16.mxu0 0
    %914 = vmatpush1.bf16.msra.mxu0 0
    %915 = vmatprep.subr.bf16.mxu0 0
    %916 = vmatpush1.bf16.msra.mxu0 0
    %917 = vmatprep.mubr.bf16.mxu0 0
    %918 = vmatmul.mubr.bf16.gmra.mrb[0].mxu0 %v883
    %v919 = vpop.f32.mrb[0].mxu0
    %v920 = vadd.f32 0.0, %v919
    %v921 = vpop.f32.mrb[0].mxu0
    %v922 = vpop.f32.mrb[0].mxu0
    %v923 = vpop.f32.mrb[0].mxu0
    %924 = vdwg.mxu0
    %v925 = vrcp.pop %v880
    %v926 = vmul.f32 %v920, %v925
    %v928 = vrot.slane %v926, 7
    %vm930 = vcmask 1040384
    %v931 = vsel %vm930, %v877, %v928
    %v932 = vpack.c.bf16 %v931, %v931
    %v933 = vld [vmem:[%s5] sm:$0xf]
    %v934 = vld [vmem:[%s5 + $0x4] sm:$0xf]
    %v935 = vld [vmem:[%s5 + $0x8] sm:$0xf]
    %v936 = vld [vmem:[%s5 + $0xc] sm:$0xf]
    %v937 = vld [vmem:[%s5 + $0x10] sm:$0xf]
    %v938 = vld [vmem:[%s5 + $0x14] sm:$0xf]
    %v939 = vld [vmem:[%s5 + $0x18] sm:$0xf]
    %v940 = vld [vmem:[%s5 + $0x1c] sm:$0xf]
    %v941 = vld [vmem:[%s5 + $0x20] sm:$0xf]
    %v942 = vld [vmem:[%s5 + $0x24] sm:$0xf]
    %v943 = vld [vmem:[%s5 + $0x28] sm:$0xf]
    %v944 = vld [vmem:[%s5 + $0x2c] sm:$0xf]
    %v945 = vld [vmem:[%s5 + $0x30] sm:$0xf]
    %v946 = vld [vmem:[%s5 + $0x34] sm:$0xf]
    %v947 = vld [vmem:[%s5 + $0x38] sm:$0xf]
    %v948 = vld [vmem:[%s5 + $0x3c] sm:$0xf]
    %v965 = vunpack.c.l.b16 %v933
    %v966 = vunpack.c.l.b16 %v934
    %v967 = vunpack.c.l.b16 %v935
    %v968 = vunpack.c.l.b16 %v936
    %v969 = vunpack.c.l.b16 %v937
    %v970 = vunpack.c.l.b16 %v938
    %v971 = vunpack.c.l.b16 %v939
    %v972 = vunpack.c.l.b16 %v940
    %v973 = vunpack.c.l.b16 %v941
    %v974 = vunpack.c.l.b16 %v942
    %v975 = vunpack.c.l.b16 %v943
    %v976 = vunpack.c.l.b16 %v944
    %v977 = vunpack.c.l.b16 %v945
    %v978 = vunpack.c.l.b16 %v946
    %v979 = vunpack.c.l.b16 %v947
    %v980 = vunpack.c.l.b16 %v948
    %v981 = vpack.c.b16 %v966, %v965
    %v982 = vpack.c.b16 %v968, %v967
    %v983 = vpack.c.b16 %v970, %v969
    %v984 = vpack.c.b16 %v972, %v971
    %v985 = vpack.c.b16 %v974, %v973
    %v986 = vpack.c.b16 %v976, %v975
    %v987 = vpack.c.b16 %v978, %v977
    %v988 = vpack.c.b16 %v980, %v979
    %997 = vmatprep.subr.bf16.mxu0 0
    %998 = vmatpush1.bf16.msra.mxu0 %v981
    %999 = vmatprep.subr.bf16.mxu0 0
    %1000 = vmatpush1.bf16.msra.mxu0 %v982
    %1001 = vmatprep.subr.bf16.mxu0 0
    %1002 = vmatpush1.bf16.msra.mxu0 %v983
    %1003 = vmatprep.subr.bf16.mxu0 0
    %1004 = vmatpush1.bf16.msra.mxu0 %v984
    %1005 = vmatprep.subr.bf16.mxu0 0
    %1006 = vmatpush1.bf16.msra.mxu0 %v985
    %1007 = vmatprep.subr.bf16.mxu0 0
    %1008 = vmatpush1.bf16.msra.mxu0 %v986
    %1009 = vmatprep.subr.bf16.mxu0 0
    %1010 = vmatpush1.bf16.msra.mxu0 %v987
    %1011 = vmatprep.subr.bf16.mxu0 0
    %1012 = vmatpush1.bf16.msra.mxu0 %v988
    %1013 = vmatprep.subr.bf16.mxu0 0
    %1014 = vmatpush1.bf16.msra.mxu0 0
    %1015 = vmatprep.subr.bf16.mxu0 0
    %1016 = vmatpush1.bf16.msra.mxu0 0
    %1017 = vmatprep.subr.bf16.mxu0 0
    %1018 = vmatpush1.bf16.msra.mxu0 0
    %1019 = vmatprep.subr.bf16.mxu0 0
    %1020 = vmatpush1.bf16.msra.mxu0 0
    %1021 = vmatprep.subr.bf16.mxu0 0
    %1022 = vmatpush1.bf16.msra.mxu0 0
    %1023 = vmatprep.subr.bf16.mxu0 0
    %1024 = vmatpush1.bf16.msra.mxu0 0
    %1025 = vmatprep.subr.bf16.mxu0 0
    %1026 = vmatpush1.bf16.msra.mxu0 0
    %1027 = vmatprep.subr.bf16.mxu0 0
    %1028 = vmatpush1.bf16.msra.mxu0 0
    %1029 = vmatprep.mubr.bf16.mxu0 0
    %1030 = vmatmul.mubr.bf16.gmra.mrb[0].mxu0 %v932
    %v1031 = vpop.f32.mrb[0].mxu0
    %v1032 = vadd.f32 0.0, %v1031
    %v1033 = vpop.f32.mrb[0].mxu0
    %v1034 = vpop.f32.mrb[0].mxu0
    %v1035 = vpop.f32.mrb[0].mxu0
    %1036 = vdwg.mxu0
    %v1037 = vld [vmem:[#allocation2] sm:$0xf]
    %v1038 = vld [vmem:[#allocation2 + $0x4] sm:$0xf]
    %v1039 = vld [vmem:[#allocation2 + $0x8] sm:$0xf]
    %v1040 = vld [vmem:[#allocation2 + $0xc] sm:$0xf]
    %v1041 = vld [vmem:[#allocation2 + $0x10] sm:$0xf]
    %v1042 = vld [vmem:[#allocation2 + $0x14] sm:$0xf]
    %v1043 = vld [vmem:[#allocation2 + $0x18] sm:$0xf]
    %v1044 = vld [vmem:[#allocation2 + $0x1c] sm:$0xf]
    %v1045 = vld [vmem:[#allocation2 + $0x20] sm:$0xf]
    %v1046 = vld [vmem:[#allocation2 + $0x24] sm:$0xf]
    %v1047 = vld [vmem:[#allocation2 + $0x28] sm:$0xf]
    %v1048 = vld [vmem:[#allocation2 + $0x2c] sm:$0xf]
    %v1049 = vld [vmem:[#allocation2 + $0x30] sm:$0xf]
    %v1050 = vld [vmem:[#allocation2 + $0x34] sm:$0xf]
    %v1051 = vld [vmem:[#allocation2 + $0x38] sm:$0xf]
    %v1052 = vld [vmem:[#allocation2 + $0x3c] sm:$0xf]
    %v1053 = vld [vmem:[%s3] sm:$0x1]
    %v1055 = vlaneseq
    %v1056 = vshrl.u32 %v1055, 7
    %v1057 = vsub.s32 0, %v1056
    %v1058 = vrot.slane %v1053, %v1057
    %v1076 = vunpack.c.l.b16 %v1037
    %v1077 = vunpack.c.l.b16 %v1038
    %v1078 = vunpack.c.l.b16 %v1039
    %v1079 = vunpack.c.l.b16 %v1040
    %v1080 = vunpack.c.l.b16 %v1041
    %v1081 = vunpack.c.l.b16 %v1042
    %v1082 = vunpack.c.l.b16 %v1043
    %v1083 = vunpack.c.l.b16 %v1044
    %v1084 = vunpack.c.l.b16 %v1045
    %v1085 = vunpack.c.l.b16 %v1046
    %v1086 = vunpack.c.l.b16 %v1047
    %v1087 = vunpack.c.l.b16 %v1048
    %v1088 = vunpack.c.l.b16 %v1049
    %v1089 = vunpack.c.l.b16 %v1050
    %v1090 = vunpack.c.l.b16 %v1051
    %v1091 = vunpack.c.l.b16 %v1052
    %v1092 = vpack.c.b16 %v1077, %v1076
    %v1093 = vpack.c.b16 %v1079, %v1078
    %v1094 = vpack.c.b16 %v1081, %v1080
    %v1095 = vpack.c.b16 %v1083, %v1082
    %v1096 = vpack.c.b16 %v1085, %v1084
    %v1097 = vpack.c.b16 %v1087, %v1086
    %v1098 = vpack.c.b16 %v1089, %v1088
    %v1099 = vpack.c.b16 %v1091, %v1090
    %1108 = vmatprep.subr.bf16.mxu0 0
    %1109 = vmatpush1.bf16.msra.mxu0 %v1092
    %1110 = vmatprep.subr.bf16.mxu0 0
    %1111 = vmatpush1.bf16.msra.mxu0 %v1093
    %1112 = vmatprep.subr.bf16.mxu0 0
    %1113 = vmatpush1.bf16.msra.mxu0 %v1094
    %1114 = vmatprep.subr.bf16.mxu0 0
    %1115 = vmatpush1.bf16.msra.mxu0 %v1095
    %1116 = vmatprep.subr.bf16.mxu0 0
    %1117 = vmatpush1.bf16.msra.mxu0 %v1096
    %1118 = vmatprep.subr.bf16.mxu0 0
    %1119 = vmatpush1.bf16.msra.mxu0 %v1097
    %1120 = vmatprep.subr.bf16.mxu0 0
    %1121 = vmatpush1.bf16.msra.mxu0 %v1098
    %1122 = vmatprep.subr.bf16.mxu0 0
    %1123 = vmatpush1.bf16.msra.mxu0 %v1099
    %1124 = vmatprep.subr.bf16.mxu0 0
    %1125 = vmatpush1.bf16.msra.mxu0 0
    %1126 = vmatprep.subr.bf16.mxu0 0
    %1127 = vmatpush1.bf16.msra.mxu0 0
    %1128 = vmatprep.subr.bf16.mxu0 0
    %1129 = vmatpush1.bf16.msra.mxu0 0
    %1130 = vmatprep.subr.bf16.mxu0 0
    %1131 = vmatpush1.bf16.msra.mxu0 0
    %1132 = vmatprep.subr.bf16.mxu0 0
    %1133 = vmatpush1.bf16.msra.mxu0 0
    %1134 = vmatprep.subr.bf16.mxu0 0
    %1135 = vmatpush1.bf16.msra.mxu0 0
    %1136 = vmatprep.subr.bf16.mxu0 0
    %1137 = vmatpush1.bf16.msra.mxu0 0
    %1138 = vmatprep.subr.bf16.mxu0 0
    %1139 = vmatpush1.bf16.msra.mxu0 0
    %1140 = vmatprep.mubr.bf16.mxu0 0
    %1141 = vmatmul.mubr.bf16.gmra.mrb[0].mxu0 %v90
    %v1142 = vpop.f32.mrb[0].mxu0
    %v1143 = vadd.f32 %v1058, %v1142
    %v1144 = vpop.f32.mrb[0].mxu0
    %v1145 = vpop.f32.mrb[0].mxu0
    %v1146 = vadd.f32 %v1058, %v1145
    %v1147 = vpop.f32.mrb[0].mxu0
    %1148 = vmatprep.mubr.bf16.mxu0 0
    %1149 = vmatmul.mubr.bf16.gmra.mrb[0].mxu0 %v91
    %v1150 = vpop.f32.mrb[0].mxu0
    %v1151 = vadd.f32 %v1058, %v1150
    %v1152 = vpop.f32.mrb[0].mxu0
    %v1153 = vpop.f32.mrb[0].mxu0
    %v1154 = vadd.f32 %v1058, %v1153
    %v1155 = vpop.f32.mrb[0].mxu0
    %1156 = vdwg.mxu0
    %v1157 = vmax.f32 %v1143, 0.0
    %v1158 = vmax.f32 %v1146, 0.0
    %v1159 = vmax.f32 %v1151, 0.0
    %v1160 = vmax.f32 %v1154, 0.0
    %v1161 = vpack.c.bf16 %v1158, %v1157
    %v1162 = vpack.c.bf16 %v1160, %v1159
    %s1163 = scalar_lea.vmem [#allocation2], 64
    %v1164 = vld [vmem:[%s1163] sm:$0xf]
    %v1165 = vld [vmem:[%s1163 + $0x4] sm:$0xf]
    %v1166 = vld [vmem:[%s1163 + $0x8] sm:$0xf]
    %v1167 = vld [vmem:[%s1163 + $0xc] sm:$0xf]
    %v1168 = vld [vmem:[%s1163 + $0x10] sm:$0xf]
    %v1169 = vld [vmem:[%s1163 + $0x14] sm:$0xf]
    %v1170 = vld [vmem:[%s1163 + $0x18] sm:$0xf]
    %v1171 = vld [vmem:[%s1163 + $0x1c] sm:$0xf]
    %v1172 = vld [vmem:[%s1163 + $0x20] sm:$0xf]
    %v1173 = vld [vmem:[%s1163 + $0x24] sm:$0xf]
    %v1174 = vld [vmem:[%s1163 + $0x28] sm:$0xf]
    %v1175 = vld [vmem:[%s1163 + $0x2c] sm:$0xf]
    %v1176 = vld [vmem:[%s1163 + $0x30] sm:$0xf]
    %v1177 = vld [vmem:[%s1163 + $0x34] sm:$0xf]
    %v1178 = vld [vmem:[%s1163 + $0x38] sm:$0xf]
    %v1179 = vld [vmem:[%s1163 + $0x3c] sm:$0xf]
    %s1180 = scalar_lea.vmem %s3, 1
    %v1181 = vld [vmem:[%s1180] sm:$0x1]
    %v1183 = vlaneseq
    %v1184 = vshrl.u32 %v1183, 7
    %v1185 = vsub.s32 0, %v1184
    %v1186 = vrot.slane %v1181, %v1185
    %v1204 = vunpack.c.l.b16 %v1164
    %v1205 = vunpack.c.l.b16 %v1165
    %v1206 = vunpack.c.l.b16 %v1166
    %v1207 = vunpack.c.l.b16 %v1167
    %v1208 = vunpack.c.l.b16 %v1168
    %v1209 = vunpack.c.l.b16 %v1169
    %v1210 = vunpack.c.l.b16 %v1170
    %v1211 = vunpack.c.l.b16 %v1171
    %v1212 = vunpack.c.l.b16 %v1172
    %v1213 = vunpack.c.l.b16 %v1173
    %v1214 = vunpack.c.l.b16 %v1174
    %v1215 = vunpack.c.l.b16 %v1175
    %v1216 = vunpack.c.l.b16 %v1176
    %v1217 = vunpack.c.l.b16 %v1177
    %v1218 = vunpack.c.l.b16 %v1178
    %v1219 = vunpack.c.l.b16 %v1179
    %v1220 = vpack.c.b16 %v1205, %v1204
    %v1221 = vpack.c.b16 %v1207, %v1206
    %v1222 = vpack.c.b16 %v1209, %v1208
    %v1223 = vpack.c.b16 %v1211, %v1210
    %v1224 = vpack.c.b16 %v1213, %v1212
    %v1225 = vpack.c.b16 %v1215, %v1214
    %v1226 = vpack.c.b16 %v1217, %v1216
    %v1227 = vpack.c.b16 %v1219, %v1218
    %1236 = vmatprep.subr.bf16.mxu0 0
    %1237 = vmatpush1.bf16.msra.mxu0 %v1220
    %1238 = vmatprep.subr.bf16.mxu0 0
    %1239 = vmatpush1.bf16.msra.mxu0 %v1221
    %1240 = vmatprep.subr.bf16.mxu0 0
    %1241 = vmatpush1.bf16.msra.mxu0 %v1222
    %1242 = vmatprep.subr.bf16.mxu0 0
    %1243 = vmatpush1.bf16.msra.mxu0 %v1223
    %1244 = vmatprep.subr.bf16.mxu0 0
    %1245 = vmatpush1.bf16.msra.mxu0 %v1224
    %1246 = vmatprep.subr.bf16.mxu0 0
    %1247 = vmatpush1.bf16.msra.mxu0 %v1225
    %1248 = vmatprep.subr.bf16.mxu0 0
    %1249 = vmatpush1.bf16.msra.mxu0 %v1226
    %1250 = vmatprep.subr.bf16.mxu0 0
    %1251 = vmatpush1.bf16.msra.mxu0 %v1227
    %1252 = vmatprep.subr.bf16.mxu0 0
    %1253 = vmatpush1.bf16.msra.mxu0 0
    %1254 = vmatprep.subr.bf16.mxu0 0
    %1255 = vmatpush1.bf16.msra.mxu0 0
    %1256 = vmatprep.subr.bf16.mxu0 0
    %1257 = vmatpush1.bf16.msra.mxu0 0
    %1258 = vmatprep.subr.bf16.mxu0 0
    %1259 = vmatpush1.bf16.msra.mxu0 0
    %1260 = vmatprep.subr.bf16.mxu0 0
    %1261 = vmatpush1.bf16.msra.mxu0 0
    %1262 = vmatprep.subr.bf16.mxu0 0
    %1263 = vmatpush1.bf16.msra.mxu0 0
    %1264 = vmatprep.subr.bf16.mxu0 0
    %1265 = vmatpush1.bf16.msra.mxu0 0
    %1266 = vmatprep.subr.bf16.mxu0 0
    %1267 = vmatpush1.bf16.msra.mxu0 0
    %1268 = vmatprep.mubr.bf16.mxu0 0
    %1269 = vmatmul.mubr.bf16.gmra.mrb[0].mxu0 %v1161
    %v1270 = vpop.f32.mrb[0].mxu0
    %v1271 = vadd.f32 %v1186, %v1270
    %v1272 = vpop.f32.mrb[0].mxu0
    %v1273 = vpop.f32.mrb[0].mxu0
    %v1274 = vadd.f32 %v1186, %v1273
    %v1275 = vpop.f32.mrb[0].mxu0
    %1276 = vmatprep.mubr.bf16.mxu0 0
    %1277 = vmatmul.mubr.bf16.gmra.mrb[0].mxu0 %v1162
    %v1278 = vpop.f32.mrb[0].mxu0
    %v1279 = vadd.f32 %v1186, %v1278
    %v1280 = vpop.f32.mrb[0].mxu0
    %v1281 = vpop.f32.mrb[0].mxu0
    %v1282 = vadd.f32 %v1186, %v1281
    %v1283 = vpop.f32.mrb[0].mxu0
    %1284 = vdwg.mxu0
    %v1285 = vpack.c.bf16 %v1274, %v1271
    %v1286 = vpack.c.bf16 %v1282, %v1279
    %s1287 = scalar_lea.vmem [#allocation2], 128
    %v1288 = vld [vmem:[%s1287] sm:$0xf]
    %v1289 = vld [vmem:[%s1287 + $0x4] sm:$0xf]
    %v1290 = vld [vmem:[%s1287 + $0x8] sm:$0xf]
    %v1291 = vld [vmem:[%s1287 + $0xc] sm:$0xf]
    %v1292 = vld [vmem:[%s1287 + $0x10] sm:$0xf]
    %v1293 = vld [vmem:[%s1287 + $0x14] sm:$0xf]
    %v1294 = vld [vmem:[%s1287 + $0x18] sm:$0xf]
    %v1295 = vld [vmem:[%s1287 + $0x1c] sm:$0xf]
    %v1296 = vld [vmem:[%s1287 + $0x20] sm:$0xf]
    %v1297 = vld [vmem:[%s1287 + $0x24] sm:$0xf]
    %v1298 = vld [vmem:[%s1287 + $0x28] sm:$0xf]
    %v1299 = vld [vmem:[%s1287 + $0x2c] sm:$0xf]
    %v1300 = vld [vmem:[%s1287 + $0x30] sm:$0xf]
    %v1301 = vld [vmem:[%s1287 + $0x34] sm:$0xf]
    %v1302 = vld [vmem:[%s1287 + $0x38] sm:$0xf]
    %v1303 = vld [vmem:[%s1287 + $0x3c] sm:$0xf]
    %s1304 = scalar_lea.vmem %s3, 2
    %v1305 = vld [vmem:[%s1304] sm:$0x1]
    %v1307 = vlaneseq
    %v1308 = vshrl.u32 %v1307, 7
    %v1309 = vsub.s32 0, %v1308
    %v1310 = vrot.slane %v1305, %v1309
    %v1328 = vunpack.c.l.b16 %v1288
    %v1329 = vunpack.c.l.b16 %v1289
    %v1330 = vunpack.c.l.b16 %v1290
    %v1331 = vunpack.c.l.b16 %v1291
    %v1332 = vunpack.c.l.b16 %v1292
    %v1333 = vunpack.c.l.b16 %v1293
    %v1334 = vunpack.c.l.b16 %v1294
    %v1335 = vunpack.c.l.b16 %v1295
    %v1336 = vunpack.c.l.b16 %v1296
    %v1337 = vunpack.c.l.b16 %v1297
    %v1338 = vunpack.c.l.b16 %v1298
    %v1339 = vunpack.c.l.b16 %v1299
    %v1340 = vunpack.c.l.b16 %v1300
    %v1341 = vunpack.c.l.b16 %v1301
    %v1342 = vunpack.c.l.b16 %v1302
    %v1343 = vunpack.c.l.b16 %v1303
    %v1344 = vpack.c.b16 %v1329, %v1328
    %v1345 = vpack.c.b16 %v1331, %v1330
    %v1346 = vpack.c.b16 %v1333, %v1332
    %v1347 = vpack.c.b16 %v1335, %v1334
    %v1348 = vpack.c.b16 %v1337, %v1336
    %v1349 = vpack.c.b16 %v1339, %v1338
    %v1350 = vpack.c.b16 %v1341, %v1340
    %v1351 = vpack.c.b16 %v1343, %v1342
    %1360 = vmatprep.subr.bf16.mxu0 0
    %1361 = vmatpush1.bf16.msra.mxu0 %v1344
    %1362 = vmatprep.subr.bf16.mxu0 0
    %1363 = vmatpush1.bf16.msra.mxu0 %v1345
    %1364 = vmatprep.subr.bf16.mxu0 0
    %1365 = vmatpush1.bf16.msra.mxu0 %v1346
    %1366 = vmatprep.subr.bf16.mxu0 0
    %1367 = vmatpush1.bf16.msra.mxu0 %v1347
    %1368 = vmatprep.subr.bf16.mxu0 0
    %1369 = vmatpush1.bf16.msra.mxu0 %v1348
    %1370 = vmatprep.subr.bf16.mxu0 0
    %1371 = vmatpush1.bf16.msra.mxu0 %v1349
    %1372 = vmatprep.subr.bf16.mxu0 0
    %1373 = vmatpush1.bf16.msra.mxu0 %v1350
    %1374 = vmatprep.subr.bf16.mxu0 0
    %1375 = vmatpush1.bf16.msra.mxu0 %v1351
    %1376 = vmatprep.subr.bf16.mxu0 0
    %1377 = vmatpush1.bf16.msra.mxu0 0
    %1378 = vmatprep.subr.bf16.mxu0 0
    %1379 = vmatpush1.bf16.msra.mxu0 0
    %1380 = vmatprep.subr.bf16.mxu0 0
    %1381 = vmatpush1.bf16.msra.mxu0 0
    %1382 = vmatprep.subr.bf16.mxu0 0
    %1383 = vmatpush1.bf16.msra.mxu0 0
    %1384 = vmatprep.subr.bf16.mxu0 0
    %1385 = vmatpush1.bf16.msra.mxu0 0
    %1386 = vmatprep.subr.bf16.mxu0 0
    %1387 = vmatpush1.bf16.msra.mxu0 0
    %1388 = vmatprep.subr.bf16.mxu0 0
    %1389 = vmatpush1.bf16.msra.mxu0 0
    %1390 = vmatprep.subr.bf16.mxu0 0
    %1391 = vmatpush1.bf16.msra.mxu0 0
    %1392 = vmatprep.mubr.bf16.mxu0 0
    %1393 = vmatmul.mubr.bf16.gmra.mrb[0].mxu0 %v1285
    %v1394 = vpop.f32.mrb[0].mxu0
    %v1395 = vadd.f32 %v1310, %v1394
    %v1396 = vpop.f32.mrb[0].mxu0
    %v1397 = vpop.f32.mrb[0].mxu0
    %v1398 = vadd.f32 %v1310, %v1397
    %v1399 = vpop.f32.mrb[0].mxu0
    %1400 = vmatprep.mubr.bf16.mxu0 0
    %1401 = vmatmul.mubr.bf16.gmra.mrb[0].mxu0 %v1286
    %v1402 = vpop.f32.mrb[0].mxu0
    %v1403 = vadd.f32 %v1310, %v1402
    %v1404 = vpop.f32.mrb[0].mxu0
    %v1405 = vpop.f32.mrb[0].mxu0
    %v1406 = vadd.f32 %v1310, %v1405
    %v1407 = vpop.f32.mrb[0].mxu0
    %1408 = vdwg.mxu0
    %v1409 = vmax.f32 %v1395, 0.0
    %v1410 = vmax.f32 %v1398, 0.0
    %v1411 = vmax.f32 %v1403, 0.0
    %v1412 = vmax.f32 %v1406, 0.0
    %v1413 = vpack.c.bf16 %v1410, %v1409
    %v1414 = vpack.c.bf16 %v1412, %v1411
    %s1415 = scalar_lea.vmem [#allocation2], 192
    %v1416 = vld [vmem:[%s1415] sm:$0xf]
    %v1417 = vld [vmem:[%s1415 + $0x4] sm:$0xf]
    %v1418 = vld [vmem:[%s1415 + $0x8] sm:$0xf]
    %v1419 = vld [vmem:[%s1415 + $0xc] sm:$0xf]
    %v1420 = vld [vmem:[%s1415 + $0x10] sm:$0xf]
    %v1421 = vld [vmem:[%s1415 + $0x14] sm:$0xf]
    %v1422 = vld [vmem:[%s1415 + $0x18] sm:$0xf]
    %v1423 = vld [vmem:[%s1415 + $0x1c] sm:$0xf]
    %v1424 = vld [vmem:[%s1415 + $0x20] sm:$0xf]
    %v1425 = vld [vmem:[%s1415 + $0x24] sm:$0xf]
    %v1426 = vld [vmem:[%s1415 + $0x28] sm:$0xf]
    %v1427 = vld [vmem:[%s1415 + $0x2c] sm:$0xf]
    %v1428 = vld [vmem:[%s1415 + $0x30] sm:$0xf]
    %v1429 = vld [vmem:[%s1415 + $0x34] sm:$0xf]
    %v1430 = vld [vmem:[%s1415 + $0x38] sm:$0xf]
    %v1431 = vld [vmem:[%s1415 + $0x3c] sm:$0xf]
    %s1432 = scalar_lea.vmem %s3, 3
    %v1433 = vld [vmem:[%s1432] sm:$0x1]
    %v1435 = vlaneseq
    %v1436 = vshrl.u32 %v1435, 7
    %v1437 = vsub.s32 0, %v1436
    %v1438 = vrot.slane %v1433, %v1437
    %v1456 = vunpack.c.l.b16 %v1416
    %v1457 = vunpack.c.l.b16 %v1417
    %v1458 = vunpack.c.l.b16 %v1418
    %v1459 = vunpack.c.l.b16 %v1419
    %v1460 = vunpack.c.l.b16 %v1420
    %v1461 = vunpack.c.l.b16 %v1421
    %v1462 = vunpack.c.l.b16 %v1422
    %v1463 = vunpack.c.l.b16 %v1423
    %v1464 = vunpack.c.l.b16 %v1424
    %v1465 = vunpack.c.l.b16 %v1425
    %v1466 = vunpack.c.l.b16 %v1426
    %v1467 = vunpack.c.l.b16 %v1427
    %v1468 = vunpack.c.l.b16 %v1428
    %v1469 = vunpack.c.l.b16 %v1429
    %v1470 = vunpack.c.l.b16 %v1430
    %v1471 = vunpack.c.l.b16 %v1431
    %v1472 = vpack.c.b16 %v1457, %v1456
    %v1473 = vpack.c.b16 %v1459, %v1458
    %v1474 = vpack.c.b16 %v1461, %v1460
    %v1475 = vpack.c.b16 %v1463, %v1462
    %v1476 = vpack.c.b16 %v1465, %v1464
    %v1477 = vpack.c.b16 %v1467, %v1466
    %v1478 = vpack.c.b16 %v1469, %v1468
    %v1479 = vpack.c.b16 %v1471, %v1470
    %1488 = vmatprep.subr.bf16.mxu0 0
    %1489 = vmatpush1.bf16.msra.mxu0 %v1472
    %1490 = vmatprep.subr.bf16.mxu0 0
    %1491 = vmatpush1.bf16.msra.mxu0 %v1473
    %1492 = vmatprep.subr.bf16.mxu0 0
    %1493 = vmatpush1.bf16.msra.mxu0 %v1474
    %1494 = vmatprep.subr.bf16.mxu0 0
    %1495 = vmatpush1.bf16.msra.mxu0 %v1475
    %1496 = vmatprep.subr.bf16.mxu0 0
    %1497 = vmatpush1.bf16.msra.mxu0 %v1476
    %1498 = vmatprep.subr.bf16.mxu0 0
    %1499 = vmatpush1.bf16.msra.mxu0 %v1477
    %1500 = vmatprep.subr.bf16.mxu0 0
    %1501 = vmatpush1.bf16.msra.mxu0 %v1478
    %1502 = vmatprep.subr.bf16.mxu0 0
    %1503 = vmatpush1.bf16.msra.mxu0 %v1479
    %1504 = vmatprep.subr.bf16.mxu0 0
    %1505 = vmatpush1.bf16.msra.mxu0 0
    %1506 = vmatprep.subr.bf16.mxu0 0
    %1507 = vmatpush1.bf16.msra.mxu0 0
    %1508 = vmatprep.subr.bf16.mxu0 0
    %1509 = vmatpush1.bf16.msra.mxu0 0
    %1510 = vmatprep.subr.bf16.mxu0 0
    %1511 = vmatpush1.bf16.msra.mxu0 0
    %1512 = vmatprep.subr.bf16.mxu0 0
    %1513 = vmatpush1.bf16.msra.mxu0 0
    %1514 = vmatprep.subr.bf16.mxu0 0
    %1515 = vmatpush1.bf16.msra.mxu0 0
    %1516 = vmatprep.subr.bf16.mxu0 0
    %1517 = vmatpush1.bf16.msra.mxu0 0
    %1518 = vmatprep.subr.bf16.mxu0 0
    %1519 = vmatpush1.bf16.msra.mxu0 0
    %1520 = vmatprep.mubr.bf16.mxu0 0
    %1521 = vmatmul.mubr.bf16.gmra.mrb[0].mxu0 %v1413
    %v1522 = vpop.f32.mrb[0].mxu0
    %v1523 = vadd.f32 %v1438, %v1522
    %v1524 = vpop.f32.mrb[0].mxu0
    %v1525 = vpop.f32.mrb[0].mxu0
    %v1526 = vadd.f32 %v1438, %v1525
    %v1527 = vpop.f32.mrb[0].mxu0
    %1528 = vmatprep.mubr.bf16.mxu0 0
    %1529 = vmatmul.mubr.bf16.gmra.mrb[0].mxu0 %v1414
    %v1530 = vpop.f32.mrb[0].mxu0
    %v1531 = vadd.f32 %v1438, %v1530
    %v1532 = vpop.f32.mrb[0].mxu0
    %v1533 = vpop.f32.mrb[0].mxu0
    %v1534 = vadd.f32 %v1438, %v1533
    %v1535 = vpop.f32.mrb[0].mxu0
    %1536 = vdwg.mxu0
    %v1537 = vpack.c.bf16 %v1526, %v1523
    %v1538 = vpack.c.bf16 %v1534, %v1531
    %s1539 = scalar_lea.vmem [#allocation2], 256
    %v1540 = vld [vmem:[%s1539] sm:$0xf]
    %v1541 = vld [vmem:[%s1539 + $0x4] sm:$0xf]
    %v1542 = vld [vmem:[%s1539 + $0x8] sm:$0xf]
    %v1543 = vld [vmem:[%s1539 + $0xc] sm:$0xf]
    %v1544 = vld [vmem:[%s1539 + $0x10] sm:$0xf]
    %v1545 = vld [vmem:[%s1539 + $0x14] sm:$0xf]
    %v1546 = vld [vmem:[%s1539 + $0x18] sm:$0xf]
    %v1547 = vld [vmem:[%s1539 + $0x1c] sm:$0xf]
    %v1548 = vld [vmem:[%s1539 + $0x20] sm:$0xf]
    %v1549 = vld [vmem:[%s1539 + $0x24] sm:$0xf]
    %v1550 = vld [vmem:[%s1539 + $0x28] sm:$0xf]
    %v1551 = vld [vmem:[%s1539 + $0x2c] sm:$0xf]
    %v1552 = vld [vmem:[%s1539 + $0x30] sm:$0xf]
    %v1553 = vld [vmem:[%s1539 + $0x34] sm:$0xf]
    %v1554 = vld [vmem:[%s1539 + $0x38] sm:$0xf]
    %v1555 = vld [vmem:[%s1539 + $0x3c] sm:$0xf]
    %s1556 = scalar_lea.vmem %s3, 4
    %v1557 = vld [vmem:[%s1556] sm:$0x1]
    %v1559 = vlaneseq
    %v1560 = vshrl.u32 %v1559, 7
    %v1561 = vsub.s32 0, %v1560
    %v1562 = vrot.slane %v1557, %v1561
    %v1580 = vunpack.c.l.b16 %v1540
    %v1581 = vunpack.c.l.b16 %v1541
    %v1582 = vunpack.c.l.b16 %v1542
    %v1583 = vunpack.c.l.b16 %v1543
    %v1584 = vunpack.c.l.b16 %v1544
    %v1585 = vunpack.c.l.b16 %v1545
    %v1586 = vunpack.c.l.b16 %v1546
    %v1587 = vunpack.c.l.b16 %v1547
    %v1588 = vunpack.c.l.b16 %v1548
    %v1589 = vunpack.c.l.b16 %v1549
    %v1590 = vunpack.c.l.b16 %v1550
    %v1591 = vunpack.c.l.b16 %v1551
    %v1592 = vunpack.c.l.b16 %v1552
    %v1593 = vunpack.c.l.b16 %v1553
    %v1594 = vunpack.c.l.b16 %v1554
    %v1595 = vunpack.c.l.b16 %v1555
    %v1596 = vpack.c.b16 %v1581, %v1580
    %v1597 = vpack.c.b16 %v1583, %v1582
    %v1598 = vpack.c.b16 %v1585, %v1584
    %v1599 = vpack.c.b16 %v1587, %v1586
    %v1600 = vpack.c.b16 %v1589, %v1588
    %v1601 = vpack.c.b16 %v1591, %v1590
    %v1602 = vpack.c.b16 %v1593, %v1592
    %v1603 = vpack.c.b16 %v1595, %v1594
    %1612 = vmatprep.subr.bf16.mxu0 0
    %1613 = vmatpush1.bf16.msra.mxu0 %v1596
    %1614 = vmatprep.subr.bf16.mxu0 0
    %1615 = vmatpush1.bf16.msra.mxu0 %v1597
    %1616 = vmatprep.subr.bf16.mxu0 0
    %1617 = vmatpush1.bf16.msra.mxu0 %v1598
    %1618 = vmatprep.subr.bf16.mxu0 0
    %1619 = vmatpush1.bf16.msra.mxu0 %v1599
    %1620 = vmatprep.subr.bf16.mxu0 0
    %1621 = vmatpush1.bf16.msra.mxu0 %v1600
    %1622 = vmatprep.subr.bf16.mxu0 0
    %1623 = vmatpush1.bf16.msra.mxu0 %v1601
    %1624 = vmatprep.subr.bf16.mxu0 0
    %1625 = vmatpush1.bf16.msra.mxu0 %v1602
    %1626 = vmatprep.subr.bf16.mxu0 0
    %1627 = vmatpush1.bf16.msra.mxu0 %v1603
    %1628 = vmatprep.subr.bf16.mxu0 0
    %1629 = vmatpush1.bf16.msra.mxu0 0
    %1630 = vmatprep.subr.bf16.mxu0 0
    %1631 = vmatpush1.bf16.msra.mxu0 0
    %1632 = vmatprep.subr.bf16.mxu0 0
    %1633 = vmatpush1.bf16.msra.mxu0 0
    %1634 = vmatprep.subr.bf16.mxu0 0
    %1635 = vmatpush1.bf16.msra.mxu0 0
    %1636 = vmatprep.subr.bf16.mxu0 0
    %1637 = vmatpush1.bf16.msra.mxu0 0
    %1638 = vmatprep.subr.bf16.mxu0 0
    %1639 = vmatpush1.bf16.msra.mxu0 0
    %1640 = vmatprep.subr.bf16.mxu0 0
    %1641 = vmatpush1.bf16.msra.mxu0 0
    %1642 = vmatprep.subr.bf16.mxu0 0
    %1643 = vmatpush1.bf16.msra.mxu0 0
    %1644 = vmatprep.mubr.bf16.mxu0 0
    %1645 = vmatmul.mubr.bf16.gmra.mrb[0].mxu0 %v1537
    %v1646 = vpop.f32.mrb[0].mxu0
    %v1647 = vadd.f32 %v1562, %v1646
    %v1648 = vpop.f32.mrb[0].mxu0
    %v1649 = vpop.f32.mrb[0].mxu0
    %v1650 = vadd.f32 %v1562, %v1649
    %v1651 = vpop.f32.mrb[0].mxu0
    %1652 = vmatprep.mubr.bf16.mxu0 0
    %1653 = vmatmul.mubr.bf16.gmra.mrb[0].mxu0 %v1538
    %v1654 = vpop.f32.mrb[0].mxu0
    %v1655 = vadd.f32 %v1562, %v1654
    %v1656 = vpop.f32.mrb[0].mxu0
    %v1657 = vpop.f32.mrb[0].mxu0
    %v1658 = vadd.f32 %v1562, %v1657
    %v1659 = vpop.f32.mrb[0].mxu0
    %1660 = vdwg.mxu0
    %v1661 = vmax.f32 %v1647, 0.0
    %v1662 = vmax.f32 %v1650, 0.0
    %v1663 = vmax.f32 %v1655, 0.0
    %v1664 = vmax.f32 %v1658, 0.0
    %v1665 = vpack.c.bf16 %v1662, %v1661
    %v1666 = vpack.c.bf16 %v1664, %v1663
    %s1667 = scalar_lea.vmem [#allocation2], 320
    %v1668 = vld [vmem:[%s1667] sm:$0xf]
    %v1669 = vld [vmem:[%s1667 + $0x4] sm:$0xf]
    %v1670 = vld [vmem:[%s1667 + $0x8] sm:$0xf]
    %v1671 = vld [vmem:[%s1667 + $0xc] sm:$0xf]
    %v1672 = vld [vmem:[%s1667 + $0x10] sm:$0xf]
    %v1673 = vld [vmem:[%s1667 + $0x14] sm:$0xf]
    %v1674 = vld [vmem:[%s1667 + $0x18] sm:$0xf]
    %v1675 = vld [vmem:[%s1667 + $0x1c] sm:$0xf]
    %v1676 = vld [vmem:[%s1667 + $0x20] sm:$0xf]
    %v1677 = vld [vmem:[%s1667 + $0x24] sm:$0xf]
    %v1678 = vld [vmem:[%s1667 + $0x28] sm:$0xf]
    %v1679 = vld [vmem:[%s1667 + $0x2c] sm:$0xf]
    %v1680 = vld [vmem:[%s1667 + $0x30] sm:$0xf]
    %v1681 = vld [vmem:[%s1667 + $0x34] sm:$0xf]
    %v1682 = vld [vmem:[%s1667 + $0x38] sm:$0xf]
    %v1683 = vld [vmem:[%s1667 + $0x3c] sm:$0xf]
    %s1684 = scalar_lea.vmem %s3, 5
    %v1685 = vld [vmem:[%s1684] sm:$0x1]
    %v1687 = vlaneseq
    %v1688 = vshrl.u32 %v1687, 7
    %v1689 = vsub.s32 0, %v1688
    %v1690 = vrot.slane %v1685, %v1689
    %v1708 = vunpack.c.l.b16 %v1668
    %v1709 = vunpack.c.l.b16 %v1669
    %v1710 = vunpack.c.l.b16 %v1670
    %v1711 = vunpack.c.l.b16 %v1671
    %v1712 = vunpack.c.l.b16 %v1672
    %v1713 = vunpack.c.l.b16 %v1673
    %v1714 = vunpack.c.l.b16 %v1674
    %v1715 = vunpack.c.l.b16 %v1675
    %v1716 = vunpack.c.l.b16 %v1676
    %v1717 = vunpack.c.l.b16 %v1677
    %v1718 = vunpack.c.l.b16 %v1678
    %v1719 = vunpack.c.l.b16 %v1679
    %v1720 = vunpack.c.l.b16 %v1680
    %v1721 = vunpack.c.l.b16 %v1681
    %v1722 = vunpack.c.l.b16 %v1682
    %v1723 = vunpack.c.l.b16 %v1683
    %v1724 = vpack.c.b16 %v1709, %v1708
    %v1725 = vpack.c.b16 %v1711, %v1710
    %v1726 = vpack.c.b16 %v1713, %v1712
    %v1727 = vpack.c.b16 %v1715, %v1714
    %v1728 = vpack.c.b16 %v1717, %v1716
    %v1729 = vpack.c.b16 %v1719, %v1718
    %v1730 = vpack.c.b16 %v1721, %v1720
    %v1731 = vpack.c.b16 %v1723, %v1722
    %1740 = vmatprep.subr.bf16.mxu0 0
    %1741 = vmatpush1.bf16.msra.mxu0 %v1724
    %1742 = vmatprep.subr.bf16.mxu0 0
    %1743 = vmatpush1.bf16.msra.mxu0 %v1725
    %1744 = vmatprep.subr.bf16.mxu0 0
    %1745 = vmatpush1.bf16.msra.mxu0 %v1726
    %1746 = vmatprep.subr.bf16.mxu0 0
    %1747 = vmatpush1.bf16.msra.mxu0 %v1727
    %1748 = vmatprep.subr.bf16.mxu0 0
    %1749 = vmatpush1.bf16.msra.mxu0 %v1728
    %1750 = vmatprep.subr.bf16.mxu0 0
    %1751 = vmatpush1.bf16.msra.mxu0 %v1729
    %1752 = vmatprep.subr.bf16.mxu0 0
    %1753 = vmatpush1.bf16.msra.mxu0 %v1730
    %1754 = vmatprep.subr.bf16.mxu0 0
    %1755 = vmatpush1.bf16.msra.mxu0 %v1731
    %1756 = vmatprep.subr.bf16.mxu0 0
    %1757 = vmatpush1.bf16.msra.mxu0 0
    %1758 = vmatprep.subr.bf16.mxu0 0
    %1759 = vmatpush1.bf16.msra.mxu0 0
    %1760 = vmatprep.subr.bf16.mxu0 0
    %1761 = vmatpush1.bf16.msra.mxu0 0
    %1762 = vmatprep.subr.bf16.mxu0 0
    %1763 = vmatpush1.bf16.msra.mxu0 0
    %1764 = vmatprep.subr.bf16.mxu0 0
    %1765 = vmatpush1.bf16.msra.mxu0 0
    %1766 = vmatprep.subr.bf16.mxu0 0
    %1767 = vmatpush1.bf16.msra.mxu0 0
    %1768 = vmatprep.subr.bf16.mxu0 0
    %1769 = vmatpush1.bf16.msra.mxu0 0
    %1770 = vmatprep.subr.bf16.mxu0 0
    %1771 = vmatpush1.bf16.msra.mxu0 0
    %1772 = vmatprep.mubr.bf16.mxu0 0
    %1773 = vmatmul.mubr.bf16.gmra.mrb[0].mxu0 %v1665
    %v1774 = vpop.f32.mrb[0].mxu0
    %v1775 = vadd.f32 %v1690, %v1774
    %v1776 = vpop.f32.mrb[0].mxu0
    %v1777 = vpop.f32.mrb[0].mxu0
    %v1778 = vadd.f32 %v1690, %v1777
    %v1779 = vpop.f32.mrb[0].mxu0
    %1780 = vmatprep.mubr.bf16.mxu0 0
    %1781 = vmatmul.mubr.bf16.gmra.mrb[0].mxu0 %v1666
    %v1782 = vpop.f32.mrb[0].mxu0
    %v1783 = vadd.f32 %v1690, %v1782
    %v1784 = vpop.f32.mrb[0].mxu0
    %v1785 = vpop.f32.mrb[0].mxu0
    %v1786 = vadd.f32 %v1690, %v1785
    %v1787 = vpop.f32.mrb[0].mxu0
    %1788 = vdwg.mxu0
    %v1789 = vpack.c.bf16 %v1778, %v1775
    %v1790 = vpack.c.bf16 %v1786, %v1783
    %v1791 = vld [vmem:[%s4] sm:$0xf]
    %v1792 = vld [vmem:[%s4 + $0x4] sm:$0xf]
    %v1793 = vld [vmem:[%s4 + $0x8] sm:$0xf]
    %v1794 = vld [vmem:[%s4 + $0xc] sm:$0xf]
    %v1795 = vld [vmem:[%s4 + $0x10] sm:$0xf]
    %v1796 = vld [vmem:[%s4 + $0x14] sm:$0xf]
    %v1797 = vld [vmem:[%s4 + $0x18] sm:$0xf]
    %v1798 = vld [vmem:[%s4 + $0x1c] sm:$0xf]
    %v1799 = vld [vmem:[%s4 + $0x20] sm:$0xf]
    %v1800 = vld [vmem:[%s4 + $0x24] sm:$0xf]
    %v1801 = vld [vmem:[%s4 + $0x28] sm:$0xf]
    %v1802 = vld [vmem:[%s4 + $0x2c] sm:$0xf]
    %v1803 = vld [vmem:[%s4 + $0x30] sm:$0xf]
    %v1804 = vld [vmem:[%s4 + $0x34] sm:$0xf]
    %v1805 = vld [vmem:[%s4 + $0x38] sm:$0xf]
    %v1806 = vld [vmem:[%s4 + $0x3c] sm:$0xf]
    %v1823 = vunpack.c.l.b16 %v1791
    %v1824 = vunpack.c.l.b16 %v1792
    %v1825 = vunpack.c.l.b16 %v1793
    %v1826 = vunpack.c.l.b16 %v1794
    %v1827 = vunpack.c.l.b16 %v1795
    %v1828 = vunpack.c.l.b16 %v1796
    %v1829 = vunpack.c.l.b16 %v1797
    %v1830 = vunpack.c.l.b16 %v1798
    %v1831 = vunpack.c.l.b16 %v1799
    %v1832 = vunpack.c.l.b16 %v1800
    %v1833 = vunpack.c.l.b16 %v1801
    %v1834 = vunpack.c.l.b16 %v1802
    %v1835 = vunpack.c.l.b16 %v1803
    %v1836 = vunpack.c.l.b16 %v1804
    %v1837 = vunpack.c.l.b16 %v1805
    %v1838 = vunpack.c.l.b16 %v1806
    %v1839 = vpack.c.b16 %v1824, %v1823
    %v1840 = vpack.c.b16 %v1826, %v1825
    %v1841 = vpack.c.b16 %v1828, %v1827
    %v1842 = vpack.c.b16 %v1830, %v1829
    %v1843 = vpack.c.b16 %v1832, %v1831
    %v1844 = vpack.c.b16 %v1834, %v1833
    %v1845 = vpack.c.b16 %v1836, %v1835
    %v1846 = vpack.c.b16 %v1838, %v1837
    %1855 = vmatprep.subr.bf16.mxu0 0
    %1856 = vmatpush1.bf16.msra.mxu0 %v1839
    %1857 = vmatprep.subr.bf16.mxu0 0
    %1858 = vmatpush1.bf16.msra.mxu0 %v1840
    %1859 = vmatprep.subr.bf16.mxu0 0
    %1860 = vmatpush1.bf16.msra.mxu0 %v1841
    %1861 = vmatprep.subr.bf16.mxu0 0
    %1862 = vmatpush1.bf16.msra.mxu0 %v1842
    %1863 = vmatprep.subr.bf16.mxu0 0
    %1864 = vmatpush1.bf16.msra.mxu0 %v1843
    %1865 = vmatprep.subr.bf16.mxu0 0
    %1866 = vmatpush1.bf16.msra.mxu0 %v1844
    %1867 = vmatprep.subr.bf16.mxu0 0
    %1868 = vmatpush1.bf16.msra.mxu0 %v1845
    %1869 = vmatprep.subr.bf16.mxu0 0
    %1870 = vmatpush1.bf16.msra.mxu0 %v1846
    %1871 = vmatprep.subr.bf16.mxu0 0
    %1872 = vmatpush1.bf16.msra.mxu0 0
    %1873 = vmatprep.subr.bf16.mxu0 0
    %1874 = vmatpush1.bf16.msra.mxu0 0
    %1875 = vmatprep.subr.bf16.mxu0 0
    %1876 = vmatpush1.bf16.msra.mxu0 0
    %1877 = vmatprep.subr.bf16.mxu0 0
    %1878 = vmatpush1.bf16.msra.mxu0 0
    %1879 = vmatprep.subr.bf16.mxu0 0
    %1880 = vmatpush1.bf16.msra.mxu0 0
    %1881 = vmatprep.subr.bf16.mxu0 0
    %1882 = vmatpush1.bf16.msra.mxu0 0
    %1883 = vmatprep.subr.bf16.mxu0 0
    %1884 = vmatpush1.bf16.msra.mxu0 0
    %1885 = vmatprep.subr.bf16.mxu0 0
    %1886 = vmatpush1.bf16.msra.mxu0 0
    %1887 = vmatprep.mubr.bf16.mxu0 0
    %1888 = vmatmul.mubr.bf16.gmra.mrb[0].mxu0 %v1789
    %v1889 = vpop.f32.mrb[0].mxu0
    %v1890 = vadd.f32 0.0, %v1889
    %v1891 = vpop.f32.mrb[0].mxu0
    %v1892 = vpop.f32.mrb[0].mxu0
    %v1893 = vadd.f32 0.0, %v1892
    %v1894 = vpop.f32.mrb[0].mxu0
    %1895 = vmatprep.mubr.bf16.mxu0 0
    %1896 = vmatmul.mubr.bf16.gmra.mrb[0].mxu0 %v1790
    %v1897 = vpop.f32.mrb[0].mxu0
    %v1898 = vadd.f32 0.0, %v1897
    %v1899 = vpop.f32.mrb[0].mxu0
    %v1900 = vpop.f32.mrb[0].mxu0
    %v1901 = vadd.f32 0.0, %v1900
    %v1902 = vpop.f32.mrb[0].mxu0
    %1903 = vdwg.mxu0
    %v1906 = vunpack.c.l.s4 1966171168
    %v1907 = vunpack.c.0.s8 %v1906
    %v1908 = vlaneseq
    %v1909 = vshrl.u32 %v1908, 7
    %v1910 = vsub.s32 %v1907, %v1909
    %v1911 = vrot.slane %v1032, %v1910
    %v1912 = vcombine.high %v1911, %v1911
    %v1914 = vunpack.c.l.s4 1966171168
    %v1915 = vunpack.c.0.s8 %v1914
    %v1916 = vlaneseq
    %v1917 = vshrl.u32 %v1916, 7
    %v1918 = vsub.s32 %v1915, %v1917
    %v1919 = vrot.slane %v1911, %v1918
    %v1921 = vunpack.c.l.s4 1966171168
    %v1922 = vunpack.c.0.s8 %v1921
    %v1923 = vlaneseq
    %v1924 = vshrl.u32 %v1923, 7
    %v1925 = vsub.s32 %v1922, %v1924
    %v1926 = vrot.slane %v1912, %v1925
    %v1927 = vlaneseq
    %v1928 = vshrl.u32 %v1927, 7
    %v1929 = vsub.s32 0, %v1928
    %v1930 = vrot.slane %v1919, %v1929
    %v1931 = vlaneseq
    %v1932 = vshrl.u32 %v1931, 7
    %v1933 = vsub.s32 0, %v1932
    %v1934 = vrot.slane %v1926, %v1933
    %v1937 = vadd.f32 %v1890, %v1930
    %v1938 = vadd.f32 %v1893, %v1930
    %v1939 = vadd.f32 %v1898, %v1934
    %v1940 = vadd.f32 %v1901, %v1934
    %v1941 = vld [vmem:[%s6] sm:$0x1]
    %v1943 = vlaneseq
    %v1944 = vshrl.u32 %v1943, 7
    %v1945 = vsub.s32 0, %v1944
    %v1946 = vrot.slane %v1941, %v1945
    %v1948 = vadd.f32 %v1937, %v1946
    %v1949 = vadd.f32 %v1938, %v1946
    %v1950 = vadd.f32 %v1939, %v1946
    %v1951 = vadd.f32 %v1940, %v1946
    %v1952 = vmax.f32 %v1948, 0.0
    %v1953 = vmax.f32 %v1949, 0.0
    %v1954 = vmax.f32 %v1950, 0.0
    %v1955 = vmax.f32 %v1951, 0.0
    %v1956 = vpack.c.bf16 %v1953, %v1952
    %v1957 = vpack.c.bf16 %v1955, %v1954
    %v1958 = vld [vmem:[%s7] sm:$0xf]
    %v1959 = vld [vmem:[%s7 + $0x4] sm:$0xf]
    %v1960 = vld [vmem:[%s7 + $0x8] sm:$0xf]
    %v1961 = vld [vmem:[%s7 + $0xc] sm:$0xf]
    %v1962 = vld [vmem:[%s7 + $0x10] sm:$0xf]
    %v1963 = vld [vmem:[%s7 + $0x14] sm:$0xf]
    %v1964 = vld [vmem:[%s7 + $0x18] sm:$0xf]
    %v1965 = vld [vmem:[%s7 + $0x1c] sm:$0xf]
    %v1966 = vld [vmem:[%s8] sm:$0x1]
    %v1968 = vlaneseq
    %v1969 = vshrl.u32 %v1968, 7
    %v1970 = vsub.s32 0, %v1969
    %v1971 = vrot.slane %v1966, %v1970
    %v1981 = vunpack.c.l.b16 %v1958
    %v1982 = vunpack.c.l.b16 %v1959
    %v1983 = vunpack.c.l.b16 %v1960
    %v1984 = vunpack.c.l.b16 %v1961
    %v1985 = vunpack.c.l.b16 %v1962
    %v1986 = vunpack.c.l.b16 %v1963
    %v1987 = vunpack.c.l.b16 %v1964
    %v1988 = vunpack.c.l.b16 %v1965
    %v1989 = vpack.c.b16 %v1982, %v1981
    %v1990 = vpack.c.b16 %v1984, %v1983
    %v1991 = vpack.c.b16 %v1986, %v1985
    %v1992 = vpack.c.b16 %v1988, %v1987
    %vm1997 = vcmask 523264
    %v1999 = vsel %vm1997, %v1956, 0
    %v2002 = vsel %vm1997, %v1957, 0
    %2004 = vmatprep.subr.bf16.mxu0 0
    %2005 = vmatpush1.bf16.msra.mxu0 %v1989
    %2006 = vmatprep.subr.bf16.mxu0 0
    %2007 = vmatpush1.bf16.msra.mxu0 %v1990
    %2008 = vmatprep.subr.bf16.mxu0 0
    %2009 = vmatpush1.bf16.msra.mxu0 %v1991
    %2010 = vmatprep.subr.bf16.mxu0 0
    %2011 = vmatpush1.bf16.msra.mxu0 %v1992
    %2012 = vmatprep.subr.bf16.mxu0 0
    %2013 = vmatpush1.bf16.msra.mxu0 0
    %2014 = vmatprep.subr.bf16.mxu0 0
    %2015 = vmatpush1.bf16.msra.mxu0 0
    %2016 = vmatprep.subr.bf16.mxu0 0
    %2017 = vmatpush1.bf16.msra.mxu0 0
    %2018 = vmatprep.subr.bf16.mxu0 0
    %2019 = vmatpush1.bf16.msra.mxu0 0
    %2020 = vmatprep.subr.bf16.mxu0 0
    %2021 = vmatpush1.bf16.msra.mxu0 0
    %2022 = vmatprep.subr.bf16.mxu0 0
    %2023 = vmatpush1.bf16.msra.mxu0 0
    %2024 = vmatprep.subr.bf16.mxu0 0
    %2025 = vmatpush1.bf16.msra.mxu0 0
    %2026 = vmatprep.subr.bf16.mxu0 0
    %2027 = vmatpush1.bf16.msra.mxu0 0
    %2028 = vmatprep.subr.bf16.mxu0 0
    %2029 = vmatpush1.bf16.msra.mxu0 0
    %2030 = vmatprep.subr.bf16.mxu0 0
    %2031 = vmatpush1.bf16.msra.mxu0 0
    %2032 = vmatprep.subr.bf16.mxu0 0
    %2033 = vmatpush1.bf16.msra.mxu0 0
    %2034 = vmatprep.subr.bf16.mxu0 0
    %2035 = vmatpush1.bf16.msra.mxu0 0
    %2036 = vmatprep.mubr.bf16.mxu0 0
    %2037 = vmatmul.mubr.bf16.gmra.mrb[0].mxu0 %v1999
    %v2038 = vpop.f32.mrb[0].mxu0
    %v2039 = vadd.f32 %v1971, %v2038
    %v2040 = vpop.f32.mrb[0].mxu0
    %v2041 = vpop.f32.mrb[0].mxu0
    %v2042 = vadd.f32 %v1971, %v2041
    %v2043 = vpop.f32.mrb[0].mxu0
    %2044 = vmatprep.mubr.bf16.mxu0 0
    %2045 = vmatmul.mubr.bf16.gmra.mrb[0].mxu0 %v2002
    %v2046 = vpop.f32.mrb[0].mxu0
    %v2047 = vadd.f32 %v1971, %v2046
    %v2048 = vpop.f32.mrb[0].mxu0
    %v2049 = vpop.f32.mrb[0].mxu0
    %v2050 = vadd.f32 %v1971, %v2049
    %v2051 = vpop.f32.mrb[0].mxu0
    %2052 = vdwg.mxu0
    %v2053 = vmax.f32 %v2039, 0.0
    %v2054 = vmax.f32 %v2042, 0.0
    %v2055 = vmax.f32 %v2047, 0.0
    %v2056 = vmax.f32 %v2050, 0.0
    %v2057 = vpack.c.bf16 %v2054, %v2053
    %v2058 = vpack.c.bf16 %v2056, %v2055
    %v2059 = vld [vmem:[%s9] sm:$0xf]
    %v2060 = vld [vmem:[%s9 + $0x4] sm:$0xf]
    %v2061 = vld [vmem:[%s9 + $0x8] sm:$0xf]
    %v2062 = vld [vmem:[%s9 + $0xc] sm:$0xf]
    %v2063 = vld [vmem:[%s10] sm:$0x1]
    %v2065 = vlaneseq
    %v2066 = vshrl.u32 %v2065, 7
    %v2067 = vsub.s32 0, %v2066
    %v2068 = vrot.slane %v2063, %v2067
    %v2074 = vunpack.c.l.b16 %v2059
    %v2075 = vunpack.c.l.b16 %v2060
    %v2076 = vunpack.c.l.b16 %v2061
    %v2077 = vunpack.c.l.b16 %v2062
    %v2078 = vpack.c.b16 %v2075, %v2074
    %v2079 = vpack.c.b16 %v2077, %v2076
    %vm2082 = vcmask 261120
    %v2084 = vsel %vm2082, %v2057, 0
    %v2087 = vsel %vm2082, %v2058, 0
    %2089 = vmatprep.subr.bf16.mxu0 0
    %2090 = vmatpush1.bf16.msra.mxu0 %v2078
    %2091 = vmatprep.subr.bf16.mxu0 0
    %2092 = vmatpush1.bf16.msra.mxu0 %v2079
    %2093 = vmatprep.subr.bf16.mxu0 0
    %2094 = vmatpush1.bf16.msra.mxu0 0
    %2095 = vmatprep.subr.bf16.mxu0 0
    %2096 = vmatpush1.bf16.msra.mxu0 0
    %2097 = vmatprep.subr.bf16.mxu0 0
    %2098 = vmatpush1.bf16.msra.mxu0 0
    %2099 = vmatprep.subr.bf16.mxu0 0
    %2100 = vmatpush1.bf16.msra.mxu0 0
    %2101 = vmatprep.subr.bf16.mxu0 0
    %2102 = vmatpush1.bf16.msra.mxu0 0
    %2103 = vmatprep.subr.bf16.mxu0 0
    %2104 = vmatpush1.bf16.msra.mxu0 0
    %2105 = vmatprep.subr.bf16.mxu0 0
    %2106 = vmatpush1.bf16.msra.mxu0 0
    %2107 = vmatprep.subr.bf16.mxu0 0
    %2108 = vmatpush1.bf16.msra.mxu0 0
    %2109 = vmatprep.subr.bf16.mxu0 0
    %2110 = vmatpush1.bf16.msra.mxu0 0
    %2111 = vmatprep.subr.bf16.mxu0 0
    %2112 = vmatpush1.bf16.msra.mxu0 0
    %2113 = vmatprep.subr.bf16.mxu0 0
    %2114 = vmatpush1.bf16.msra.mxu0 0
    %2115 = vmatprep.subr.bf16.mxu0 0
    %2116 = vmatpush1.bf16.msra.mxu0 0
    %2117 = vmatprep.subr.bf16.mxu0 0
    %2118 = vmatpush1.bf16.msra.mxu0 0
    %2119 = vmatprep.subr.bf16.mxu0 0
    %2120 = vmatpush1.bf16.msra.mxu0 0
    %2121 = vmatprep.mubr.bf16.mxu0 0
    %2122 = vmatmul.mubr.bf16.gmra.mrb[0].mxu0 %v2084
    %v2123 = vpop.f32.mrb[0].mxu0
    %v2124 = vadd.f32 %v2068, %v2123
    %v2125 = vpop.f32.mrb[0].mxu0
    %v2126 = vpop.f32.mrb[0].mxu0
    %v2127 = vadd.f32 %v2068, %v2126
    %v2128 = vpop.f32.mrb[0].mxu0
    %2129 = vmatprep.mubr.bf16.mxu0 0
    %2130 = vmatmul.mubr.bf16.gmra.mrb[0].mxu0 %v2087
    %v2131 = vpop.f32.mrb[0].mxu0
    %v2132 = vadd.f32 %v2068, %v2131
    %v2133 = vpop.f32.mrb[0].mxu0
    %v2134 = vpop.f32.mrb[0].mxu0
    %v2135 = vadd.f32 %v2068, %v2134
    %v2136 = vpop.f32.mrb[0].mxu0
    %2137 = vdwg.mxu0
    %2142 = vrot.lane.b32.xlu0 %v2124, 1
    %v2143 = vpop.permute.xlu0 %2142
    %2144 = vrot.lane.b32.xlu0 %v2127, 1
    %v2145 = vpop.permute.xlu0 %2144
    %2146 = vrot.lane.b32.xlu0 %v2132, 1
    %v2147 = vpop.permute.xlu0 %2146
    %2148 = vrot.lane.b32.xlu0 %v2135, 1
    %v2149 = vpop.permute.xlu0 %2148
    %v2154 = vsub.f32 %v2124, %v2143
    %v2155 = vsub.f32 %v2127, %v2145
    %v2156 = vsub.f32 %v2132, %v2147
    %v2157 = vsub.f32 %v2135, %v2149
    %v2158 = vmax.f32 %v2154, 0.0
    %v2159 = vmax.f32 %v2155, 0.0
    %v2160 = vmax.f32 %v2156, 0.0
    %v2161 = vmax.f32 %v2157, 0.0
    %2166 = vrot.lane.b32.xlu0 %v2158, 127
    %v2167 = vpop.permute.xlu0 %2166
    %2168 = vrot.lane.b32.xlu0 %v2159, 127
    %v2169 = vpop.permute.xlu0 %2168
    %2170 = vrot.lane.b32.xlu0 %v2160, 127
    %v2171 = vpop.permute.xlu0 %2170
    %2172 = vrot.lane.b32.xlu0 %v2161, 127
    %v2173 = vpop.permute.xlu0 %2172
    %v2178 = vadd.f32 %v2124, %v2167
    %v2179 = vadd.f32 %v2127, %v2169
    %v2180 = vadd.f32 %v2132, %v2171
    %v2181 = vadd.f32 %v2135, %v2173
    %v2182 = vand.u32 2147483647, %v2154
    %v2183 = vand.u32 2147483647, %v2155
    %v2184 = vand.u32 2147483647, %v2156
    %v2185 = vand.u32 2147483647, %v2157
    %v2186 = vsub.f32 0.0, %v2182
    %v2187 = vsub.f32 0.0, %v2183
    %v2188 = vsub.f32 0.0, %v2184
    %v2189 = vsub.f32 0.0, %v2185
    %v2190 = vmul.f32 %v2186, 1.442695
    %v2191 = vpow.pop %v2190
    %v2192 = vmul.f32 %v2187, 1.442695
    %v2193 = vpow.pop %v2192
    %v2194 = vmul.f32 %v2188, 1.442695
    %v2195 = vpow.pop %v2194
    %v2196 = vmul.f32 %v2189, 1.442695
    %v2197 = vpow.pop %v2196
    %v2198 = vadd.f32 %v2191, 1.0
    %v2199 = vadd.f32 %v2193, 1.0
    %v2200 = vadd.f32 %v2195, 1.0
    %v2201 = vadd.f32 %v2197, 1.0
    %v2202 = vlog2.pop %v2198
    %v2203 = vmul.f32 %v2202, 0.6931472
    %v2204 = vlog2.pop %v2199
    %v2205 = vmul.f32 %v2204, 0.6931472
    %v2206 = vlog2.pop %v2200
    %v2207 = vmul.f32 %v2206, 0.6931472
    %v2208 = vlog2.pop %v2201
    %v2209 = vmul.f32 %v2208, 0.6931472
    %2214 = vrot.lane.b32.xlu0 %v2203, 127
    %v2215 = vpop.permute.xlu0 %2214
    %2216 = vrot.lane.b32.xlu0 %v2205, 127
    %v2217 = vpop.permute.xlu0 %2216
    %2218 = vrot.lane.b32.xlu0 %v2207, 127
    %v2219 = vpop.permute.xlu0 %2218
    %2220 = vrot.lane.b32.xlu0 %v2209, 127
    %v2221 = vpop.permute.xlu0 %2220
    %v2226 = vadd.f32 %v2178, %v2215
    %v2227 = vadd.f32 %v2179, %v2217
    %v2228 = vadd.f32 %v2180, %v2219
    %v2229 = vadd.f32 %v2181, %v2221
    %2231 = vset.pattern.permute.xlu0 0
    %2232 = vperm.xlu0 %2231, %v2226
    %v2233 = vpop.permute.xlu0 %2232
    %2236 = vset.pattern.permute.xlu0 0
    %2237 = vperm.xlu0 %2236, %v2227
    %v2238 = vpop.permute.xlu0 %2237
    %2241 = vset.pattern.permute.xlu0 0
    %2242 = vperm.xlu0 %2241, %v2228
    %v2243 = vpop.permute.xlu0 %2242
    %2246 = vset.pattern.permute.xlu0 0
    %2247 = vperm.xlu0 %2246, %v2229
    %v2248 = vpop.permute.xlu0 %2247
    %v2250 = vsub.f32 %v2124, %v2233
    %v2251 = vsub.f32 %v2127, %v2238
    %v2252 = vsub.f32 %v2132, %v2243
    %v2253 = vsub.f32 %v2135, %v2248
    %vm2254 = vcmask 15360
    %2255 = vst.msk [vmem:[%s11] sm:$0xff] %vm2254, %v2250
    %2256 = vst.msk [vmem:[%s11 + $0x8] sm:$0xff] %vm2254, %v2251
    %2257 = vst.msk [vmem:[%s11 + $0x10] sm:$0xff] %vm2254, %v2252
    %2258 = vst.msk [vmem:[%s11 + $0x18] sm:$0xff] %vm2254, %v2253
    // Predicated region
    $region50: #{tpu_custom_call.1} parent=1 // pred_check
      _
    $region51: #{tpu_custom_call.1} parent=1 // pred_check_branch
      %2260 = sbr.rel (0) target = $region53
    $region52: #{tpu_custom_call.1} parent=1 // pred_region
      _
    $region53: #{tpu_custom_call.1} parent=1 // pred_fallthru
      _
    // Predicated region
    $region54: #{tpu_custom_call.1} parent=1 // pred_check
      _
    $region55: #{tpu_custom_call.1} parent=1 // pred_check_branch
      %2262 = sbr.rel (0) target = $region57
    $region56: #{tpu_custom_call.1} parent=1 // pred_region
      _
    $region57: #{tpu_custom_call.1} parent=1 // pred_fallthru
      _
    %2263 = vsyncpa [#allocation3], 1

// kernel: tpu_custom_call.1
$region0: #{tpu_custom_call.1}
  #allocation0 [shape = 'u32[]', space=smem, size = 0x4, offset = 0x4, fixed_abs, tag = 'smem constant byte address 0x4 - core index']
  #allocation1 [shape = 'u32[144,128]{1,0:T(1,128)}', space=vmem, size = 0x12000, scoped, tag = 'internal scratch']
  %s0 = inlined_call_operand.vmem [shape: bf16[2,16,128], index: 0, kind: input, shape index: {}]
  %s1 = inlined_call_operand.vmem [shape: f32[2,1,16], index: 1, kind: input, shape index: {}]
  %s2 = inlined_call_operand.hbm [shape: bf16[12,128,128], index: 2, kind: input, shape index: {}]
  %s3 = inlined_call_operand.vmem [shape: f32[12,1,128], index: 3, kind: input, shape index: {}]
  %s4 = inlined_call_operand.vmem [shape: bf16[128,64], index: 4, kind: input, shape index: {}]
  %s5 = inlined_call_operand.vmem [shape: bf16[128,64], index: 5, kind: input, shape index: {}]
  %s6 = inlined_call_operand.vmem [shape: f32[1,64], index: 6, kind: input, shape index: {}]
  %s7 = inlined_call_operand.vmem [shape: bf16[64,32], index: 7, kind: input, shape index: {}]
  %s8 = inlined_call_operand.vmem [shape: f32[1,32], index: 8, kind: input, shape index: {}]
  %s9 = inlined_call_operand.vmem [shape: bf16[32,2], index: 9, kind: input, shape index: {}]
  %s10 = inlined_call_operand.vmem [shape: f32[1,2], index: 10, kind: input, shape index: {}]
  %s11 = inlined_call_operand.vmem [shape: f32[2,16,2], index: 11, kind: output, shape index: {}]
  %s12 = sld [smem:[#allocation0]]
  $region58: #{tpu_custom_call.1} parent=0
    _
  %s14 = ssub.s32 1, %s12
  %s15 = scalar_select 0, %s14, %s12
  $region1: #{tpu_custom_call.1} parent=0
    #allocation2 [shape = 'u8[393216]{0}', space=vmem, size = 0x60000, scoped, tag = 'input window, operand 2, single buffered']
    #allocation3 [shape = 's32[1]{0}', space=sflag, size = 0x4, scoped, tag = 'scoped memory for tpu_custom_call.1']
    %16 = vsyncpa [#allocation3], 0
    // Predicated region
    $region2: #{tpu_custom_call.1} parent=1 // pred_check
      _
    $region3: #{tpu_custom_call.1} parent=1 // pred_check_branch
      %18 = sbr.rel (0) target = $region5
    $region4: #{tpu_custom_call.1} parent=1 // pred_region
      _
    $region5: #{tpu_custom_call.1} parent=1 // pred_fallthru
      _
    // Predicated region
    $region6: #{tpu_custom_call.1} parent=1 // pred_check
      _
    $region7: #{tpu_custom_call.1} parent=1 // pred_check_branch
      %20 = sbr.rel (0) target = $region9
    $region8: #{tpu_custom_call.1} parent=1 // pred_region
      _
    $region9: #{tpu_custom_call.1} parent=1 // pred_fallthru
      _
    // Predicated region
    $region10: #{tpu_custom_call.1} parent=1 // pred_check
      _
    $region11: #{tpu_custom_call.1} parent=1 // pred_check_branch
      %22 = sbr.rel (0) target = $region13
    $region12: #{tpu_custom_call.1} parent=1 // pred_region
      %s24 = ssub.s32 12288, 12288
      %25 = vsyncadd [#allocation3], %s24
      %s26 = sshll.u32 [#allocation2], 4
      %s27 = int_to_ptr.vmem [resolvable:$true] %s26
      %32 = dma.hbm_to_vmem [thread:$0]  %s2, 12288, %s27, [#allocation3], 64, 64, 4
    $region13: #{tpu_custom_call.1} parent=1 // pred_fallthru
      _
    // Predicated region
    $region14: #{tpu_custom_call.1} parent=1 // pred_check
      _
    $region15: #{tpu_custom_call.1} parent=1 // pred_check_branch
      %34 = sbr.rel (0) target = $region17
    $region16: #{tpu_custom_call.1} parent=1 // pred_region
      _
    $region17: #{tpu_custom_call.1} parent=1 // pred_fallthru
      _
    // Predicated region
    $region18: #{tpu_custom_call.1} parent=1 // pred_check
      _
    $region19: #{tpu_custom_call.1} parent=1 // pred_check_branch
      %36 = sbr.rel (0) target = $region21
    $region20: #{tpu_custom_call.1} parent=1 // pred_region
      _
    $region21: #{tpu_custom_call.1} parent=1 // pred_fallthru
      _
    // Predicated region
    $region22: #{tpu_custom_call.1} parent=1 // pred_check
      _
    $region23: #{tpu_custom_call.1} parent=1 // pred_check_branch
      %38 = sbr.rel (0) target = $region25
    $region24: #{tpu_custom_call.1} parent=1 // pred_region
      _
    $region25: #{tpu_custom_call.1} parent=1 // pred_fallthru
      _
    // Predicated region
    $region26: #{tpu_custom_call.1} parent=1 // pred_check
      _
    $region27: #{tpu_custom_call.1} parent=1 // pred_check_branch
      %40 = sbr.rel (0) target = $region29
    $region28: #{tpu_custom_call.1} parent=1 // pred_region
      _
    $region29: #{tpu_custom_call.1} parent=1 // pred_fallthru
      _
    // Predicated region
    $region30: #{tpu_custom_call.1} parent=1 // pred_check
      _
    $region31: #{tpu_custom_call.1} parent=1 // pred_check_branch
      %42 = sbr.rel (0) target = $region33
    $region32: #{tpu_custom_call.1} parent=1 // pred_region
      _
    $region33: #{tpu_custom_call.1} parent=1 // pred_fallthru
      _
    // Predicated region
    $region34: #{tpu_custom_call.1} parent=1 // pred_check
      _
    $region35: #{tpu_custom_call.1} parent=1 // pred_check_branch
      %44 = sbr.rel (0) target = $region37
    $region36: #{tpu_custom_call.1} parent=1 // pred_region
      _
    $region37: #{tpu_custom_call.1} parent=1 // pred_fallthru
      _
    // Predicated region
    $region38: #{tpu_custom_call.1} parent=1 // pred_check
      _
    $region39: #{tpu_custom_call.1} parent=1 // pred_check_branch
      %46 = sbr.rel (0) target = $region41
    $region40: #{tpu_custom_call.1} parent=1 // pred_region
      _
    $region41: #{tpu_custom_call.1} parent=1 // pred_fallthru
      _
    // Predicated region
    $region42: #{tpu_custom_call.1} parent=1 // pred_check
      _
    $region43: #{tpu_custom_call.1} parent=1 // pred_check_branch
      %48 = sbr.rel (0) target = $region45
    $region44: #{tpu_custom_call.1} parent=1 // pred_region
      _
    $region45: #{tpu_custom_call.1} parent=1 // pred_fallthru
      _
    // Predicated region
    $region46: #{tpu_custom_call.1} parent=1 // pred_check
      _
    $region47: #{tpu_custom_call.1} parent=1 // pred_check_branch
      %50 = sbr.rel (0) target = $region49
    $region48: #{tpu_custom_call.1} parent=1 // pred_region
      %51 = dma.done [#allocation3], 12288
    $region49: #{tpu_custom_call.1} parent=1 // pred_fallthru
      _
    %v53 = vld [vmem:[%s0] sm:$0xf]
    %v54 = vld [vmem:[%s0 + $0x4] sm:$0xf]
    %v55 = vld [vmem:[%s0 + $0x8] sm:$0xf]
    %v56 = vld [vmem:[%s0 + $0xc] sm:$0xf]
    %s57 = scalar_lea.vmem [#allocation2], 384
    %v58 = vld [vmem:[%s57] sm:$0xf]
    %v59 = vld [vmem:[%s57 + $0x4] sm:$0xf]
    %v60 = vld [vmem:[%s57 + $0x8] sm:$0xf]
    %v61 = vld [vmem:[%s57 + $0xc] sm:$0xf]
    %v62 = vld [vmem:[%s57 + $0x10] sm:$0xf]
    %v63 = vld [vmem:[%s57 + $0x14] sm:$0xf]
    %v64 = vld [vmem:[%s57 + $0x18] sm:$0xf]
    %v65 = vld [vmem:[%s57 + $0x1c] sm:$0xf]
    %v66 = vld [vmem:[%s57 + $0x20] sm:$0xf]
    %v67 = vld [vmem:[%s57 + $0x24] sm:$0xf]
    %v68 = vld [vmem:[%s57 + $0x28] sm:$0xf]
    %v69 = vld [vmem:[%s57 + $0x2c] sm:$0xf]
    %v70 = vld [vmem:[%s57 + $0x30] sm:$0xf]
    %v71 = vld [vmem:[%s57 + $0x34] sm:$0xf]
    %v72 = vld [vmem:[%s57 + $0x38] sm:$0xf]
    %v73 = vld [vmem:[%s57 + $0x3c] sm:$0xf]
    %s74 = scalar_lea.vmem %s3, 6
    %v75 = vld [vmem:[%s74] sm:$0x1]
    %v77 = vlaneseq
    %v78 = vshrl.u32 %v77, 7
    %v79 = vsub.s32 0, %v78
    %v80 = vrot.slane %v75, %v79
    %v86 = vunpack.c.l.b16 %v53
    %v87 = vunpack.c.l.b16 %v54
    %v88 = vunpack.c.l.b16 %v55
    %v89 = vunpack.c.l.b16 %v56
    %v90 = vpack.c.b16 %v87, %v86
    %v91 = vpack.c.b16 %v89, %v88
    %v110 = vunpack.c.l.b16 %v58
    %v111 = vunpack.c.l.b16 %v59
    %v112 = vunpack.c.l.b16 %v60
    %v113 = vunpack.c.l.b16 %v61
    %v114 = vunpack.c.l.b16 %v62
    %v115 = vunpack.c.l.b16 %v63
    %v116 = vunpack.c.l.b16 %v64
    %v117 = vunpack.c.l.b16 %v65
    %v118 = vunpack.c.l.b16 %v66
    %v119 = vunpack.c.l.b16 %v67
    %v120 = vunpack.c.l.b16 %v68
    %v121 = vunpack.c.l.b16 %v69
    %v122 = vunpack.c.l.b16 %v70
    %v123 = vunpack.c.l.b16 %v71
    %v124 = vunpack.c.l.b16 %v72
    %v125 = vunpack.c.l.b16 %v73
    %v126 = vpack.c.b16 %v111, %v110
    %v127 = vpack.c.b16 %v113, %v112
    %v128 = vpack.c.b16 %v115, %v114
    %v129 = vpack.c.b16 %v117, %v116
    %v130 = vpack.c.b16 %v119, %v118
    %v131 = vpack.c.b16 %v121, %v120
    %v132 = vpack.c.b16 %v123, %v122
    %v133 = vpack.c.b16 %v125, %v124
    %142 = vmatprep.subr.bf16.mxu0 0
    %143 = vmatpush1.bf16.msra.mxu0 %v126
    %144 = vmatprep.subr.bf16.mxu0 0
    %145 = vmatpush1.bf16.msra.mxu0 %v127
    %146 = vmatprep.subr.bf16.mxu0 0
    %147 = vmatpush1.bf16.msra.mxu0 %v128
    %148 = vmatprep.subr.bf16.mxu0 0
    %149 = vmatpush1.bf16.msra.mxu0 %v129
    %150 = vmatprep.subr.bf16.mxu0 0
    %151 = vmatpush1.bf16.msra.mxu0 %v130
    %152 = vmatprep.subr.bf16.mxu0 0
    %153 = vmatpush1.bf16.msra.mxu0 %v131
    %154 = vmatprep.subr.bf16.mxu0 0
    %155 = vmatpush1.bf16.msra.mxu0 %v132
    %156 = vmatprep.subr.bf16.mxu0 0
    %157 = vmatpush1.bf16.msra.mxu0 %v133
    %158 = vmatprep.subr.bf16.mxu0 0
    %159 = vmatpush1.bf16.msra.mxu0 0
    %160 = vmatprep.subr.bf16.mxu0 0
    %161 = vmatpush1.bf16.msra.mxu0 0
    %162 = vmatprep.subr.bf16.mxu0 0
    %163 = vmatpush1.bf16.msra.mxu0 0
    %164 = vmatprep.subr.bf16.mxu0 0
    %165 = vmatpush1.bf16.msra.mxu0 0
    %166 = vmatprep.subr.bf16.mxu0 0
    %167 = vmatpush1.bf16.msra.mxu0 0
    %168 = vmatprep.subr.bf16.mxu0 0
    %169 = vmatpush1.bf16.msra.mxu0 0
    %170 = vmatprep.subr.bf16.mxu0 0
    %171 = vmatpush1.bf16.msra.mxu0 0
    %172 = vmatprep.subr.bf16.mxu0 0
    %173 = vmatpush1.bf16.msra.mxu0 0
    %174 = vmatprep.mubr.bf16.mxu0 0
    %175 = vmatmul.mubr.bf16.gmra.mrb[0].mxu0 %v90
    %v176 = vpop.f32.mrb[0].mxu0
    %v177 = vadd.f32 %v80, %v176
    %v178 = vpop.f32.mrb[0].mxu0
    %v179 = vpop.f32.mrb[0].mxu0
    %v180 = vadd.f32 %v80, %v179
    %v181 = vpop.f32.mrb[0].mxu0
    %182 = vmatprep.mubr.bf16.mxu0 0
    %183 = vmatmul.mubr.bf16.gmra.mrb[0].mxu0 %v91
    %v184 = vpop.f32.mrb[0].mxu0
    %v185 = vadd.f32 %v80, %v184
    %v186 = vpop.f32.mrb[0].mxu0
    %v187 = vpop.f32.mrb[0].mxu0
    %v188 = vadd.f32 %v80, %v187
    %v189 = vpop.f32.mrb[0].mxu0
    %190 = vdwg.mxu0
    %v191 = vmax.f32 %v177, 0.0
    %v192 = vmax.f32 %v180, 0.0
    %v193 = vmax.f32 %v185, 0.0
    %v194 = vmax.f32 %v188, 0.0
    %v195 = vpack.c.bf16 %v192, %v191
    %v196 = vpack.c.bf16 %v194, %v193
    %s197 = scalar_lea.vmem [#allocation2], 448
    %v198 = vld [vmem:[%s197] sm:$0xf]
    %v199 = vld [vmem:[%s197 + $0x4] sm:$0xf]
    %v200 = vld [vmem:[%s197 + $0x8] sm:$0xf]
    %v201 = vld [vmem:[%s197 + $0xc] sm:$0xf]
    %v202 = vld [vmem:[%s197 + $0x10] sm:$0xf]
    %v203 = vld [vmem:[%s197 + $0x14] sm:$0xf]
    %v204 = vld [vmem:[%s197 + $0x18] sm:$0xf]
    %v205 = vld [vmem:[%s197 + $0x1c] sm:$0xf]
    %v206 = vld [vmem:[%s197 + $0x20] sm:$0xf]
    %v207 = vld [vmem:[%s197 + $0x24] sm:$0xf]
    %v208 = vld [vmem:[%s197 + $0x28] sm:$0xf]
    %v209 = vld [vmem:[%s197 + $0x2c] sm:$0xf]
    %v210 = vld [vmem:[%s197 + $0x30] sm:$0xf]
    %v211 = vld [vmem:[%s197 + $0x34] sm:$0xf]
    %v212 = vld [vmem:[%s197 + $0x38] sm:$0xf]
    %v213 = vld [vmem:[%s197 + $0x3c] sm:$0xf]
    %s214 = scalar_lea.vmem %s3, 7
    %v215 = vld [vmem:[%s214] sm:$0x1]
    %v217 = vlaneseq
    %v218 = vshrl.u32 %v217, 7
    %v219 = vsub.s32 0, %v218
    %v220 = vrot.slane %v215, %v219
    %v238 = vunpack.c.l.b16 %v198
    %v239 = vunpack.c.l.b16 %v199
    %v240 = vunpack.c.l.b16 %v200
    %v241 = vunpack.c.l.b16 %v201
    %v242 = vunpack.c.l.b16 %v202
    %v243 = vunpack.c.l.b16 %v203
    %v244 = vunpack.c.l.b16 %v204
    %v245 = vunpack.c.l.b16 %v205
    %v246 = vunpack.c.l.b16 %v206
    %v247 = vunpack.c.l.b16 %v207
    %v248 = vunpack.c.l.b16 %v208
    %v249 = vunpack.c.l.b16 %v209
    %v250 = vunpack.c.l.b16 %v210
    %v251 = vunpack.c.l.b16 %v211
    %v252 = vunpack.c.l.b16 %v212
    %v253 = vunpack.c.l.b16 %v213
    %v254 = vpack.c.b16 %v239, %v238
    %v255 = vpack.c.b16 %v241, %v240
    %v256 = vpack.c.b16 %v243, %v242
    %v257 = vpack.c.b16 %v245, %v244
    %v258 = vpack.c.b16 %v247, %v246
    %v259 = vpack.c.b16 %v249, %v248
    %v260 = vpack.c.b16 %v251, %v250
    %v261 = vpack.c.b16 %v253, %v252
    %270 = vmatprep.subr.bf16.mxu0 0
    %271 = vmatpush1.bf16.msra.mxu0 %v254
    %272 = vmatprep.subr.bf16.mxu0 0
    %273 = vmatpush1.bf16.msra.mxu0 %v255
    %274 = vmatprep.subr.bf16.mxu0 0
    %275 = vmatpush1.bf16.msra.mxu0 %v256
    %276 = vmatprep.subr.bf16.mxu0 0
    %277 = vmatpush1.bf16.msra.mxu0 %v257
    %278 = vmatprep.subr.bf16.mxu0 0
    %279 = vmatpush1.bf16.msra.mxu0 %v258
    %280 = vmatprep.subr.bf16.mxu0 0
    %281 = vmatpush1.bf16.msra.mxu0 %v259
    %282 = vmatprep.subr.bf16.mxu0 0
    %283 = vmatpush1.bf16.msra.mxu0 %v260
    %284 = vmatprep.subr.bf16.mxu0 0
    %285 = vmatpush1.bf16.msra.mxu0 %v261
    %286 = vmatprep.subr.bf16.mxu0 0
    %287 = vmatpush1.bf16.msra.mxu0 0
    %288 = vmatprep.subr.bf16.mxu0 0
    %289 = vmatpush1.bf16.msra.mxu0 0
    %290 = vmatprep.subr.bf16.mxu0 0
    %291 = vmatpush1.bf16.msra.mxu0 0
    %292 = vmatprep.subr.bf16.mxu0 0
    %293 = vmatpush1.bf16.msra.mxu0 0
    %294 = vmatprep.subr.bf16.mxu0 0
    %295 = vmatpush1.bf16.msra.mxu0 0
    %296 = vmatprep.subr.bf16.mxu0 0
    %297 = vmatpush1.bf16.msra.mxu0 0
    %298 = vmatprep.subr.bf16.mxu0 0
    %299 = vmatpush1.bf16.msra.mxu0 0
    %300 = vmatprep.subr.bf16.mxu0 0
    %301 = vmatpush1.bf16.msra.mxu0 0
    %302 = vmatprep.mubr.bf16.mxu0 0
    %303 = vmatmul.mubr.bf16.gmra.mrb[0].mxu0 %v195
    %v304 = vpop.f32.mrb[0].mxu0
    %v305 = vadd.f32 %v220, %v304
    %v306 = vpop.f32.mrb[0].mxu0
    %v307 = vpop.f32.mrb[0].mxu0
    %v308 = vadd.f32 %v220, %v307
    %v309 = vpop.f32.mrb[0].mxu0
    %310 = vmatprep.mubr.bf16.mxu0 0
    %311 = vmatmul.mubr.bf16.gmra.mrb[0].mxu0 %v196
    %v312 = vpop.f32.mrb[0].mxu0
    %v313 = vadd.f32 %v220, %v312
    %v314 = vpop.f32.mrb[0].mxu0
    %v315 = vpop.f32.mrb[0].mxu0
    %v316 = vadd.f32 %v220, %v315
    %v317 = vpop.f32.mrb[0].mxu0
    %318 = vdwg.mxu0
    %v319 = vpack.c.bf16 %v308, %v305
    %v320 = vpack.c.bf16 %v316, %v313
    %s321 = scalar_lea.vmem [#allocation2], 512
    %v322 = vld [vmem:[%s321] sm:$0xf]
    %v323 = vld [vmem:[%s321 + $0x4] sm:$0xf]
    %v324 = vld [vmem:[%s321 + $0x8] sm:$0xf]
    %v325 = vld [vmem:[%s321 + $0xc] sm:$0xf]
    %v326 = vld [vmem:[%s321 + $0x10] sm:$0xf]
    %v327 = vld [vmem:[%s321 + $0x14] sm:$0xf]
    %v328 = vld [vmem:[%s321 + $0x18] sm:$0xf]
    %v329 = vld [vmem:[%s321 + $0x1c] sm:$0xf]
    %v330 = vld [vmem:[%s321 + $0x20] sm:$0xf]
    %v331 = vld [vmem:[%s321 + $0x24] sm:$0xf]
    %v332 = vld [vmem:[%s321 + $0x28] sm:$0xf]
    %v333 = vld [vmem:[%s321 + $0x2c] sm:$0xf]
    %v334 = vld [vmem:[%s321 + $0x30] sm:$0xf]
    %v335 = vld [vmem:[%s321 + $0x34] sm:$0xf]
    %v336 = vld [vmem:[%s321 + $0x38] sm:$0xf]
    %v337 = vld [vmem:[%s321 + $0x3c] sm:$0xf]
    %s338 = scalar_lea.vmem %s3, 8
    %v339 = vld [vmem:[%s338] sm:$0x1]
    %v341 = vlaneseq
    %v342 = vshrl.u32 %v341, 7
    %v343 = vsub.s32 0, %v342
    %v344 = vrot.slane %v339, %v343
    %v362 = vunpack.c.l.b16 %v322
    %v363 = vunpack.c.l.b16 %v323
    %v364 = vunpack.c.l.b16 %v324
    %v365 = vunpack.c.l.b16 %v325
    %v366 = vunpack.c.l.b16 %v326
    %v367 = vunpack.c.l.b16 %v327
    %v368 = vunpack.c.l.b16 %v328
    %v369 = vunpack.c.l.b16 %v329
    %v370 = vunpack.c.l.b16 %v330
    %v371 = vunpack.c.l.b16 %v331
    %v372 = vunpack.c.l.b16 %v332
    %v373 = vunpack.c.l.b16 %v333
    %v374 = vunpack.c.l.b16 %v334
    %v375 = vunpack.c.l.b16 %v335
    %v376 = vunpack.c.l.b16 %v336
    %v377 = vunpack.c.l.b16 %v337
    %v378 = vpack.c.b16 %v363, %v362
    %v379 = vpack.c.b16 %v365, %v364
    %v380 = vpack.c.b16 %v367, %v366
    %v381 = vpack.c.b16 %v369, %v368
    %v382 = vpack.c.b16 %v371, %v370
    %v383 = vpack.c.b16 %v373, %v372
    %v384 = vpack.c.b16 %v375, %v374
    %v385 = vpack.c.b16 %v377, %v376
    %394 = vmatprep.subr.bf16.mxu0 0
    %395 = vmatpush1.bf16.msra.mxu0 %v378
    %396 = vmatprep.subr.bf16.mxu0 0
    %397 = vmatpush1.bf16.msra.mxu0 %v379
    %398 = vmatprep.subr.bf16.mxu0 0
    %399 = vmatpush1.bf16.msra.mxu0 %v380
    %400 = vmatprep.subr.bf16.mxu0 0
    %401 = vmatpush1.bf16.msra.mxu0 %v381
    %402 = vmatprep.subr.bf16.mxu0 0
    %403 = vmatpush1.bf16.msra.mxu0 %v382
    %404 = vmatprep.subr.bf16.mxu0 0
    %405 = vmatpush1.bf16.msra.mxu0 %v383
    %406 = vmatprep.subr.bf16.mxu0 0
    %407 = vmatpush1.bf16.msra.mxu0 %v384
    %408 = vmatprep.subr.bf16.mxu0 0
    %409 = vmatpush1.bf16.msra.mxu0 %v385
    %410 = vmatprep.subr.bf16.mxu0 0
    %411 = vmatpush1.bf16.msra.mxu0 0
    %412 = vmatprep.subr.bf16.mxu0 0
    %413 = vmatpush1.bf16.msra.mxu0 0
    %414 = vmatprep.subr.bf16.mxu0 0
    %415 = vmatpush1.bf16.msra.mxu0 0
    %416 = vmatprep.subr.bf16.mxu0 0
    %417 = vmatpush1.bf16.msra.mxu0 0
    %418 = vmatprep.subr.bf16.mxu0 0
    %419 = vmatpush1.bf16.msra.mxu0 0
    %420 = vmatprep.subr.bf16.mxu0 0
    %421 = vmatpush1.bf16.msra.mxu0 0
    %422 = vmatprep.subr.bf16.mxu0 0
    %423 = vmatpush1.bf16.msra.mxu0 0
    %424 = vmatprep.subr.bf16.mxu0 0
    %425 = vmatpush1.bf16.msra.mxu0 0
    %426 = vmatprep.mubr.bf16.mxu0 0
    %427 = vmatmul.mubr.bf16.gmra.mrb[0].mxu0 %v319
    %v428 = vpop.f32.mrb[0].mxu0
    %v429 = vadd.f32 %v344, %v428
    %v430 = vpop.f32.mrb[0].mxu0
    %v431 = vpop.f32.mrb[0].mxu0
    %v432 = vadd.f32 %v344, %v431
    %v433 = vpop.f32.mrb[0].mxu0
    %434 = vmatprep.mubr.bf16.mxu0 0
    %435 = vmatmul.mubr.bf16.gmra.mrb[0].mxu0 %v320
    %v436 = vpop.f32.mrb[0].mxu0
    %v437 = vadd.f32 %v344, %v436
    %v438 = vpop.f32.mrb[0].mxu0
    %v439 = vpop.f32.mrb[0].mxu0
    %v440 = vadd.f32 %v344, %v439
    %v441 = vpop.f32.mrb[0].mxu0
    %442 = vdwg.mxu0
    %v443 = vmax.f32 %v429, 0.0
    %v444 = vmax.f32 %v432, 0.0
    %v445 = vmax.f32 %v437, 0.0
    %v446 = vmax.f32 %v440, 0.0
    %v447 = vpack.c.bf16 %v444, %v443
    %v448 = vpack.c.bf16 %v446, %v445
    %s449 = scalar_lea.vmem [#allocation2], 576
    %v450 = vld [vmem:[%s449] sm:$0xf]
    %v451 = vld [vmem:[%s449 + $0x4] sm:$0xf]
    %v452 = vld [vmem:[%s449 + $0x8] sm:$0xf]
    %v453 = vld [vmem:[%s449 + $0xc] sm:$0xf]
    %v454 = vld [vmem:[%s449 + $0x10] sm:$0xf]
    %v455 = vld [vmem:[%s449 + $0x14] sm:$0xf]
    %v456 = vld [vmem:[%s449 + $0x18] sm:$0xf]
    %v457 = vld [vmem:[%s449 + $0x1c] sm:$0xf]
    %v458 = vld [vmem:[%s449 + $0x20] sm:$0xf]
    %v459 = vld [vmem:[%s449 + $0x24] sm:$0xf]
    %v460 = vld [vmem:[%s449 + $0x28] sm:$0xf]
    %v461 = vld [vmem:[%s449 + $0x2c] sm:$0xf]
    %v462 = vld [vmem:[%s449 + $0x30] sm:$0xf]
    %v463 = vld [vmem:[%s449 + $0x34] sm:$0xf]
    %v464 = vld [vmem:[%s449 + $0x38] sm:$0xf]
    %v465 = vld [vmem:[%s449 + $0x3c] sm:$0xf]
    %s466 = scalar_lea.vmem %s3, 9
    %v467 = vld [vmem:[%s466] sm:$0x1]
    %v469 = vlaneseq
    %v470 = vshrl.u32 %v469, 7
    %v471 = vsub.s32 0, %v470
    %v472 = vrot.slane %v467, %v471
    %v490 = vunpack.c.l.b16 %v450
    %v491 = vunpack.c.l.b16 %v451
    %v492 = vunpack.c.l.b16 %v452
    %v493 = vunpack.c.l.b16 %v453
    %v494 = vunpack.c.l.b16 %v454
    %v495 = vunpack.c.l.b16 %v455
    %v496 = vunpack.c.l.b16 %v456
    %v497 = vunpack.c.l.b16 %v457
    %v498 = vunpack.c.l.b16 %v458
    %v499 = vunpack.c.l.b16 %v459
    %v500 = vunpack.c.l.b16 %v460
    %v501 = vunpack.c.l.b16 %v461
    %v502 = vunpack.c.l.b16 %v462
    %v503 = vunpack.c.l.b16 %v463
    %v504 = vunpack.c.l.b16 %v464
    %v505 = vunpack.c.l.b16 %v465
    %v506 = vpack.c.b16 %v491, %v490
    %v507 = vpack.c.b16 %v493, %v492
    %v508 = vpack.c.b16 %v495, %v494
    %v509 = vpack.c.b16 %v497, %v496
    %v510 = vpack.c.b16 %v499, %v498
    %v511 = vpack.c.b16 %v501, %v500
    %v512 = vpack.c.b16 %v503, %v502
    %v513 = vpack.c.b16 %v505, %v504
    %522 = vmatprep.subr.bf16.mxu0 0
    %523 = vmatpush1.bf16.msra.mxu0 %v506
    %524 = vmatprep.subr.bf16.mxu0 0
    %525 = vmatpush1.bf16.msra.mxu0 %v507
    %526 = vmatprep.subr.bf16.mxu0 0
    %527 = vmatpush1.bf16.msra.mxu0 %v508
    %528 = vmatprep.subr.bf16.mxu0 0
    %529 = vmatpush1.bf16.msra.mxu0 %v509
    %530 = vmatprep.subr.bf16.mxu0 0
    %531 = vmatpush1.bf16.msra.mxu0 %v510
    %532 = vmatprep.subr.bf16.mxu0 0
    %533 = vmatpush1.bf16.msra.mxu0 %v511
    %534 = vmatprep.subr.bf16.mxu0 0
    %535 = vmatpush1.bf16.msra.mxu0 %v512
    %536 = vmatprep.subr.bf16.mxu0 0
    %537 = vmatpush1.bf16.msra.mxu0 %v513
    %538 = vmatprep.subr.bf16.mxu0 0
    %539 = vmatpush1.bf16.msra.mxu0 0
    %540 = vmatprep.subr.bf16.mxu0 0
    %541 = vmatpush1.bf16.msra.mxu0 0
    %542 = vmatprep.subr.bf16.mxu0 0
    %543 = vmatpush1.bf16.msra.mxu0 0
    %544 = vmatprep.subr.bf16.mxu0 0
    %545 = vmatpush1.bf16.msra.mxu0 0
    %546 = vmatprep.subr.bf16.mxu0 0
    %547 = vmatpush1.bf16.msra.mxu0 0
    %548 = vmatprep.subr.bf16.mxu0 0
    %549 = vmatpush1.bf16.msra.mxu0 0
    %550 = vmatprep.subr.bf16.mxu0 0
    %551 = vmatpush1.bf16.msra.mxu0 0
    %552 = vmatprep.subr.bf16.mxu0 0
    %553 = vmatpush1.bf16.msra.mxu0 0
    %554 = vmatprep.mubr.bf16.mxu0 0
    %555 = vmatmul.mubr.bf16.gmra.mrb[0].mxu0 %v447
    %v556 = vpop.f32.mrb[0].mxu0
    %v557 = vadd.f32 %v472, %v556
    %v558 = vpop.f32.mrb[0].mxu0
    %v559 = vpop.f32.mrb[0].mxu0
    %v560 = vadd.f32 %v472, %v559
    %v561 = vpop.f32.mrb[0].mxu0
    %562 = vmatprep.mubr.bf16.mxu0 0
    %563 = vmatmul.mubr.bf16.gmra.mrb[0].mxu0 %v448
    %v564 = vpop.f32.mrb[0].mxu0
    %v565 = vadd.f32 %v472, %v564
    %v566 = vpop.f32.mrb[0].mxu0
    %v567 = vpop.f32.mrb[0].mxu0
    %v568 = vadd.f32 %v472, %v567
    %v569 = vpop.f32.mrb[0].mxu0
    %570 = vdwg.mxu0
    %v571 = vpack.c.bf16 %v560, %v557
    %v572 = vpack.c.bf16 %v568, %v565
    %s573 = scalar_lea.vmem [#allocation2], 640
    %v574 = vld [vmem:[%s573] sm:$0xf]
    %v575 = vld [vmem:[%s573 + $0x4] sm:$0xf]
    %v576 = vld [vmem:[%s573 + $0x8] sm:$0xf]
    %v577 = vld [vmem:[%s573 + $0xc] sm:$0xf]
    %v578 = vld [vmem:[%s573 + $0x10] sm:$0xf]
    %v579 = vld [vmem:[%s573 + $0x14] sm:$0xf]
    %v580 = vld [vmem:[%s573 + $0x18] sm:$0xf]
    %v581 = vld [vmem:[%s573 + $0x1c] sm:$0xf]
    %v582 = vld [vmem:[%s573 + $0x20] sm:$0xf]
    %v583 = vld [vmem:[%s573 + $0x24] sm:$0xf]
    %v584 = vld [vmem:[%s573 + $0x28] sm:$0xf]
    %v585 = vld [vmem:[%s573 + $0x2c] sm:$0xf]
    %v586 = vld [vmem:[%s573 + $0x30] sm:$0xf]
    %v587 = vld [vmem:[%s573 + $0x34] sm:$0xf]
    %v588 = vld [vmem:[%s573 + $0x38] sm:$0xf]
    %v589 = vld [vmem:[%s573 + $0x3c] sm:$0xf]
    %s590 = scalar_lea.vmem %s3, 10
    %v591 = vld [vmem:[%s590] sm:$0x1]
    %v593 = vlaneseq
    %v594 = vshrl.u32 %v593, 7
    %v595 = vsub.s32 0, %v594
    %v596 = vrot.slane %v591, %v595
    %v614 = vunpack.c.l.b16 %v574
    %v615 = vunpack.c.l.b16 %v575
    %v616 = vunpack.c.l.b16 %v576
    %v617 = vunpack.c.l.b16 %v577
    %v618 = vunpack.c.l.b16 %v578
    %v619 = vunpack.c.l.b16 %v579
    %v620 = vunpack.c.l.b16 %v580
    %v621 = vunpack.c.l.b16 %v581
    %v622 = vunpack.c.l.b16 %v582
    %v623 = vunpack.c.l.b16 %v583
    %v624 = vunpack.c.l.b16 %v584
    %v625 = vunpack.c.l.b16 %v585
    %v626 = vunpack.c.l.b16 %v586
    %v627 = vunpack.c.l.b16 %v587
    %v628 = vunpack.c.l.b16 %v588
    %v629 = vunpack.c.l.b16 %v589
    %v630 = vpack.c.b16 %v615, %v614
    %v631 = vpack.c.b16 %v617, %v616
    %v632 = vpack.c.b16 %v619, %v618
    %v633 = vpack.c.b16 %v621, %v620
    %v634 = vpack.c.b16 %v623, %v622
    %v635 = vpack.c.b16 %v625, %v624
    %v636 = vpack.c.b16 %v627, %v626
    %v637 = vpack.c.b16 %v629, %v628
    %646 = vmatprep.subr.bf16.mxu0 0
    %647 = vmatpush1.bf16.msra.mxu0 %v630
    %648 = vmatprep.subr.bf16.mxu0 0
    %649 = vmatpush1.bf16.msra.mxu0 %v631
    %650 = vmatprep.subr.bf16.mxu0 0
    %651 = vmatpush1.bf16.msra.mxu0 %v632
    %652 = vmatprep.subr.bf16.mxu0 0
    %653 = vmatpush1.bf16.msra.mxu0 %v633
    %654 = vmatprep.subr.bf16.mxu0 0
    %655 = vmatpush1.bf16.msra.mxu0 %v634
    %656 = vmatprep.subr.bf16.mxu0 0
    %657 = vmatpush1.bf16.msra.mxu0 %v635
    %658 = vmatprep.subr.bf16.mxu0 0
    %659 = vmatpush1.bf16.msra.mxu0 %v636
    %660 = vmatprep.subr.bf16.mxu0 0
    %661 = vmatpush1.bf16.msra.mxu0 %v637
    %662 = vmatprep.subr.bf16.mxu0 0
    %663 = vmatpush1.bf16.msra.mxu0 0
    %664 = vmatprep.subr.bf16.mxu0 0
    %665 = vmatpush1.bf16.msra.mxu0 0
    %666 = vmatprep.subr.bf16.mxu0 0
    %667 = vmatpush1.bf16.msra.mxu0 0
    %668 = vmatprep.subr.bf16.mxu0 0
    %669 = vmatpush1.bf16.msra.mxu0 0
    %670 = vmatprep.subr.bf16.mxu0 0
    %671 = vmatpush1.bf16.msra.mxu0 0
    %672 = vmatprep.subr.bf16.mxu0 0
    %673 = vmatpush1.bf16.msra.mxu0 0
    %674 = vmatprep.subr.bf16.mxu0 0
    %675 = vmatpush1.bf16.msra.mxu0 0
    %676 = vmatprep.subr.bf16.mxu0 0
    %677 = vmatpush1.bf16.msra.mxu0 0
    %678 = vmatprep.mubr.bf16.mxu0 0
    %679 = vmatmul.mubr.bf16.gmra.mrb[0].mxu0 %v571
    %v680 = vpop.f32.mrb[0].mxu0
    %v681 = vadd.f32 %v596, %v680
    %v682 = vpop.f32.mrb[0].mxu0
    %v683 = vpop.f32.mrb[0].mxu0
    %v684 = vadd.f32 %v596, %v683
    %v685 = vpop.f32.mrb[0].mxu0
    %686 = vmatprep.mubr.bf16.mxu0 0
    %687 = vmatmul.mubr.bf16.gmra.mrb[0].mxu0 %v572
    %v688 = vpop.f32.mrb[0].mxu0
    %v689 = vadd.f32 %v596, %v688
    %v690 = vpop.f32.mrb[0].mxu0
    %v691 = vpop.f32.mrb[0].mxu0
    %v692 = vadd.f32 %v596, %v691
    %v693 = vpop.f32.mrb[0].mxu0
    %694 = vdwg.mxu0
    %v695 = vmax.f32 %v681, 0.0
    %v696 = vmax.f32 %v684, 0.0
    %v697 = vmax.f32 %v689, 0.0
    %v698 = vmax.f32 %v692, 0.0
    %v699 = vpack.c.bf16 %v696, %v695
    %v700 = vpack.c.bf16 %v698, %v697
    %s701 = scalar_lea.vmem [#allocation2], 704
    %v702 = vld [vmem:[%s701] sm:$0xf]
    %v703 = vld [vmem:[%s701 + $0x4] sm:$0xf]
    %v704 = vld [vmem:[%s701 + $0x8] sm:$0xf]
    %v705 = vld [vmem:[%s701 + $0xc] sm:$0xf]
    %v706 = vld [vmem:[%s701 + $0x10] sm:$0xf]
    %v707 = vld [vmem:[%s701 + $0x14] sm:$0xf]
    %v708 = vld [vmem:[%s701 + $0x18] sm:$0xf]
    %v709 = vld [vmem:[%s701 + $0x1c] sm:$0xf]
    %v710 = vld [vmem:[%s701 + $0x20] sm:$0xf]
    %v711 = vld [vmem:[%s701 + $0x24] sm:$0xf]
    %v712 = vld [vmem:[%s701 + $0x28] sm:$0xf]
    %v713 = vld [vmem:[%s701 + $0x2c] sm:$0xf]
    %v714 = vld [vmem:[%s701 + $0x30] sm:$0xf]
    %v715 = vld [vmem:[%s701 + $0x34] sm:$0xf]
    %v716 = vld [vmem:[%s701 + $0x38] sm:$0xf]
    %v717 = vld [vmem:[%s701 + $0x3c] sm:$0xf]
    %s718 = scalar_lea.vmem %s3, 11
    %v719 = vld [vmem:[%s718] sm:$0x1]
    %v721 = vlaneseq
    %v722 = vshrl.u32 %v721, 7
    %v723 = vsub.s32 0, %v722
    %v724 = vrot.slane %v719, %v723
    %v742 = vunpack.c.l.b16 %v702
    %v743 = vunpack.c.l.b16 %v703
    %v744 = vunpack.c.l.b16 %v704
    %v745 = vunpack.c.l.b16 %v705
    %v746 = vunpack.c.l.b16 %v706
    %v747 = vunpack.c.l.b16 %v707
    %v748 = vunpack.c.l.b16 %v708
    %v749 = vunpack.c.l.b16 %v709
    %v750 = vunpack.c.l.b16 %v710
    %v751 = vunpack.c.l.b16 %v711
    %v752 = vunpack.c.l.b16 %v712
    %v753 = vunpack.c.l.b16 %v713
    %v754 = vunpack.c.l.b16 %v714
    %v755 = vunpack.c.l.b16 %v715
    %v756 = vunpack.c.l.b16 %v716
    %v757 = vunpack.c.l.b16 %v717
    %v758 = vpack.c.b16 %v743, %v742
    %v759 = vpack.c.b16 %v745, %v744
    %v760 = vpack.c.b16 %v747, %v746
    %v761 = vpack.c.b16 %v749, %v748
    %v762 = vpack.c.b16 %v751, %v750
    %v763 = vpack.c.b16 %v753, %v752
    %v764 = vpack.c.b16 %v755, %v754
    %v765 = vpack.c.b16 %v757, %v756
    %774 = vmatprep.subr.bf16.mxu0 0
    %775 = vmatpush1.bf16.msra.mxu0 %v758
    %776 = vmatprep.subr.bf16.mxu0 0
    %777 = vmatpush1.bf16.msra.mxu0 %v759
    %778 = vmatprep.subr.bf16.mxu0 0
    %779 = vmatpush1.bf16.msra.mxu0 %v760
    %780 = vmatprep.subr.bf16.mxu0 0
    %781 = vmatpush1.bf16.msra.mxu0 %v761
    %782 = vmatprep.subr.bf16.mxu0 0
    %783 = vmatpush1.bf16.msra.mxu0 %v762
    %784 = vmatprep.subr.bf16.mxu0 0
    %785 = vmatpush1.bf16.msra.mxu0 %v763
    %786 = vmatprep.subr.bf16.mxu0 0
    %787 = vmatpush1.bf16.msra.mxu0 %v764
    %788 = vmatprep.subr.bf16.mxu0 0
    %789 = vmatpush1.bf16.msra.mxu0 %v765
    %790 = vmatprep.subr.bf16.mxu0 0
    %791 = vmatpush1.bf16.msra.mxu0 0
    %792 = vmatprep.subr.bf16.mxu0 0
    %793 = vmatpush1.bf16.msra.mxu0 0
    %794 = vmatprep.subr.bf16.mxu0 0
    %795 = vmatpush1.bf16.msra.mxu0 0
    %796 = vmatprep.subr.bf16.mxu0 0
    %797 = vmatpush1.bf16.msra.mxu0 0
    %798 = vmatprep.subr.bf16.mxu0 0
    %799 = vmatpush1.bf16.msra.mxu0 0
    %800 = vmatprep.subr.bf16.mxu0 0
    %801 = vmatpush1.bf16.msra.mxu0 0
    %802 = vmatprep.subr.bf16.mxu0 0
    %803 = vmatpush1.bf16.msra.mxu0 0
    %804 = vmatprep.subr.bf16.mxu0 0
    %805 = vmatpush1.bf16.msra.mxu0 0
    %806 = vmatprep.mubr.bf16.mxu0 0
    %807 = vmatmul.mubr.bf16.gmra.mrb[0].mxu0 %v699
    %v808 = vpop.f32.mrb[0].mxu0
    %v809 = vadd.f32 %v724, %v808
    %v810 = vpop.f32.mrb[0].mxu0
    %v811 = vpop.f32.mrb[0].mxu0
    %v812 = vadd.f32 %v724, %v811
    %v813 = vpop.f32.mrb[0].mxu0
    %814 = vmatprep.mubr.bf16.mxu0 0
    %815 = vmatmul.mubr.bf16.gmra.mrb[0].mxu0 %v700
    %v816 = vpop.f32.mrb[0].mxu0
    %v817 = vadd.f32 %v724, %v816
    %v818 = vpop.f32.mrb[0].mxu0
    %v819 = vpop.f32.mrb[0].mxu0
    %v820 = vadd.f32 %v724, %v819
    %v821 = vpop.f32.mrb[0].mxu0
    %822 = vdwg.mxu0
    %v823 = vpack.c.bf16 %v812, %v809
    %v824 = vpack.c.bf16 %v820, %v817
    %v825 = vld [vmem:[%s1] sm:$0x1]
    %v826 = vld [vmem:[%s1 + $0x1] sm:$0x1]
    %vm827 = vcmask 122880
    %v828 = vsel %vm827, %v825, 0.0
    %829 = vadd.xlane.f32.xlu0 %v828
    %v830 = vpop.xlane.xlu0 %829
    %v831 = vpack.c.bf16 %v825, %v825
    %vm832 = vcmask 130048
    %v834 = vsel %vm832, %v831, 0
    %836 = vmatprep.subr.bf16.mxu0 0
    %837 = vmatpush1.bf16.msra.mxu0 %v823
    %838 = vmatprep.subr.bf16.mxu0 0
    %839 = vmatpush1.bf16.msra.mxu0 0
    %840 = vmatprep.subr.bf16.mxu0 0
    %841 = vmatpush1.bf16.msra.mxu0 0
    %842 = vmatprep.subr.bf16.mxu0 0
    %843 = vmatpush1.bf16.msra.mxu0 0
    %844 = vmatprep.subr.bf16.mxu0 0
    %845 = vmatpush1.bf16.msra.mxu0 0
    %846 = vmatprep.subr.bf16.mxu0 0
    %847 = vmatpush1.bf16.msra.mxu0 0
    %848 = vmatprep.subr.bf16.mxu0 0
    %849 = vmatpush1.bf16.msra.mxu0 0
    %850 = vmatprep.subr.bf16.mxu0 0
    %851 = vmatpush1.bf16.msra.mxu0 0
    %852 = vmatprep.subr.bf16.mxu0 0
    %853 = vmatpush1.bf16.msra.mxu0 0
    %854 = vmatprep.subr.bf16.mxu0 0
    %855 = vmatpush1.bf16.msra.mxu0 0
    %856 = vmatprep.subr.bf16.mxu0 0
    %857 = vmatpush1.bf16.msra.mxu0 0
    %858 = vmatprep.subr.bf16.mxu0 0
    %859 = vmatpush1.bf16.msra.mxu0 0
    %860 = vmatprep.subr.bf16.mxu0 0
    %861 = vmatpush1.bf16.msra.mxu0 0
    %862 = vmatprep.subr.bf16.mxu0 0
    %863 = vmatpush1.bf16.msra.mxu0 0
    %864 = vmatprep.subr.bf16.mxu0 0
    %865 = vmatpush1.bf16.msra.mxu0 0
    %866 = vmatprep.subr.bf16.mxu0 0
    %867 = vmatpush1.bf16.msra.mxu0 0
    %868 = vmatprep.mubr.bf16.mxu0 0
    %869 = vmatmul.mubr.bf16.gmra.mrb[0].mxu0 %v834
    %v870 = vpop.f32.mrb[0].mxu0
    %v871 = vadd.f32 0.0, %v870
    %v872 = vpop.f32.mrb[0].mxu0
    %v873 = vpop.f32.mrb[0].mxu0
    %v874 = vpop.f32.mrb[0].mxu0
    %875 = vdwg.mxu0
    %v876 = vrcp.pop %v830
    %v877 = vmul.f32 %v871, %v876
    %v878 = vsel %vm827, %v826, 0.0
    %879 = vadd.xlane.f32.xlu0 %v878
    %v880 = vpop.xlane.xlu0 %879
    %v881 = vpack.c.bf16 %v826, %v826
    %v883 = vsel %vm832, %v881, 0
    %885 = vmatprep.subr.bf16.mxu0 0
    %886 = vmatpush1.bf16.msra.mxu0 %v824
    %887 = vmatprep.subr.bf16.mxu0 0
    %888 = vmatpush1.bf16.msra.mxu0 0
    %889 = vmatprep.subr.bf16.mxu0 0
    %890 = vmatpush1.bf16.msra.mxu0 0
    %891 = vmatprep.subr.bf16.mxu0 0
    %892 = vmatpush1.bf16.msra.mxu0 0
    %893 = vmatprep.subr.bf16.mxu0 0
    %894 = vmatpush1.bf16.msra.mxu0 0
    %895 = vmatprep.subr.bf16.mxu0 0
    %896 = vmatpush1.bf16.msra.mxu0 0
    %897 = vmatprep.subr.bf16.mxu0 0
    %898 = vmatpush1.bf16.msra.mxu0 0
    %899 = vmatprep.subr.bf16.mxu0 0
    %900 = vmatpush1.bf16.msra.mxu0 0
    %901 = vmatprep.subr.bf16.mxu0 0
    %902 = vmatpush1.bf16.msra.mxu0 0
    %903 = vmatprep.subr.bf16.mxu0 0
    %904 = vmatpush1.bf16.msra.mxu0 0
    %905 = vmatprep.subr.bf16.mxu0 0
    %906 = vmatpush1.bf16.msra.mxu0 0
    %907 = vmatprep.subr.bf16.mxu0 0
    %908 = vmatpush1.bf16.msra.mxu0 0
    %909 = vmatprep.subr.bf16.mxu0 0
    %910 = vmatpush1.bf16.msra.mxu0 0
    %911 = vmatprep.subr.bf16.mxu0 0
    %912 = vmatpush1.bf16.msra.mxu0 0
    %913 = vmatprep.subr.bf16.mxu0 0
    %914 = vmatpush1.bf16.msra.mxu0 0
    %915 = vmatprep.subr.bf16.mxu0 0
    %916 = vmatpush1.bf16.msra.mxu0 0
    %917 = vmatprep.mubr.bf16.mxu0 0
    %918 = vmatmul.mubr.bf16.gmra.mrb[0].mxu0 %v883
    %v919 = vpop.f32.mrb[0].mxu0
    %v920 = vadd.f32 0.0, %v919
    %v921 = vpop.f32.mrb[0].mxu0
    %v922 = vpop.f32.mrb[0].mxu0
    %v923 = vpop.f32.mrb[0].mxu0
    %924 = vdwg.mxu0
    %v925 = vrcp.pop %v880
    %v926 = vmul.f32 %v920, %v925
    %v928 = vrot.slane %v926, 7
    %vm930 = vcmask 1040384
    %v931 = vsel %vm930, %v877, %v928
    %v932 = vpack.c.bf16 %v931, %v931
    %v933 = vld [vmem:[%s5] sm:$0xf]
    %v934 = vld [vmem:[%s5 + $0x4] sm:$0xf]
    %v935 = vld [vmem:[%s5 + $0x8] sm:$0xf]
    %v936 = vld [vmem:[%s5 + $0xc] sm:$0xf]
    %v937 = vld [vmem:[%s5 + $0x10] sm:$0xf]
    %v938 = vld [vmem:[%s5 + $0x14] sm:$0xf]
    %v939 = vld [vmem:[%s5 + $0x18] sm:$0xf]
    %v940 = vld [vmem:[%s5 + $0x1c] sm:$0xf]
    %v941 = vld [vmem:[%s5 + $0x20] sm:$0xf]
    %v942 = vld [vmem:[%s5 + $0x24] sm:$0xf]
    %v943 = vld [vmem:[%s5 + $0x28] sm:$0xf]
    %v944 = vld [vmem:[%s5 + $0x2c] sm:$0xf]
    %v945 = vld [vmem:[%s5 + $0x30] sm:$0xf]
    %v946 = vld [vmem:[%s5 + $0x34] sm:$0xf]
    %v947 = vld [vmem:[%s5 + $0x38] sm:$0xf]
    %v948 = vld [vmem:[%s5 + $0x3c] sm:$0xf]
    %v965 = vunpack.c.l.b16 %v933
    %v966 = vunpack.c.l.b16 %v934
    %v967 = vunpack.c.l.b16 %v935
    %v968 = vunpack.c.l.b16 %v936
    %v969 = vunpack.c.l.b16 %v937
    %v970 = vunpack.c.l.b16 %v938
    %v971 = vunpack.c.l.b16 %v939
    %v972 = vunpack.c.l.b16 %v940
    %v973 = vunpack.c.l.b16 %v941
    %v974 = vunpack.c.l.b16 %v942
    %v975 = vunpack.c.l.b16 %v943
    %v976 = vunpack.c.l.b16 %v944
    %v977 = vunpack.c.l.b16 %v945
    %v978 = vunpack.c.l.b16 %v946
    %v979 = vunpack.c.l.b16 %v947
    %v980 = vunpack.c.l.b16 %v948
    %v981 = vpack.c.b16 %v966, %v965
    %v982 = vpack.c.b16 %v968, %v967
    %v983 = vpack.c.b16 %v970, %v969
    %v984 = vpack.c.b16 %v972, %v971
    %v985 = vpack.c.b16 %v974, %v973
    %v986 = vpack.c.b16 %v976, %v975
    %v987 = vpack.c.b16 %v978, %v977
    %v988 = vpack.c.b16 %v980, %v979
    %997 = vmatprep.subr.bf16.mxu0 0
    %998 = vmatpush1.bf16.msra.mxu0 %v981
    %999 = vmatprep.subr.bf16.mxu0 0
    %1000 = vmatpush1.bf16.msra.mxu0 %v982
    %1001 = vmatprep.subr.bf16.mxu0 0
    %1002 = vmatpush1.bf16.msra.mxu0 %v983
    %1003 = vmatprep.subr.bf16.mxu0 0
    %1004 = vmatpush1.bf16.msra.mxu0 %v984
    %1005 = vmatprep.subr.bf16.mxu0 0
    %1006 = vmatpush1.bf16.msra.mxu0 %v985
    %1007 = vmatprep.subr.bf16.mxu0 0
    %1008 = vmatpush1.bf16.msra.mxu0 %v986
    %1009 = vmatprep.subr.bf16.mxu0 0
    %1010 = vmatpush1.bf16.msra.mxu0 %v987
    %1011 = vmatprep.subr.bf16.mxu0 0
    %1012 = vmatpush1.bf16.msra.mxu0 %v988
    %1013 = vmatprep.subr.bf16.mxu0 0
    %1014 = vmatpush1.bf16.msra.mxu0 0
    %1015 = vmatprep.subr.bf16.mxu0 0
    %1016 = vmatpush1.bf16.msra.mxu0 0
    %1017 = vmatprep.subr.bf16.mxu0 0
    %1018 = vmatpush1.bf16.msra.mxu0 0
    %1019 = vmatprep.subr.bf16.mxu0 0
    %1020 = vmatpush1.bf16.msra.mxu0 0
    %1021 = vmatprep.subr.bf16.mxu0 0
    %1022 = vmatpush1.bf16.msra.mxu0 0
    %1023 = vmatprep.subr.bf16.mxu0 0
    %1024 = vmatpush1.bf16.msra.mxu0 0
    %1025 = vmatprep.subr.bf16.mxu0 0
    %1026 = vmatpush1.bf16.msra.mxu0 0
    %1027 = vmatprep.subr.bf16.mxu0 0
    %1028 = vmatpush1.bf16.msra.mxu0 0
    %1029 = vmatprep.mubr.bf16.mxu0 0
    %1030 = vmatmul.mubr.bf16.gmra.mrb[0].mxu0 %v932
    %v1031 = vpop.f32.mrb[0].mxu0
    %v1032 = vadd.f32 0.0, %v1031
    %v1033 = vpop.f32.mrb[0].mxu0
    %v1034 = vpop.f32.mrb[0].mxu0
    %v1035 = vpop.f32.mrb[0].mxu0
    %1036 = vdwg.mxu0
    %v1037 = vld [vmem:[#allocation2] sm:$0xf]
    %v1038 = vld [vmem:[#allocation2 + $0x4] sm:$0xf]
    %v1039 = vld [vmem:[#allocation2 + $0x8] sm:$0xf]
    %v1040 = vld [vmem:[#allocation2 + $0xc] sm:$0xf]
    %v1041 = vld [vmem:[#allocation2 + $0x10] sm:$0xf]
    %v1042 = vld [vmem:[#allocation2 + $0x14] sm:$0xf]
    %v1043 = vld [vmem:[#allocation2 + $0x18] sm:$0xf]
    %v1044 = vld [vmem:[#allocation2 + $0x1c] sm:$0xf]
    %v1045 = vld [vmem:[#allocation2 + $0x20] sm:$0xf]
    %v1046 = vld [vmem:[#allocation2 + $0x24] sm:$0xf]
    %v1047 = vld [vmem:[#allocation2 + $0x28] sm:$0xf]
    %v1048 = vld [vmem:[#allocation2 + $0x2c] sm:$0xf]
    %v1049 = vld [vmem:[#allocation2 + $0x30] sm:$0xf]
    %v1050 = vld [vmem:[#allocation2 + $0x34] sm:$0xf]
    %v1051 = vld [vmem:[#allocation2 + $0x38] sm:$0xf]
    %v1052 = vld [vmem:[#allocation2 + $0x3c] sm:$0xf]
    %v1053 = vld [vmem:[%s3] sm:$0x1]
    %v1055 = vlaneseq
    %v1056 = vshrl.u32 %v1055, 7
    %v1057 = vsub.s32 0, %v1056
    %v1058 = vrot.slane %v1053, %v1057
    %v1076 = vunpack.c.l.b16 %v1037
    %v1077 = vunpack.c.l.b16 %v1038
    %v1078 = vunpack.c.l.b16 %v1039
    %v1079 = vunpack.c.l.b16 %v1040
    %v1080 = vunpack.c.l.b16 %v1041
    %v1081 = vunpack.c.l.b16 %v1042
    %v1082 = vunpack.c.l.b16 %v1043
    %v1083 = vunpack.c.l.b16 %v1044
    %v1084 = vunpack.c.l.b16 %v1045
    %v1085 = vunpack.c.l.b16 %v1046
    %v1086 = vunpack.c.l.b16 %v1047
    %v1087 = vunpack.c.l.b16 %v1048
    %v1088 = vunpack.c.l.b16 %v1049
    %v1089 = vunpack.c.l.b16 %v1050
    %v1090 = vunpack.c.l.b16 %v1051
    %v1091 = vunpack.c.l.b16 %v1052
    %v1092 = vpack.c.b16 %v1077, %v1076
    %v1093 = vpack.c.b16 %v1079, %v1078
    %v1094 = vpack.c.b16 %v1081, %v1080
    %v1095 = vpack.c.b16 %v1083, %v1082
    %v1096 = vpack.c.b16 %v1085, %v1084
    %v1097 = vpack.c.b16 %v1087, %v1086
    %v1098 = vpack.c.b16 %v1089, %v1088
    %v1099 = vpack.c.b16 %v1091, %v1090
    %1108 = vmatprep.subr.bf16.mxu0 0
    %1109 = vmatpush1.bf16.msra.mxu0 %v1092
    %1110 = vmatprep.subr.bf16.mxu0 0
    %1111 = vmatpush1.bf16.msra.mxu0 %v1093
    %1112 = vmatprep.subr.bf16.mxu0 0
    %1113 = vmatpush1.bf16.msra.mxu0 %v1094
    %1114 = vmatprep.subr.bf16.mxu0 0
    %1115 = vmatpush1.bf16.msra.mxu0 %v1095
    %1116 = vmatprep.subr.bf16.mxu0 0
    %1117 = vmatpush1.bf16.msra.mxu0 %v1096
    %1118 = vmatprep.subr.bf16.mxu0 0
    %1119 = vmatpush1.bf16.msra.mxu0 %v1097
    %1120 = vmatprep.subr.bf16.mxu0 0
    %1121 = vmatpush1.bf16.msra.mxu0 %v1098
    %1122 = vmatprep.subr.bf16.mxu0 0
    %1123 = vmatpush1.bf16.msra.mxu0 %v1099
    %1124 = vmatprep.subr.bf16.mxu0 0
    %1125 = vmatpush1.bf16.msra.mxu0 0
    %1126 = vmatprep.subr.bf16.mxu0 0
    %1127 = vmatpush1.bf16.msra.mxu0 0
    %1128 = vmatprep.subr.bf16.mxu0 0
    %1129 = vmatpush1.bf16.msra.mxu0 0
    %1130 = vmatprep.subr.bf16.mxu0 0
    %1131 = vmatpush1.bf16.msra.mxu0 0
    %1132 = vmatprep.subr.bf16.mxu0 0
    %1133 = vmatpush1.bf16.msra.mxu0 0
    %1134 = vmatprep.subr.bf16.mxu0 0
    %1135 = vmatpush1.bf16.msra.mxu0 0
    %1136 = vmatprep.subr.bf16.mxu0 0
    %1137 = vmatpush1.bf16.msra.mxu0 0
    %1138 = vmatprep.subr.bf16.mxu0 0
    %1139 = vmatpush1.bf16.msra.mxu0 0
    %1140 = vmatprep.mubr.bf16.mxu0 0
    %1141 = vmatmul.mubr.bf16.gmra.mrb[0].mxu0 %v90
    %v1142 = vpop.f32.mrb[0].mxu0
    %v1143 = vadd.f32 %v1058, %v1142
    %v1144 = vpop.f32.mrb[0].mxu0
    %v1145 = vpop.f32.mrb[0].mxu0
    %v1146 = vadd.f32 %v1058, %v1145
    %v1147 = vpop.f32.mrb[0].mxu0
    %1148 = vmatprep.mubr.bf16.mxu0 0
    %1149 = vmatmul.mubr.bf16.gmra.mrb[0].mxu0 %v91
    %v1150 = vpop.f32.mrb[0].mxu0
    %v1151 = vadd.f32 %v1058, %v1150
    %v1152 = vpop.f32.mrb[0].mxu0
    %v1153 = vpop.f32.mrb[0].mxu0
    %v1154 = vadd.f32 %v1058, %v1153
    %v1155 = vpop.f32.mrb[0].mxu0
    %1156 = vdwg.mxu0
    %v1157 = vmax.f32 %v1143, 0.0
    %v1158 = vmax.f32 %v1146, 0.0
    %v1159 = vmax.f32 %v1151, 0.0
    %v1160 = vmax.f32 %v1154, 0.0
    %v1161 = vpack.c.bf16 %v1158, %v1157
    %v1162 = vpack.c.bf16 %v1160, %v1159
    %s1163 = scalar_lea.vmem [#allocation2], 64
    %v1164 = vld [vmem:[%s1163] sm:$0xf]
    %v1165 = vld [vmem:[%s1163 + $0x4] sm:$0xf]
    %v1166 = vld [vmem:[%s1163 + $0x8] sm:$0xf]
    %v1167 = vld [vmem:[%s1163 + $0xc] sm:$0xf]
    %v1168 = vld [vmem:[%s1163 + $0x10] sm:$0xf]
    %v1169 = vld [vmem:[%s1163 + $0x14] sm:$0xf]
    %v1170 = vld [vmem:[%s1163 + $0x18] sm:$0xf]
    %v1171 = vld [vmem:[%s1163 + $0x1c] sm:$0xf]
    %v1172 = vld [vmem:[%s1163 + $0x20] sm:$0xf]
    %v1173 = vld [vmem:[%s1163 + $0x24] sm:$0xf]
    %v1174 = vld [vmem:[%s1163 + $0x28] sm:$0xf]
    %v1175 = vld [vmem:[%s1163 + $0x2c] sm:$0xf]
    %v1176 = vld [vmem:[%s1163 + $0x30] sm:$0xf]
    %v1177 = vld [vmem:[%s1163 + $0x34] sm:$0xf]
    %v1178 = vld [vmem:[%s1163 + $0x38] sm:$0xf]
    %v1179 = vld [vmem:[%s1163 + $0x3c] sm:$0xf]
    %s1180 = scalar_lea.vmem %s3, 1
    %v1181 = vld [vmem:[%s1180] sm:$0x1]
    %v1183 = vlaneseq
    %v1184 = vshrl.u32 %v1183, 7
    %v1185 = vsub.s32 0, %v1184
    %v1186 = vrot.slane %v1181, %v1185
    %v1204 = vunpack.c.l.b16 %v1164
    %v1205 = vunpack.c.l.b16 %v1165
    %v1206 = vunpack.c.l.b16 %v1166
    %v1207 = vunpack.c.l.b16 %v1167
    %v1208 = vunpack.c.l.b16 %v1168
    %v1209 = vunpack.c.l.b16 %v1169
    %v1210 = vunpack.c.l.b16 %v1170
    %v1211 = vunpack.c.l.b16 %v1171
    %v1212 = vunpack.c.l.b16 %v1172
    %v1213 = vunpack.c.l.b16 %v1173
    %v1214 = vunpack.c.l.b16 %v1174
    %v1215 = vunpack.c.l.b16 %v1175
    %v1216 = vunpack.c.l.b16 %v1176
    %v1217 = vunpack.c.l.b16 %v1177
    %v1218 = vunpack.c.l.b16 %v1178
    %v1219 = vunpack.c.l.b16 %v1179
    %v1220 = vpack.c.b16 %v1205, %v1204
    %v1221 = vpack.c.b16 %v1207, %v1206
    %v1222 = vpack.c.b16 %v1209, %v1208
    %v1223 = vpack.c.b16 %v1211, %v1210
    %v1224 = vpack.c.b16 %v1213, %v1212
    %v1225 = vpack.c.b16 %v1215, %v1214
    %v1226 = vpack.c.b16 %v1217, %v1216
    %v1227 = vpack.c.b16 %v1219, %v1218
    %1236 = vmatprep.subr.bf16.mxu0 0
    %1237 = vmatpush1.bf16.msra.mxu0 %v1220
    %1238 = vmatprep.subr.bf16.mxu0 0
    %1239 = vmatpush1.bf16.msra.mxu0 %v1221
    %1240 = vmatprep.subr.bf16.mxu0 0
    %1241 = vmatpush1.bf16.msra.mxu0 %v1222
    %1242 = vmatprep.subr.bf16.mxu0 0
    %1243 = vmatpush1.bf16.msra.mxu0 %v1223
    %1244 = vmatprep.subr.bf16.mxu0 0
    %1245 = vmatpush1.bf16.msra.mxu0 %v1224
    %1246 = vmatprep.subr.bf16.mxu0 0
    %1247 = vmatpush1.bf16.msra.mxu0 %v1225
    %1248 = vmatprep.subr.bf16.mxu0 0
    %1249 = vmatpush1.bf16.msra.mxu0 %v1226
    %1250 = vmatprep.subr.bf16.mxu0 0
    %1251 = vmatpush1.bf16.msra.mxu0 %v1227
    %1252 = vmatprep.subr.bf16.mxu0 0
    %1253 = vmatpush1.bf16.msra.mxu0 0
    %1254 = vmatprep.subr.bf16.mxu0 0
    %1255 = vmatpush1.bf16.msra.mxu0 0
    %1256 = vmatprep.subr.bf16.mxu0 0
    %1257 = vmatpush1.bf16.msra.mxu0 0
    %1258 = vmatprep.subr.bf16.mxu0 0
    %1259 = vmatpush1.bf16.msra.mxu0 0
    %1260 = vmatprep.subr.bf16.mxu0 0
    %1261 = vmatpush1.bf16.msra.mxu0 0
    %1262 = vmatprep.subr.bf16.mxu0 0
    %1263 = vmatpush1.bf16.msra.mxu0 0
    %1264 = vmatprep.subr.bf16.mxu0 0
    %1265 = vmatpush1.bf16.msra.mxu0 0
    %1266 = vmatprep.subr.bf16.mxu0 0
    %1267 = vmatpush1.bf16.msra.mxu0 0
    %1268 = vmatprep.mubr.bf16.mxu0 0
    %1269 = vmatmul.mubr.bf16.gmra.mrb[0].mxu0 %v1161
    %v1270 = vpop.f32.mrb[0].mxu0
    %v1271 = vadd.f32 %v1186, %v1270
    %v1272 = vpop.f32.mrb[0].mxu0
    %v1273 = vpop.f32.mrb[0].mxu0
    %v1274 = vadd.f32 %v1186, %v1273
    %v1275 = vpop.f32.mrb[0].mxu0
    %1276 = vmatprep.mubr.bf16.mxu0 0
    %1277 = vmatmul.mubr.bf16.gmra.mrb[0].mxu0 %v1162
    %v1278 = vpop.f32.mrb[0].mxu0
    %v1279 = vadd.f32 %v1186, %v1278
    %v1280 = vpop.f32.mrb[0].mxu0
    %v1281 = vpop.f32.mrb[0].mxu0
    %v1282 = vadd.f32 %v1186, %v1281
    %v1283 = vpop.f32.mrb[0].mxu0
    %1284 = vdwg.mxu0
    %v1285 = vpack.c.bf16 %v1274, %v1271
    %v1286 = vpack.c.bf16 %v1282, %v1279
    %s1287 = scalar_lea.vmem [#allocation2], 128
    %v1288 = vld [vmem:[%s1287] sm:$0xf]
    %v1289 = vld [vmem:[%s1287 + $0x4] sm:$0xf]
    %v1290 = vld [vmem:[%s1287 + $0x8] sm:$0xf]
    %v1291 = vld [vmem:[%s1287 + $0xc] sm:$0xf]
    %v1292 = vld [vmem:[%s1287 + $0x10] sm:$0xf]
    %v1293 = vld [vmem:[%s1287 + $0x14] sm:$0xf]
    %v1294 = vld [vmem:[%s1287 + $0x18] sm:$0xf]
    %v1295 = vld [vmem:[%s1287 + $0x1c] sm:$0xf]
    %v1296 = vld [vmem:[%s1287 + $0x20] sm:$0xf]
    %v1297 = vld [vmem:[%s1287 + $0x24] sm:$0xf]
    %v1298 = vld [vmem:[%s1287 + $0x28] sm:$0xf]
    %v1299 = vld [vmem:[%s1287 + $0x2c] sm:$0xf]
    %v1300 = vld [vmem:[%s1287 + $0x30] sm:$0xf]
    %v1301 = vld [vmem:[%s1287 + $0x34] sm:$0xf]
    %v1302 = vld [vmem:[%s1287 + $0x38] sm:$0xf]
    %v1303 = vld [vmem:[%s1287 + $0x3c] sm:$0xf]
    %s1304 = scalar_lea.vmem %s3, 2
    %v1305 = vld [vmem:[%s1304] sm:$0x1]
    %v1307 = vlaneseq
    %v1308 = vshrl.u32 %v1307, 7
    %v1309 = vsub.s32 0, %v1308
    %v1310 = vrot.slane %v1305, %v1309
    %v1328 = vunpack.c.l.b16 %v1288
    %v1329 = vunpack.c.l.b16 %v1289
    %v1330 = vunpack.c.l.b16 %v1290
    %v1331 = vunpack.c.l.b16 %v1291
    %v1332 = vunpack.c.l.b16 %v1292
    %v1333 = vunpack.c.l.b16 %v1293
    %v1334 = vunpack.c.l.b16 %v1294
    %v1335 = vunpack.c.l.b16 %v1295
    %v1336 = vunpack.c.l.b16 %v1296
    %v1337 = vunpack.c.l.b16 %v1297
    %v1338 = vunpack.c.l.b16 %v1298
    %v1339 = vunpack.c.l.b16 %v1299
    %v1340 = vunpack.c.l.b16 %v1300
    %v1341 = vunpack.c.l.b16 %v1301
    %v1342 = vunpack.c.l.b16 %v1302
    %v1343 = vunpack.c.l.b16 %v1303
    %v1344 = vpack.c.b16 %v1329, %v1328
    %v1345 = vpack.c.b16 %v1331, %v1330
    %v1346 = vpack.c.b16 %v1333, %v1332
    %v1347 = vpack.c.b16 %v1335, %v1334
    %v1348 = vpack.c.b16 %v1337, %v1336
    %v1349 = vpack.c.b16 %v1339, %v1338
    %v1350 = vpack.c.b16 %v1341, %v1340
    %v1351 = vpack.c.b16 %v1343, %v1342
    %1360 = vmatprep.subr.bf16.mxu0 0
    %1361 = vmatpush1.bf16.msra.mxu0 %v1344
    %1362 = vmatprep.subr.bf16.mxu0 0
    %1363 = vmatpush1.bf16.msra.mxu0 %v1345
    %1364 = vmatprep.subr.bf16.mxu0 0
    %1365 = vmatpush1.bf16.msra.mxu0 %v1346
    %1366 = vmatprep.subr.bf16.mxu0 0
    %1367 = vmatpush1.bf16.msra.mxu0 %v1347
    %1368 = vmatprep.subr.bf16.mxu0 0
    %1369 = vmatpush1.bf16.msra.mxu0 %v1348
    %1370 = vmatprep.subr.bf16.mxu0 0
    %1371 = vmatpush1.bf16.msra.mxu0 %v1349
    %1372 = vmatprep.subr.bf16.mxu0 0
    %1373 = vmatpush1.bf16.msra.mxu0 %v1350
    %1374 = vmatprep.subr.bf16.mxu0 0
    %1375 = vmatpush1.bf16.msra.mxu0 %v1351
    %1376 = vmatprep.subr.bf16.mxu0 0
    %1377 = vmatpush1.bf16.msra.mxu0 0
    %1378 = vmatprep.subr.bf16.mxu0 0
    %1379 = vmatpush1.bf16.msra.mxu0 0
    %1380 = vmatprep.subr.bf16.mxu0 0
    %1381 = vmatpush1.bf16.msra.mxu0 0
    %1382 = vmatprep.subr.bf16.mxu0 0
    %1383 = vmatpush1.bf16.msra.mxu0 0
    %1384 = vmatprep.subr.bf16.mxu0 0
    %1385 = vmatpush1.bf16.msra.mxu0 0
    %1386 = vmatprep.subr.bf16.mxu0 0
    %1387 = vmatpush1.bf16.msra.mxu0 0
    %1388 = vmatprep.subr.bf16.mxu0 0
    %1389 = vmatpush1.bf16.msra.mxu0 0
    %1390 = vmatprep.subr.bf16.mxu0 0
    %1391 = vmatpush1.bf16.msra.mxu0 0
    %1392 = vmatprep.mubr.bf16.mxu0 0
    %1393 = vmatmul.mubr.bf16.gmra.mrb[0].mxu0 %v1285
    %v1394 = vpop.f32.mrb[0].mxu0
    %v1395 = vadd.f32 %v1310, %v1394
    %v1396 = vpop.f32.mrb[0].mxu0
    %v1397 = vpop.f32.mrb[0].mxu0
    %v1398 = vadd.f32 %v1310, %v1397
    %v1399 = vpop.f32.mrb[0].mxu0
    %1400 = vmatprep.mubr.bf16.mxu0 0
    %1401 = vmatmul.mubr.bf16.gmra.mrb[0].mxu0 %v1286
    %v1402 = vpop.f32.mrb[0].mxu0
    %v1403 = vadd.f32 %v1310, %v1402
    %v1404 = vpop.f32.mrb[0].mxu0
    %v1405 = vpop.f32.mrb[0].mxu0
    %v1406 = vadd.f32 %v1310, %v1405
    %v1407 = vpop.f32.mrb[0].mxu0
    %1408 = vdwg.mxu0
    %v1409 = vmax.f32 %v1395, 0.0
    %v1410 = vmax.f32 %v1398, 0.0
    %v1411 = vmax.f32 %v1403, 0.0
    %v1412 = vmax.f32 %v1406, 0.0
    %v1413 = vpack.c.bf16 %v1410, %v1409
    %v1414 = vpack.c.bf16 %v1412, %v1411
    %s1415 = scalar_lea.vmem [#allocation2], 192
    %v1416 = vld [vmem:[%s1415] sm:$0xf]
    %v1417 = vld [vmem:[%s1415 + $0x4] sm:$0xf]
    %v1418 = vld [vmem:[%s1415 + $0x8] sm:$0xf]
    %v1419 = vld [vmem:[%s1415 + $0xc] sm:$0xf]
    %v1420 = vld [vmem:[%s1415 + $0x10] sm:$0xf]
    %v1421 = vld [vmem:[%s1415 + $0x14] sm:$0xf]
    %v1422 = vld [vmem:[%s1415 + $0x18] sm:$0xf]
    %v1423 = vld [vmem:[%s1415 + $0x1c] sm:$0xf]
    %v1424 = vld [vmem:[%s1415 + $0x20] sm:$0xf]
    %v1425 = vld [vmem:[%s1415 + $0x24] sm:$0xf]
    %v1426 = vld [vmem:[%s1415 + $0x28] sm:$0xf]
    %v1427 = vld [vmem:[%s1415 + $0x2c] sm:$0xf]
    %v1428 = vld [vmem:[%s1415 + $0x30] sm:$0xf]
    %v1429 = vld [vmem:[%s1415 + $0x34] sm:$0xf]
    %v1430 = vld [vmem:[%s1415 + $0x38] sm:$0xf]
    %v1431 = vld [vmem:[%s1415 + $0x3c] sm:$0xf]
    %s1432 = scalar_lea.vmem %s3, 3
    %v1433 = vld [vmem:[%s1432] sm:$0x1]
    %v1435 = vlaneseq
    %v1436 = vshrl.u32 %v1435, 7
    %v1437 = vsub.s32 0, %v1436
    %v1438 = vrot.slane %v1433, %v1437
    %v1456 = vunpack.c.l.b16 %v1416
    %v1457 = vunpack.c.l.b16 %v1417
    %v1458 = vunpack.c.l.b16 %v1418
    %v1459 = vunpack.c.l.b16 %v1419
    %v1460 = vunpack.c.l.b16 %v1420
    %v1461 = vunpack.c.l.b16 %v1421
    %v1462 = vunpack.c.l.b16 %v1422
    %v1463 = vunpack.c.l.b16 %v1423
    %v1464 = vunpack.c.l.b16 %v1424
    %v1465 = vunpack.c.l.b16 %v1425
    %v1466 = vunpack.c.l.b16 %v1426
    %v1467 = vunpack.c.l.b16 %v1427
    %v1468 = vunpack.c.l.b16 %v1428
    %v1469 = vunpack.c.l.b16 %v1429
    %v1470 = vunpack.c.l.b16 %v1430
    %v1471 = vunpack.c.l.b16 %v1431
    %v1472 = vpack.c.b16 %v1457, %v1456
    %v1473 = vpack.c.b16 %v1459, %v1458
    %v1474 = vpack.c.b16 %v1461, %v1460
    %v1475 = vpack.c.b16 %v1463, %v1462
    %v1476 = vpack.c.b16 %v1465, %v1464
    %v1477 = vpack.c.b16 %v1467, %v1466
    %v1478 = vpack.c.b16 %v1469, %v1468
    %v1479 = vpack.c.b16 %v1471, %v1470
    %1488 = vmatprep.subr.bf16.mxu0 0
    %1489 = vmatpush1.bf16.msra.mxu0 %v1472
    %1490 = vmatprep.subr.bf16.mxu0 0
    %1491 = vmatpush1.bf16.msra.mxu0 %v1473
    %1492 = vmatprep.subr.bf16.mxu0 0
    %1493 = vmatpush1.bf16.msra.mxu0 %v1474
    %1494 = vmatprep.subr.bf16.mxu0 0
    %1495 = vmatpush1.bf16.msra.mxu0 %v1475
    %1496 = vmatprep.subr.bf16.mxu0 0
    %1497 = vmatpush1.bf16.msra.mxu0 %v1476
    %1498 = vmatprep.subr.bf16.mxu0 0
    %1499 = vmatpush1.bf16.msra.mxu0 %v1477
    %1500 = vmatprep.subr.bf16.mxu0 0
    %1501 = vmatpush1.bf16.msra.mxu0 %v1478
    %1502 = vmatprep.subr.bf16.mxu0 0
    %1503 = vmatpush1.bf16.msra.mxu0 %v1479
    %1504 = vmatprep.subr.bf16.mxu0 0
    %1505 = vmatpush1.bf16.msra.mxu0 0
    %1506 = vmatprep.subr.bf16.mxu0 0
    %1507 = vmatpush1.bf16.msra.mxu0 0
    %1508 = vmatprep.subr.bf16.mxu0 0
    %1509 = vmatpush1.bf16.msra.mxu0 0
    %1510 = vmatprep.subr.bf16.mxu0 0
    %1511 = vmatpush1.bf16.msra.mxu0 0
    %1512 = vmatprep.subr.bf16.mxu0 0
    %1513 = vmatpush1.bf16.msra.mxu0 0
    %1514 = vmatprep.subr.bf16.mxu0 0
    %1515 = vmatpush1.bf16.msra.mxu0 0
    %1516 = vmatprep.subr.bf16.mxu0 0
    %1517 = vmatpush1.bf16.msra.mxu0 0
    %1518 = vmatprep.subr.bf16.mxu0 0
    %1519 = vmatpush1.bf16.msra.mxu0 0
    %1520 = vmatprep.mubr.bf16.mxu0 0
    %1521 = vmatmul.mubr.bf16.gmra.mrb[0].mxu0 %v1413
    %v1522 = vpop.f32.mrb[0].mxu0
    %v1523 = vadd.f32 %v1438, %v1522
    %v1524 = vpop.f32.mrb[0].mxu0
    %v1525 = vpop.f32.mrb[0].mxu0
    %v1526 = vadd.f32 %v1438, %v1525
    %v1527 = vpop.f32.mrb[0].mxu0
    %1528 = vmatprep.mubr.bf16.mxu0 0
    %1529 = vmatmul.mubr.bf16.gmra.mrb[0].mxu0 %v1414
    %v1530 = vpop.f32.mrb[0].mxu0
    %v1531 = vadd.f32 %v1438, %v1530
    %v1532 = vpop.f32.mrb[0].mxu0
    %v1533 = vpop.f32.mrb[0].mxu0
    %v1534 = vadd.f32 %v1438, %v1533
    %v1535 = vpop.f32.mrb[0].mxu0
    %1536 = vdwg.mxu0
    %v1537 = vpack.c.bf16 %v1526, %v1523
    %v1538 = vpack.c.bf16 %v1534, %v1531
    %s1539 = scalar_lea.vmem [#allocation2], 256
    %v1540 = vld [vmem:[%s1539] sm:$0xf]
    %v1541 = vld [vmem:[%s1539 + $0x4] sm:$0xf]
    %v1542 = vld [vmem:[%s1539 + $0x8] sm:$0xf]
    %v1543 = vld [vmem:[%s1539 + $0xc] sm:$0xf]
    %v1544 = vld [vmem:[%s1539 + $0x10] sm:$0xf]
    %v1545 = vld [vmem:[%s1539 + $0x14] sm:$0xf]
    %v1546 = vld [vmem:[%s1539 + $0x18] sm:$0xf]
    %v1547 = vld [vmem:[%s1539 + $0x1c] sm:$0xf]
    %v1548 = vld [vmem:[%s1539 + $0x20] sm:$0xf]
    %v1549 = vld [vmem:[%s1539 + $0x24] sm:$0xf]
    %v1550 = vld [vmem:[%s1539 + $0x28] sm:$0xf]
    %v1551 = vld [vmem:[%s1539 + $0x2c] sm:$0xf]
    %v1552 = vld [vmem:[%s1539 + $0x30] sm:$0xf]
    %v1553 = vld [vmem:[%s1539 + $0x34] sm:$0xf]
    %v1554 = vld [vmem:[%s1539 + $0x38] sm:$0xf]
    %v1555 = vld [vmem:[%s1539 + $0x3c] sm:$0xf]
    %s1556 = scalar_lea.vmem %s3, 4
    %v1557 = vld [vmem:[%s1556] sm:$0x1]
    %v1559 = vlaneseq
    %v1560 = vshrl.u32 %v1559, 7
    %v1561 = vsub.s32 0, %v1560
    %v1562 = vrot.slane %v1557, %v1561
    %v1580 = vunpack.c.l.b16 %v1540
    %v1581 = vunpack.c.l.b16 %v1541
    %v1582 = vunpack.c.l.b16 %v1542
    %v1583 = vunpack.c.l.b16 %v1543
    %v1584 = vunpack.c.l.b16 %v1544
    %v1585 = vunpack.c.l.b16 %v1545
    %v1586 = vunpack.c.l.b16 %v1546
    %v1587 = vunpack.c.l.b16 %v1547
    %v1588 = vunpack.c.l.b16 %v1548
    %v1589 = vunpack.c.l.b16 %v1549
    %v1590 = vunpack.c.l.b16 %v1550
    %v1591 = vunpack.c.l.b16 %v1551
    %v1592 = vunpack.c.l.b16 %v1552
    %v1593 = vunpack.c.l.b16 %v1553
    %v1594 = vunpack.c.l.b16 %v1554
    %v1595 = vunpack.c.l.b16 %v1555
    %v1596 = vpack.c.b16 %v1581, %v1580
    %v1597 = vpack.c.b16 %v1583, %v1582
    %v1598 = vpack.c.b16 %v1585, %v1584
    %v1599 = vpack.c.b16 %v1587, %v1586
    %v1600 = vpack.c.b16 %v1589, %v1588
    %v1601 = vpack.c.b16 %v1591, %v1590
    %v1602 = vpack.c.b16 %v1593, %v1592
    %v1603 = vpack.c.b16 %v1595, %v1594
    %1612 = vmatprep.subr.bf16.mxu0 0
    %1613 = vmatpush1.bf16.msra.mxu0 %v1596
    %1614 = vmatprep.subr.bf16.mxu0 0
    %1615 = vmatpush1.bf16.msra.mxu0 %v1597
    %1616 = vmatprep.subr.bf16.mxu0 0
    %1617 = vmatpush1.bf16.msra.mxu0 %v1598
    %1618 = vmatprep.subr.bf16.mxu0 0
    %1619 = vmatpush1.bf16.msra.mxu0 %v1599
    %1620 = vmatprep.subr.bf16.mxu0 0
    %1621 = vmatpush1.bf16.msra.mxu0 %v1600
    %1622 = vmatprep.subr.bf16.mxu0 0
    %1623 = vmatpush1.bf16.msra.mxu0 %v1601
    %1624 = vmatprep.subr.bf16.mxu0 0
    %1625 = vmatpush1.bf16.msra.mxu0 %v1602
    %1626 = vmatprep.subr.bf16.mxu0 0
    %1627 = vmatpush1.bf16.msra.mxu0 %v1603
    %1628 = vmatprep.subr.bf16.mxu0 0
    %1629 = vmatpush1.bf16.msra.mxu0 0
    %1630 = vmatprep.subr.bf16.mxu0 0
    %1631 = vmatpush1.bf16.msra.mxu0 0
    %1632 = vmatprep.subr.bf16.mxu0 0
    %1633 = vmatpush1.bf16.msra.mxu0 0
    %1634 = vmatprep.subr.bf16.mxu0 0
    %1635 = vmatpush1.bf16.msra.mxu0 0
    %1636 = vmatprep.subr.bf16.mxu0 0
    %1637 = vmatpush1.bf16.msra.mxu0 0
    %1638 = vmatprep.subr.bf16.mxu0 0
    %1639 = vmatpush1.bf16.msra.mxu0 0
    %1640 = vmatprep.subr.bf16.mxu0 0
    %1641 = vmatpush1.bf16.msra.mxu0 0
    %1642 = vmatprep.subr.bf16.mxu0 0
    %1643 = vmatpush1.bf16.msra.mxu0 0
    %1644 = vmatprep.mubr.bf16.mxu0 0
    %1645 = vmatmul.mubr.bf16.gmra.mrb[0].mxu0 %v1537
    %v1646 = vpop.f32.mrb[0].mxu0
    %v1647 = vadd.f32 %v1562, %v1646
    %v1648 = vpop.f32.mrb[0].mxu0
    %v1649 = vpop.f32.mrb[0].mxu0
    %v1650 = vadd.f32 %v1562, %v1649
    %v1651 = vpop.f32.mrb[0].mxu0
    %1652 = vmatprep.mubr.bf16.mxu0 0
    %1653 = vmatmul.mubr.bf16.gmra.mrb[0].mxu0 %v1538
    %v1654 = vpop.f32.mrb[0].mxu0
    %v1655 = vadd.f32 %v1562, %v1654
    %v1656 = vpop.f32.mrb[0].mxu0
    %v1657 = vpop.f32.mrb[0].mxu0
    %v1658 = vadd.f32 %v1562, %v1657
    %v1659 = vpop.f32.mrb[0].mxu0
    %1660 = vdwg.mxu0
    %v1661 = vmax.f32 %v1647, 0.0
    %v1662 = vmax.f32 %v1650, 0.0
    %v1663 = vmax.f32 %v1655, 0.0
    %v1664 = vmax.f32 %v1658, 0.0
    %v1665 = vpack.c.bf16 %v1662, %v1661
    %v1666 = vpack.c.bf16 %v1664, %v1663
    %s1667 = scalar_lea.vmem [#allocation2], 320
    %v1668 = vld [vmem:[%s1667] sm:$0xf]
    %v1669 = vld [vmem:[%s1667 + $0x4] sm:$0xf]
    %v1670 = vld [vmem:[%s1667 + $0x8] sm:$0xf]
    %v1671 = vld [vmem:[%s1667 + $0xc] sm:$0xf]
    %v1672 = vld [vmem:[%s1667 + $0x10] sm:$0xf]
    %v1673 = vld [vmem:[%s1667 + $0x14] sm:$0xf]
    %v1674 = vld [vmem:[%s1667 + $0x18] sm:$0xf]
    %v1675 = vld [vmem:[%s1667 + $0x1c] sm:$0xf]
    %v1676 = vld [vmem:[%s1667 + $0x20] sm:$0xf]
    %v1677 = vld [vmem:[%s1667 + $0x24] sm:$0xf]
    %v1678 = vld [vmem:[%s1667 + $0x28] sm:$0xf]
    %v1679 = vld [vmem:[%s1667 + $0x2c] sm:$0xf]
    %v1680 = vld [vmem:[%s1667 + $0x30] sm:$0xf]
    %v1681 = vld [vmem:[%s1667 + $0x34] sm:$0xf]
    %v1682 = vld [vmem:[%s1667 + $0x38] sm:$0xf]
    %v1683 = vld [vmem:[%s1667 + $0x3c] sm:$0xf]
    %s1684 = scalar_lea.vmem %s3, 5
    %v1685 = vld [vmem:[%s1684] sm:$0x1]
    %v1687 = vlaneseq
    %v1688 = vshrl.u32 %v1687, 7
    %v1689 = vsub.s32 0, %v1688
    %v1690 = vrot.slane %v1685, %v1689
    %v1708 = vunpack.c.l.b16 %v1668
    %v1709 = vunpack.c.l.b16 %v1669
    %v1710 = vunpack.c.l.b16 %v1670
    %v1711 = vunpack.c.l.b16 %v1671
    %v1712 = vunpack.c.l.b16 %v1672
    %v1713 = vunpack.c.l.b16 %v1673
    %v1714 = vunpack.c.l.b16 %v1674
    %v1715 = vunpack.c.l.b16 %v1675
    %v1716 = vunpack.c.l.b16 %v1676
    %v1717 = vunpack.c.l.b16 %v1677
    %v1718 = vunpack.c.l.b16 %v1678
    %v1719 = vunpack.c.l.b16 %v1679
    %v1720 = vunpack.c.l.b16 %v1680
    %v1721 = vunpack.c.l.b16 %v1681
    %v1722 = vunpack.c.l.b16 %v1682
    %v1723 = vunpack.c.l.b16 %v1683
    %v1724 = vpack.c.b16 %v1709, %v1708
    %v1725 = vpack.c.b16 %v1711, %v1710
    %v1726 = vpack.c.b16 %v1713, %v1712
    %v1727 = vpack.c.b16 %v1715, %v1714
    %v1728 = vpack.c.b16 %v1717, %v1716
    %v1729 = vpack.c.b16 %v1719, %v1718
    %v1730 = vpack.c.b16 %v1721, %v1720
    %v1731 = vpack.c.b16 %v1723, %v1722
    %1740 = vmatprep.subr.bf16.mxu0 0
    %1741 = vmatpush1.bf16.msra.mxu0 %v1724
    %1742 = vmatprep.subr.bf16.mxu0 0
    %1743 = vmatpush1.bf16.msra.mxu0 %v1725
    %1744 = vmatprep.subr.bf16.mxu0 0
    %1745 = vmatpush1.bf16.msra.mxu0 %v1726
    %1746 = vmatprep.subr.bf16.mxu0 0
    %1747 = vmatpush1.bf16.msra.mxu0 %v1727
    %1748 = vmatprep.subr.bf16.mxu0 0
    %1749 = vmatpush1.bf16.msra.mxu0 %v1728
    %1750 = vmatprep.subr.bf16.mxu0 0
    %1751 = vmatpush1.bf16.msra.mxu0 %v1729
    %1752 = vmatprep.subr.bf16.mxu0 0
    %1753 = vmatpush1.bf16.msra.mxu0 %v1730
    %1754 = vmatprep.subr.bf16.mxu0 0
    %1755 = vmatpush1.bf16.msra.mxu0 %v1731
    %1756 = vmatprep.subr.bf16.mxu0 0
    %1757 = vmatpush1.bf16.msra.mxu0 0
    %1758 = vmatprep.subr.bf16.mxu0 0
    %1759 = vmatpush1.bf16.msra.mxu0 0
    %1760 = vmatprep.subr.bf16.mxu0 0
    %1761 = vmatpush1.bf16.msra.mxu0 0
    %1762 = vmatprep.subr.bf16.mxu0 0
    %1763 = vmatpush1.bf16.msra.mxu0 0
    %1764 = vmatprep.subr.bf16.mxu0 0
    %1765 = vmatpush1.bf16.msra.mxu0 0
    %1766 = vmatprep.subr.bf16.mxu0 0
    %1767 = vmatpush1.bf16.msra.mxu0 0
    %1768 = vmatprep.subr.bf16.mxu0 0
    %1769 = vmatpush1.bf16.msra.mxu0 0
    %1770 = vmatprep.subr.bf16.mxu0 0
    %1771 = vmatpush1.bf16.msra.mxu0 0
    %1772 = vmatprep.mubr.bf16.mxu0 0
    %1773 = vmatmul.mubr.bf16.gmra.mrb[0].mxu0 %v1665
    %v1774 = vpop.f32.mrb[0].mxu0
    %v1775 = vadd.f32 %v1690, %v1774
    %v1776 = vpop.f32.mrb[0].mxu0
    %v1777 = vpop.f32.mrb[0].mxu0
    %v1778 = vadd.f32 %v1690, %v1777
    %v1779 = vpop.f32.mrb[0].mxu0
    %1780 = vmatprep.mubr.bf16.mxu0 0
    %1781 = vmatmul.mubr.bf16.gmra.mrb[0].mxu0 %v1666
    %v1782 = vpop.f32.mrb[0].mxu0
    %v1783 = vadd.f32 %v1690, %v1782
    %v1784 = vpop.f32.mrb[0].mxu0
    %v1785 = vpop.f32.mrb[0].mxu0
    %v1786 = vadd.f32 %v1690, %v1785
    %v1787 = vpop.f32.mrb[0].mxu0
    %1788 = vdwg.mxu0
    %v1789 = vpack.c.bf16 %v1778, %v1775
    %v1790 = vpack.c.bf16 %v1786, %v1783
    %v1791 = vld [vmem:[%s4] sm:$0xf]
    %v1792 = vld [vmem:[%s4 + $0x4] sm:$0xf]
    %v1793 = vld [vmem:[%s4 + $0x8] sm:$0xf]
    %v1794 = vld [vmem:[%s4 + $0xc] sm:$0xf]
    %v1795 = vld [vmem:[%s4 + $0x10] sm:$0xf]
    %v1796 = vld [vmem:[%s4 + $0x14] sm:$0xf]
    %v1797 = vld [vmem:[%s4 + $0x18] sm:$0xf]
    %v1798 = vld [vmem:[%s4 + $0x1c] sm:$0xf]
    %v1799 = vld [vmem:[%s4 + $0x20] sm:$0xf]
    %v1800 = vld [vmem:[%s4 + $0x24] sm:$0xf]
    %v1801 = vld [vmem:[%s4 + $0x28] sm:$0xf]
    %v1802 = vld [vmem:[%s4 + $0x2c] sm:$0xf]
    %v1803 = vld [vmem:[%s4 + $0x30] sm:$0xf]
    %v1804 = vld [vmem:[%s4 + $0x34] sm:$0xf]
    %v1805 = vld [vmem:[%s4 + $0x38] sm:$0xf]
    %v1806 = vld [vmem:[%s4 + $0x3c] sm:$0xf]
    %v1823 = vunpack.c.l.b16 %v1791
    %v1824 = vunpack.c.l.b16 %v1792
    %v1825 = vunpack.c.l.b16 %v1793
    %v1826 = vunpack.c.l.b16 %v1794
    %v1827 = vunpack.c.l.b16 %v1795
    %v1828 = vunpack.c.l.b16 %v1796
    %v1829 = vunpack.c.l.b16 %v1797
    %v1830 = vunpack.c.l.b16 %v1798
    %v1831 = vunpack.c.l.b16 %v1799
    %v1832 = vunpack.c.l.b16 %v1800
    %v1833 = vunpack.c.l.b16 %v1801
    %v1834 = vunpack.c.l.b16 %v1802
    %v1835 = vunpack.c.l.b16 %v1803
    %v1836 = vunpack.c.l.b16 %v1804
    %v1837 = vunpack.c.l.b16 %v1805
    %v1838 = vunpack.c.l.b16 %v1806
    %v1839 = vpack.c.b16 %v1824, %v1823
    %v1840 = vpack.c.b16 %v1826, %v1825
    %v1841 = vpack.c.b16 %v1828, %v1827
    %v1842 = vpack.c.b16 %v1830, %v1829
    %v1843 = vpack.c.b16 %v1832, %v1831
    %v1844 = vpack.c.b16 %v1834, %v1833
    %v1845 = vpack.c.b16 %v1836, %v1835
    %v1846 = vpack.c.b16 %v1838, %v1837
    %1855 = vmatprep.subr.bf16.mxu0 0
    %1856 = vmatpush1.bf16.msra.mxu0 %v1839
    %1857 = vmatprep.subr.bf16.mxu0 0
    %1858 = vmatpush1.bf16.msra.mxu0 %v1840
    %1859 = vmatprep.subr.bf16.mxu0 0
    %1860 = vmatpush1.bf16.msra.mxu0 %v1841
    %1861 = vmatprep.subr.bf16.mxu0 0
    %1862 = vmatpush1.bf16.msra.mxu0 %v1842
    %1863 = vmatprep.subr.bf16.mxu0 0
    %1864 = vmatpush1.bf16.msra.mxu0 %v1843
    %1865 = vmatprep.subr.bf16.mxu0 0
    %1866 = vmatpush1.bf16.msra.mxu0 %v1844
    %1867 = vmatprep.subr.bf16.mxu0 0
    %1868 = vmatpush1.bf16.msra.mxu0 %v1845
    %1869 = vmatprep.subr.bf16.mxu0 0
    %1870 = vmatpush1.bf16.msra.mxu0 %v1846
    %1871 = vmatprep.subr.bf16.mxu0 0
    %1872 = vmatpush1.bf16.msra.mxu0 0
    %1873 = vmatprep.subr.bf16.mxu0 0
    %1874 = vmatpush1.bf16.msra.mxu0 0
    %1875 = vmatprep.subr.bf16.mxu0 0
    %1876 = vmatpush1.bf16.msra.mxu0 0
    %1877 = vmatprep.subr.bf16.mxu0 0
    %1878 = vmatpush1.bf16.msra.mxu0 0
    %1879 = vmatprep.subr.bf16.mxu0 0
    %1880 = vmatpush1.bf16.msra.mxu0 0
    %1881 = vmatprep.subr.bf16.mxu0 0
    %1882 = vmatpush1.bf16.msra.mxu0 0
    %1883 = vmatprep.subr.bf16.mxu0 0
    %1884 = vmatpush1.bf16.msra.mxu0 0
    %1885 = vmatprep.subr.bf16.mxu0 0
    %1886 = vmatpush1.bf16.msra.mxu0 0
    %1887 = vmatprep.mubr.bf16.mxu0 0
    %1888 = vmatmul.mubr.bf16.gmra.mrb[0].mxu0 %v1789
    %v1889 = vpop.f32.mrb[0].mxu0
    %v1890 = vadd.f32 0.0, %v1889
    %v1891 = vpop.f32.mrb[0].mxu0
    %v1892 = vpop.f32.mrb[0].mxu0
    %v1893 = vadd.f32 0.0, %v1892
    %v1894 = vpop.f32.mrb[0].mxu0
    %1895 = vmatprep.mubr.bf16.mxu0 0
    %1896 = vmatmul.mubr.bf16.gmra.mrb[0].mxu0 %v1790
    %v1897 = vpop.f32.mrb[0].mxu0
    %v1898 = vadd.f32 0.0, %v1897
    %v1899 = vpop.f32.mrb[0].mxu0
    %v1900 = vpop.f32.mrb[0].mxu0
    %v1901 = vadd.f32 0.0, %v1900
    %v1902 = vpop.f32.mrb[0].mxu0
    %1903 = vdwg.mxu0
    %v1906 = vunpack.c.l.s4 1966171168
    %v1907 = vunpack.c.0.s8 %v1906
    %v1908 = vlaneseq
    %v1909 = vshrl.u32 %v1908, 7
    %v1910 = vsub.s32 %v1907, %v1909
    %v1911 = vrot.slane %v1032, %v1910
    %v1912 = vcombine.high %v1911, %v1911
    %v1914 = vunpack.c.l.s4 1966171168
    %v1915 = vunpack.c.0.s8 %v1914
    %v1916 = vlaneseq
    %v1917 = vshrl.u32 %v1916, 7
    %v1918 = vsub.s32 %v1915, %v1917
    %v1919 = vrot.slane %v1911, %v1918
    %v1921 = vunpack.c.l.s4 1966171168
    %v1922 = vunpack.c.0.s8 %v1921
    %v1923 = vlaneseq
    %v1924 = vshrl.u32 %v1923, 7
    %v1925 = vsub.s32 %v1922, %v1924
    %v1926 = vrot.slane %v1912, %v1925
    %v1927 = vlaneseq
    %v1928 = vshrl.u32 %v1927, 7
    %v1929 = vsub.s32 0, %v1928
    %v1930 = vrot.slane %v1919, %v1929
    %v1931 = vlaneseq
    %v1932 = vshrl.u32 %v1931, 7
    %v1933 = vsub.s32 0, %v1932
    %v1934 = vrot.slane %v1926, %v1933
    %v1937 = vadd.f32 %v1890, %v1930
    %v1938 = vadd.f32 %v1893, %v1930
    %v1939 = vadd.f32 %v1898, %v1934
    %v1940 = vadd.f32 %v1901, %v1934
    %v1941 = vld [vmem:[%s6] sm:$0x1]
    %v1943 = vlaneseq
    %v1944 = vshrl.u32 %v1943, 7
    %v1945 = vsub.s32 0, %v1944
    %v1946 = vrot.slane %v1941, %v1945
    %v1948 = vadd.f32 %v1937, %v1946
    %v1949 = vadd.f32 %v1938, %v1946
    %v1950 = vadd.f32 %v1939, %v1946
    %v1951 = vadd.f32 %v1940, %v1946
    %v1952 = vmax.f32 %v1948, 0.0
    %v1953 = vmax.f32 %v1949, 0.0
    %v1954 = vmax.f32 %v1950, 0.0
    %v1955 = vmax.f32 %v1951, 0.0
    %v1956 = vpack.c.bf16 %v1953, %v1952
    %v1957 = vpack.c.bf16 %v1955, %v1954
    %v1958 = vld [vmem:[%s7] sm:$0xf]
    %v1959 = vld [vmem:[%s7 + $0x4] sm:$0xf]
    %v1960 = vld [vmem:[%s7 + $0x8] sm:$0xf]
    %v1961 = vld [vmem:[%s7 + $0xc] sm:$0xf]
    %v1962 = vld [vmem:[%s7 + $0x10] sm:$0xf]
    %v1963 = vld [vmem:[%s7 + $0x14] sm:$0xf]
    %v1964 = vld [vmem:[%s7 + $0x18] sm:$0xf]
    %v1965 = vld [vmem:[%s7 + $0x1c] sm:$0xf]
    %v1966 = vld [vmem:[%s8] sm:$0x1]
    %v1968 = vlaneseq
    %v1969 = vshrl.u32 %v1968, 7
    %v1970 = vsub.s32 0, %v1969
    %v1971 = vrot.slane %v1966, %v1970
    %v1981 = vunpack.c.l.b16 %v1958
    %v1982 = vunpack.c.l.b16 %v1959
    %v1983 = vunpack.c.l.b16 %v1960
    %v1984 = vunpack.c.l.b16 %v1961
    %v1985 = vunpack.c.l.b16 %v1962
    %v1986 = vunpack.c.l.b16 %v1963
    %v1987 = vunpack.c.l.b16 %v1964
    %v1988 = vunpack.c.l.b16 %v1965
    %v1989 = vpack.c.b16 %v1982, %v1981
    %v1990 = vpack.c.b16 %v1984, %v1983
    %v1991 = vpack.c.b16 %v1986, %v1985
    %v1992 = vpack.c.b16 %v1988, %v1987
    %vm1997 = vcmask 523264
    %v1999 = vsel %vm1997, %v1956, 0
    %v2002 = vsel %vm1997, %v1957, 0
    %2004 = vmatprep.subr.bf16.mxu0 0
    %2005 = vmatpush1.bf16.msra.mxu0 %v1989
    %2006 = vmatprep.subr.bf16.mxu0 0
    %2007 = vmatpush1.bf16.msra.mxu0 %v1990
    %2008 = vmatprep.subr.bf16.mxu0 0
    %2009 = vmatpush1.bf16.msra.mxu0 %v1991
    %2010 = vmatprep.subr.bf16.mxu0 0
    %2011 = vmatpush1.bf16.msra.mxu0 %v1992
    %2012 = vmatprep.subr.bf16.mxu0 0
    %2013 = vmatpush1.bf16.msra.mxu0 0
    %2014 = vmatprep.subr.bf16.mxu0 0
    %2015 = vmatpush1.bf16.msra.mxu0 0
    %2016 = vmatprep.subr.bf16.mxu0 0
    %2017 = vmatpush1.bf16.msra.mxu0 0
    %2018 = vmatprep.subr.bf16.mxu0 0
    %2019 = vmatpush1.bf16.msra.mxu0 0
    %2020 = vmatprep.subr.bf16.mxu0 0
    %2021 = vmatpush1.bf16.msra.mxu0 0
    %2022 = vmatprep.subr.bf16.mxu0 0
    %2023 = vmatpush1.bf16.msra.mxu0 0
    %2024 = vmatprep.subr.bf16.mxu0 0
    %2025 = vmatpush1.bf16.msra.mxu0 0
    %2026 = vmatprep.subr.bf16.mxu0 0
    %2027 = vmatpush1.bf16.msra.mxu0 0
    %2028 = vmatprep.subr.bf16.mxu0 0
    %2029 = vmatpush1.bf16.msra.mxu0 0
    %2030 = vmatprep.subr.bf16.mxu0 0
    %2031 = vmatpush1.bf16.msra.mxu0 0
    %2032 = vmatprep.subr.bf16.mxu0 0
    %2033 = vmatpush1.bf16.msra.mxu0 0
    %2034 = vmatprep.subr.bf16.mxu0 0
    %2035 = vmatpush1.bf16.msra.mxu0 0
    %2036 = vmatprep.mubr.bf16.mxu0 0
    %2037 = vmatmul.mubr.bf16.gmra.mrb[0].mxu0 %v1999
    %v2038 = vpop.f32.mrb[0].mxu0
    %v2039 = vadd.f32 %v1971, %v2038
    %v2040 = vpop.f32.mrb[0].mxu0
    %v2041 = vpop.f32.mrb[0].mxu0
    %v2042 = vadd.f32 %v1971, %v2041
    %v2043 = vpop.f32.mrb[0].mxu0
    %2044 = vmatprep.mubr.bf16.mxu0 0
    %2045 = vmatmul.mubr.bf16.gmra.mrb[0].mxu0 %v2002
    %v2046 = vpop.f32.mrb[0].mxu0
    %v2047 = vadd.f32 %v1971, %v2046
    %v2048 = vpop.f32.mrb[0].mxu0
    %v2049 = vpop.f32.mrb[0].mxu0
    %v2050 = vadd.f32 %v1971, %v2049
    %v2051 = vpop.f32.mrb[0].mxu0
    %2052 = vdwg.mxu0
    %v2053 = vmax.f32 %v2039, 0.0
    %v2054 = vmax.f32 %v2042, 0.0
    %v2055 = vmax.f32 %v2047, 0.0
    %v2056 = vmax.f32 %v2050, 0.0
    %v2057 = vpack.c.bf16 %v2054, %v2053
    %v2058 = vpack.c.bf16 %v2056, %v2055
    %v2059 = vld [vmem:[%s9] sm:$0xf]
    %v2060 = vld [vmem:[%s9 + $0x4] sm:$0xf]
    %v2061 = vld [vmem:[%s9 + $0x8] sm:$0xf]
    %v2062 = vld [vmem:[%s9 + $0xc] sm:$0xf]
    %v2063 = vld [vmem:[%s10] sm:$0x1]
    %v2065 = vlaneseq
    %v2066 = vshrl.u32 %v2065, 7
    %v2067 = vsub.s32 0, %v2066
    %v2068 = vrot.slane %v2063, %v2067
    %v2074 = vunpack.c.l.b16 %v2059
    %v2075 = vunpack.c.l.b16 %v2060
    %v2076 = vunpack.c.l.b16 %v2061
    %v2077 = vunpack.c.l.b16 %v2062
    %v2078 = vpack.c.b16 %v2075, %v2074
    %v2079 = vpack.c.b16 %v2077, %v2076
    %vm2082 = vcmask 261120
    %v2084 = vsel %vm2082, %v2057, 0
    %v2087 = vsel %vm2082, %v2058, 0
    %2089 = vmatprep.subr.bf16.mxu0 0
    %2090 = vmatpush1.bf16.msra.mxu0 %v2078
    %2091 = vmatprep.subr.bf16.mxu0 0
    %2092 = vmatpush1.bf16.msra.mxu0 %v2079
    %2093 = vmatprep.subr.bf16.mxu0 0
    %2094 = vmatpush1.bf16.msra.mxu0 0
    %2095 = vmatprep.subr.bf16.mxu0 0
    %2096 = vmatpush1.bf16.msra.mxu0 0
    %2097 = vmatprep.subr.bf16.mxu0 0
    %2098 = vmatpush1.bf16.msra.mxu0 0
    %2099 = vmatprep.subr.bf16.mxu0 0
    %2100 = vmatpush1.bf16.msra.mxu0 0
    %2101 = vmatprep.subr.bf16.mxu0 0
    %2102 = vmatpush1.bf16.msra.mxu0 0
    %2103 = vmatprep.subr.bf16.mxu0 0
    %2104 = vmatpush1.bf16.msra.mxu0 0
    %2105 = vmatprep.subr.bf16.mxu0 0
    %2106 = vmatpush1.bf16.msra.mxu0 0
    %2107 = vmatprep.subr.bf16.mxu0 0
    %2108 = vmatpush1.bf16.msra.mxu0 0
    %2109 = vmatprep.subr.bf16.mxu0 0
    %2110 = vmatpush1.bf16.msra.mxu0 0
    %2111 = vmatprep.subr.bf16.mxu0 0
    %2112 = vmatpush1.bf16.msra.mxu0 0
    %2113 = vmatprep.subr.bf16.mxu0 0
    %2114 = vmatpush1.bf16.msra.mxu0 0
    %2115 = vmatprep.subr.bf16.mxu0 0
    %2116 = vmatpush1.bf16.msra.mxu0 0
    %2117 = vmatprep.subr.bf16.mxu0 0
    %2118 = vmatpush1.bf16.msra.mxu0 0
    %2119 = vmatprep.subr.bf16.mxu0 0
    %2120 = vmatpush1.bf16.msra.mxu0 0
    %2121 = vmatprep.mubr.bf16.mxu0 0
    %2122 = vmatmul.mubr.bf16.gmra.mrb[0].mxu0 %v2084
    %v2123 = vpop.f32.mrb[0].mxu0
    %v2124 = vadd.f32 %v2068, %v2123
    %v2125 = vpop.f32.mrb[0].mxu0
    %v2126 = vpop.f32.mrb[0].mxu0
    %v2127 = vadd.f32 %v2068, %v2126
    %v2128 = vpop.f32.mrb[0].mxu0
    %2129 = vmatprep.mubr.bf16.mxu0 0
    %2130 = vmatmul.mubr.bf16.gmra.mrb[0].mxu0 %v2087
    %v2131 = vpop.f32.mrb[0].mxu0
    %v2132 = vadd.f32 %v2068, %v2131
    %v2133 = vpop.f32.mrb[0].mxu0
    %v2134 = vpop.f32.mrb[0].mxu0
    %v2135 = vadd.f32 %v2068, %v2134
    %v2136 = vpop.f32.mrb[0].mxu0
    %2137 = vdwg.mxu0
    %2142 = vrot.lane.b32.xlu0 %v2124, 1
    %v2143 = vpop.permute.xlu0 %2142
    %2144 = vrot.lane.b32.xlu0 %v2127, 1
    %v2145 = vpop.permute.xlu0 %2144
    %2146 = vrot.lane.b32.xlu0 %v2132, 1
    %v2147 = vpop.permute.xlu0 %2146
    %2148 = vrot.lane.b32.xlu0 %v2135, 1
    %v2149 = vpop.permute.xlu0 %2148
    %v2154 = vsub.f32 %v2124, %v2143
    %v2155 = vsub.f32 %v2127, %v2145
    %v2156 = vsub.f32 %v2132, %v2147
    %v2157 = vsub.f32 %v2135, %v2149
    %v2158 = vmax.f32 %v2154, 0.0
    %v2159 = vmax.f32 %v2155, 0.0
    %v2160 = vmax.f32 %v2156, 0.0
    %v2161 = vmax.f32 %v2157, 0.0
    %2166 = vrot.lane.b32.xlu0 %v2158, 127
    %v2167 = vpop.permute.xlu0 %2166
    %2168 = vrot.lane.b32.xlu0 %v2159, 127
    %v2169 = vpop.permute.xlu0 %2168
    %2170 = vrot.lane.b32.xlu0 %v2160, 127
    %v2171 = vpop.permute.xlu0 %2170
    %2172 = vrot.lane.b32.xlu0 %v2161, 127
    %v2173 = vpop.permute.xlu0 %2172
    %v2178 = vadd.f32 %v2124, %v2167
    %v2179 = vadd.f32 %v2127, %v2169
    %v2180 = vadd.f32 %v2132, %v2171
    %v2181 = vadd.f32 %v2135, %v2173
    %v2182 = vand.u32 2147483647, %v2154
    %v2183 = vand.u32 2147483647, %v2155
    %v2184 = vand.u32 2147483647, %v2156
    %v2185 = vand.u32 2147483647, %v2157
    %v2186 = vsub.f32 0.0, %v2182
    %v2187 = vsub.f32 0.0, %v2183
    %v2188 = vsub.f32 0.0, %v2184
    %v2189 = vsub.f32 0.0, %v2185
    %v2190 = vmul.f32 %v2186, 1.442695
    %v2191 = vpow.pop %v2190
    %v2192 = vmul.f32 %v2187, 1.442695
    %v2193 = vpow.pop %v2192
    %v2194 = vmul.f32 %v2188, 1.442695
    %v2195 = vpow.pop %v2194
    %v2196 = vmul.f32 %v2189, 1.442695
    %v2197 = vpow.pop %v2196
    %v2198 = vadd.f32 %v2191, 1.0
    %v2199 = vadd.f32 %v2193, 1.0
    %v2200 = vadd.f32 %v2195, 1.0
    %v2201 = vadd.f32 %v2197, 1.0
    %v2202 = vlog2.pop %v2198
    %v2203 = vmul.f32 %v2202, 0.6931472
    %v2204 = vlog2.pop %v2199
    %v2205 = vmul.f32 %v2204, 0.6931472
    %v2206 = vlog2.pop %v2200
    %v2207 = vmul.f32 %v2206, 0.6931472
    %v2208 = vlog2.pop %v2201
    %v2209 = vmul.f32 %v2208, 0.6931472
    %2214 = vrot.lane.b32.xlu0 %v2203, 127
    %v2215 = vpop.permute.xlu0 %2214
    %2216 = vrot.lane.b32.xlu0 %v2205, 127
    %v2217 = vpop.permute.xlu0 %2216
    %2218 = vrot.lane.b32.xlu0 %v2207, 127
    %v2219 = vpop.permute.xlu0 %2218
    %2220 = vrot.lane.b32.xlu0 %v2209, 127
    %v2221 = vpop.permute.xlu0 %2220
    %v2226 = vadd.f32 %v2178, %v2215
    %v2227 = vadd.f32 %v2179, %v2217
    %v2228 = vadd.f32 %v2180, %v2219
    %v2229 = vadd.f32 %v2181, %v2221
    %2231 = vset.pattern.permute.xlu0 0
    %2232 = vperm.xlu0 %2231, %v2226
    %v2233 = vpop.permute.xlu0 %2232
    %2236 = vset.pattern.permute.xlu0 0
    %2237 = vperm.xlu0 %2236, %v2227
    %v2238 = vpop.permute.xlu0 %2237
    %2241 = vset.pattern.permute.xlu0 0
    %2242 = vperm.xlu0 %2241, %v2228
    %v2243 = vpop.permute.xlu0 %2242
    %2246 = vset.pattern.permute.xlu0 0
    %2247 = vperm.xlu0 %2246, %v2229
    %v2248 = vpop.permute.xlu0 %2247
    %v2250 = vsub.f32 %v2124, %v2233
    %v2251 = vsub.f32 %v2127, %v2238
    %v2252 = vsub.f32 %v2132, %v2243
    %v2253 = vsub.f32 %v2135, %v2248
    %vm2254 = vcmask 15360
    %2255 = vst.msk [vmem:[%s11] sm:$0xff] %vm2254, %v2250
    %2256 = vst.msk [vmem:[%s11 + $0x8] sm:$0xff] %vm2254, %v2251
    %2257 = vst.msk [vmem:[%s11 + $0x10] sm:$0xff] %vm2254, %v2252
    %2258 = vst.msk [vmem:[%s11 + $0x18] sm:$0xff] %vm2254, %v2253
    // Predicated region
    $region50: #{tpu_custom_call.1} parent=1 // pred_check
      _
    $region51: #{tpu_custom_call.1} parent=1 // pred_check_branch
      %2260 = sbr.rel (0) target = $region53
    $region52: #{tpu_custom_call.1} parent=1 // pred_region
      _
    $region53: #{tpu_custom_call.1} parent=1 // pred_fallthru
      _
    // Predicated region
    $region54: #{tpu_custom_call.1} parent=1 // pred_check
      _
    $region55: #{tpu_custom_call.1} parent=1 // pred_check_branch
      %2262 = sbr.rel (0) target = $region57
    $region56: #{tpu_custom_call.1} parent=1 // pred_region
      _
    $region57: #{tpu_custom_call.1} parent=1 // pred_fallthru
      _
    %2263 = vsyncpa [#allocation3], 1

</llo_original>
